<compile_context>
chip_gen: v5e
topology: v5e:2x2
jax: 0.10.0
libtpu: 0.0.40
codegen_flags: <defaults>
</compile_context>

<pallas_src>
import functools

import jax
import jax.numpy as jnp
from jax import lax
from jax.experimental import pallas as pl
from jax.experimental.pallas import tpu as pltpu


def _round_up(n, m):
    return ((n + m - 1) // m) * m


def _choose_block_t(t, in_p, out_p, vmem_budget_bytes):
    """Pick the timestep block so the double-buffered streams fit the budget."""
    f32 = 4
    # Per-timestep VMEM of the streamed blocks (eta dominates; the (.,.,1)
    # column stream is lane-padded to a full 128-lane tile in VMEM).
    per_step = (in_p * out_p          # eta
                + in_p * 128          # x column stream (lane-padded)
                + in_p                # x row stream
                + 2 * out_p) * f32    # base logits + output
    fixed = (2 * in_p * out_p + in_p * out_p) * f32   # alpha (2 bufs) + trace
    budget = max(vmem_budget_bytes - fixed - (2 << 20), per_step * 2 * 8)
    tb = budget // (2 * per_step)                     # 2 == double buffering
    tb = max(8, min(64, (tb // 8) * 8))
    tb = min(tb, _round_up(max(t, 1), 8))             # no larger than padded T
    return int(tb)


def _plastic_block_kernel(base_ref, x_ref, xcol_ref, eta_ref, alpha_ref,
                          out_ref, trace_ref, *, block_t):
    # reset_trace() at the start of the sequence (is_training=True semantics).
    # TODO(synk): is_training=False (trace persisted across forward calls via
    # module state) is not modelled; thread the trace in/out if needed.
    @pl.when(pl.program_id(0) == 0)
    def _():
        trace_ref[...] = jnp.zeros_like(trace_ref)

    alpha = alpha_ref[...]                      # (IN_P, OUT_P), hoisted

    # Statically unrolled serial recurrence over this block's timesteps.
    for t in range(block_t):
        trace = trace_ref[...]                  # (IN_P, OUT_P)
        x_row = x_ref[pl.ds(t, 1), :]           # (1, IN_P)
        x_col = xcol_ref[t]                     # (IN_P, 1)
        eta_t = eta_ref[t]                      # (IN_P, OUT_P)
        base_t = base_ref[pl.ds(t, 1), :]       # (1, OUT_P) = x_t @ w + b

        # logits = (x @ w + b) + x @ (alpha * trace); only the trace-dependent
        # GEMV stays inside the serial loop.
        delta = jnp.dot(x_row, alpha * trace,
                        preferred_element_type=jnp.float32)
        logits = base_t + delta                 # (1, OUT_P)

        # Softmax over classes (padded classes hold -1e30 -> exactly 0 prob).
        m = jnp.max(logits, axis=-1, keepdims=True)
        e = jnp.exp(logits - m)
        inv = pl.reciprocal(jnp.sum(e, axis=-1, keepdims=True), approx=True)
        x_out = e * inv                         # (1, OUT_P)

        # Hebbian outer product as a VPU broadcast multiply (no K=1 MXU op).
        outer = x_col * x_out                   # (IN_P, OUT_P)

        # trace <- clip(trace + eta * (outer - trace), -1, 1)
        trace_ref[...] = jnp.clip(trace + eta_t * (outer - trace), -1.0, 1.0)

        out_ref[pl.ds(t, 1), :] = x_out.astype(out_ref.dtype)


def plastic_forward(x, eta, w, alpha, b, *, block_t=None,
                    vmem_budget_bytes=32 * 1024 * 1024):
    """Forward pass of Plastic(in_features, out_features) with softmax."""
    T, IN = x.shape
    OUT = w.shape[-1]
    eta = jnp.reshape(eta, (T, IN, OUT))        # PyTorch reshapes eta per step

    IN_P = _round_up(IN, 8)                     # sublane alignment
    OUT_P = _round_up(OUT, 128)                 # lane-dense class dim
    if block_t is None:
        block_t = _choose_block_t(T, IN_P, OUT_P, vmem_budget_bytes)
    T_P = _round_up(max(T, 1), block_t)

    f32 = jnp.float32
    x32, eta32 = x.astype(f32), eta.astype(f32)
    w32, alpha32, b32 = w.astype(f32), alpha.astype(f32), b.astype(f32)

    # Trace-independent half of the per-step matmul as one batched MXU matmul.
    base = x32 @ w32 + b32[0]                   # (T, OUT)

    pt, pi, po = T_P - T, IN_P - IN, OUT_P - OUT
    base_p = jnp.pad(base, ((0, pt), (0, po)), constant_values=-1e30)
    x_p = jnp.pad(x32, ((0, pt), (0, pi)))
    eta_p = jnp.pad(eta32, ((0, pt), (0, pi), (0, po)))
    alpha_p = jnp.pad(alpha32, ((0, pi), (0, po)))
    xcol_p = x_p[:, :, None]                    # (T_P, IN_P, 1) column layout

    kernel = functools.partial(_plastic_block_kernel, block_t=block_t)
    out_p = pl.pallas_call(
        kernel,
        out_shape=jax.ShapeDtypeStruct((T_P, OUT_P), f32),
        grid_spec=pltpu.PrefetchScalarGridSpec(
            num_scalar_prefetch=0,
            grid=(T_P // block_t,),
            in_specs=[
                pl.BlockSpec((block_t, OUT_P), lambda i: (i, 0)),           # x@w+b
                pl.BlockSpec((block_t, IN_P), lambda i: (i, 0)),            # x rows
                pl.BlockSpec((block_t, IN_P, 1), lambda i: (i, 0, 0)),      # x cols
                pl.BlockSpec((block_t, IN_P, OUT_P), lambda i: (i, 0, 0)),  # eta
                # constant index_map: DMA'd once, then revisited (no re-fetch).
                pl.BlockSpec((IN_P, OUT_P), lambda i: (0, 0)),              # alpha
            ],
            out_specs=pl.BlockSpec((block_t, OUT_P), lambda i: (i, 0)),
            scratch_shapes=[pltpu.VMEM((IN_P, OUT_P), f32)],                # trace
        ),
        compiler_params=pltpu.CompilerParams(
            # The trace recurrence is serial: keep the T axis "arbitrary".
            dimension_semantics=("arbitrary",),
            vmem_limit_bytes=int(min(vmem_budget_bytes + (8 << 20), 100 << 20)),
        ),
    )(base_p, x_p, xcol_p, eta_p, alpha_p)

    return out_p[:T, :OUT]


def plastic_reference(x, eta, w, alpha, b):
    """Pure-JAX reference of the PyTorch forward (for validation)."""
    T, IN = x.shape
    OUT = w.shape[-1]
    eta = jnp.reshape(eta, (T, IN, OUT)).astype(jnp.float32)

    def step(trace, inp):
        x_t, eta_t = inp
        x_in = x_t[None, :]
        logits = x_in @ (w + alpha * trace) + b[0]
        x_out = jax.nn.softmax(logits, axis=-1)
        outer = x_in.T @ x_out
        trace = jnp.clip((1.0 - eta_t) * trace + eta_t * outer, -1.0, 1.0)
        return trace, x_out[0]

    trace0 = jnp.zeros_like(w)
    _, ys = lax.scan(step, trace0, (x.astype(jnp.float32), eta))
    return ys


if __name__ == "__main__":
    # The real head is Plastic(768, n_classes) fed with the BERT pooled output;
    # use a reduced hidden size here so the self-check compiles fast.
    T, IN, N_CLASSES = 20, 256, 5

    key = jax.random.PRNGKey(0)
    k_w, k_a, k_b, k_x, k_e = jax.random.split(key, 5)

    # Parameter init matches nn.Parameter(0.01 * torch.randn(...)).
    w = 0.01 * jax.random.normal(k_w, (IN, N_CLASSES), dtype=jnp.float32)
    alpha = 0.01 * jax.random.normal(k_a, (IN, N_CLASSES), dtype=jnp.float32)
    b = 0.01 * jax.random.normal(k_b, (1,), dtype=jnp.float32)

    x = jax.random.normal(k_x, (T, IN), dtype=jnp.float32)   # encoder-output stand-in
    eta = jax.random.uniform(k_e, (T, IN, N_CLASSES), dtype=jnp.float32)

    # block_t=8 keeps the statically-unrolled demo kernel small (and exercises
    # multi-block trace carry + the padded tail); leave block_t=None for
    # production sizes so the block is sized against the VMEM budget.
    out = plastic_forward(x, eta, w, alpha, b, block_t=8)
    out = jax.block_until_ready(out)

    ref = plastic_reference(x, eta, w, alpha, b)
    assert out.shape == (T, N_CLASSES)
    err = float(jnp.max(jnp.abs(out - ref)))
    # Tolerance covers the approximate EUP reciprocal in the in-kernel softmax
    # fed back through the trace recurrence; real bugs show up as O(0.1) errors.
    assert err < 2e-3, f"mismatch vs reference: max abs err = {err}"
    print("KERNEL_OK")
</pallas_src>

<mosaic_0001>
module attributes {stable_mosaic.version = 11 : i64} {
  func.func @_plastic_block_kernel(%arg0: i32, %arg1: memref<8x128xf32, #tpu.memory_space<vmem>>, %arg2: memref<8x256xf32, #tpu.memory_space<vmem>>, %arg3: memref<8x256x1xf32, #tpu.memory_space<vmem>>, %arg4: memref<8x256x128xf32, #tpu.memory_space<vmem>>, %arg5: memref<256x128xf32, #tpu.memory_space<vmem>>, %arg6: memref<8x128xf32, #tpu.memory_space<vmem>>, %arg7: memref<256x128xf32, #tpu.memory_space<vmem>>) attributes {dimension_semantics = [#tpu.dimension_semantics<arbitrary>], iteration_bounds = array<i64: 3>, scalar_prefetch = 0 : i64, scratch_operands = 1 : i64, tpu.core_type = #tpu.core_type<tc>, window_params = [{transform_indices = @transform_0, window_bounds = array<i64: 8, 128>}, {transform_indices = @transform_1, window_bounds = array<i64: 8, 256>}, {transform_indices = @transform_2, window_bounds = array<i64: 8, 256, 1>}, {transform_indices = @transform_3, window_bounds = array<i64: 8, 256, 128>}, {pipeline_mode = #tpu.pipeline_mode<synchronous>, transform_indices = @transform_4, window_bounds = array<i64: 256, 128>}, {transform_indices = @transform_5, window_bounds = array<i64: 8, 128>}]} {
    %c0_i32 = arith.constant 0 : i32
    %0 = arith.cmpi eq, %arg0, %c0_i32 : i32
    %1 = arith.extui %0 : i1 to i32
    %c0_i32_0 = arith.constant 0 : i32
    %2 = arith.cmpi ne, %1, %c0_i32_0 : i32
    scf.if %2 {
      %cst_162 = arith.constant 0.000000e+00 : f32
      %260 = vector.broadcast %cst_162 : f32 to vector<256x128xf32>
      %c0_163 = arith.constant 0 : index
      %c0_164 = arith.constant 0 : index
      %261 = vector.load %arg7[%c0_163, %c0_164] : memref<256x128xf32, #tpu.memory_space<vmem>>, vector<256x128xf32>
      tpu.vector_store %arg7[%c0_163, %c0_164], %260 {strides = array<i32>} : memref<256x128xf32, #tpu.memory_space<vmem>>, vector<256x128xf32>,
    } else {
    }
    %c0 = arith.constant 0 : index
    %c0_1 = arith.constant 0 : index
    %3 = vector.load %arg5[%c0, %c0_1] : memref<256x128xf32, #tpu.memory_space<vmem>>, vector<256x128xf32>
    %c0_2 = arith.constant 0 : index
    %c0_3 = arith.constant 0 : index
    %4 = vector.load %arg7[%c0_2, %c0_3] : memref<256x128xf32, #tpu.memory_space<vmem>>, vector<256x128xf32>
    %c0_4 = arith.constant 0 : index
    %c0_5 = arith.constant 0 : index
    %5 = vector.load %arg2[%c0_4, %c0_5] : memref<8x256xf32, #tpu.memory_space<vmem>>, vector<1x256xf32>
    %c0_6 = arith.constant 0 : index
    %c0_7 = arith.constant 0 : index
    %c0_8 = arith.constant 0 : index
    %6 = vector.load %arg3[%c0_6, %c0_7, %c0_8] : memref<8x256x1xf32, #tpu.memory_space<vmem>>, vector<1x256x1xf32>
    %7 = vector.shape_cast %6 : vector<1x256x1xf32> to vector<256x1xf32>
    %c0_9 = arith.constant 0 : index
    %c0_10 = arith.constant 0 : index
    %c0_11 = arith.constant 0 : index
    %8 = vector.load %arg4[%c0_9, %c0_10, %c0_11] : memref<8x256x128xf32, #tpu.memory_space<vmem>>, vector<1x256x128xf32>
    %9 = vector.shape_cast %8 : vector<1x256x128xf32> to vector<256x128xf32>
    %c0_12 = arith.constant 0 : index
    %c0_13 = arith.constant 0 : index
    %10 = vector.load %arg1[%c0_12, %c0_13] : memref<8x128xf32, #tpu.memory_space<vmem>>, vector<1x128xf32>
    %11 = arith.mulf %3, %4 : vector<256x128xf32>
    %cst = arith.constant dense<0.000000e+00> : vector<1x128xf32>
    %12 = tpu.matmul %5, %11, %cst {dimension_numbers = #tpu.dot_dimension_numbers<[1], [0], [0], [1], [0, 0, 1, 1], [], []>} : vector<1x256xf32>, vector<256x128xf32>, vector<1x128xf32> -> vector<1x128xf32>
    %13 = arith.addf %10, %12 : vector<1x128xf32>
    %cst_14 = arith.constant dense<0xFF800000> : vector<1xf32>
    %14 = vector.multi_reduction <maximumf>, %13, %cst_14 [1] : vector<1x128xf32> to vector<1xf32>
    %15 = vector.shape_cast %14 : vector<1xf32> to vector<1x1xf32>
    %16 = vector.broadcast %15 : vector<1x1xf32> to vector<1x128xf32>
    %17 = arith.subf %13, %16 : vector<1x128xf32>
    %18 = math.exp %17 : vector<1x128xf32>
    %cst_15 = arith.constant dense<0.000000e+00> : vector<1xf32>
    %19 = vector.multi_reduction <add>, %18, %cst_15 [1] : vector<1x128xf32> to vector<1xf32>
    %20 = vector.shape_cast %19 : vector<1xf32> to vector<1x1xf32>
    %21 = tpu.reciprocal %20 {approx = true} : vector<1x1xf32> -> vector<1x1xf32>
    %22 = vector.broadcast %21 : vector<1x1xf32> to vector<1x128xf32>
    %23 = arith.mulf %18, %22 : vector<1x128xf32>
    %24 = vector.broadcast %7 : vector<256x1xf32> to vector<256x128xf32>
    %25 = vector.broadcast %23 : vector<1x128xf32> to vector<256x128xf32>
    %26 = arith.mulf %24, %25 : vector<256x128xf32>
    %27 = arith.subf %26, %4 : vector<256x128xf32>
    %28 = arith.mulf %9, %27 : vector<256x128xf32>
    %29 = arith.addf %4, %28 : vector<256x128xf32>
    %cst_16 = arith.constant -1.000000e+00 : f32
    %cst_17 = arith.constant 1.000000e+00 : f32
    %30 = vector.broadcast %cst_16 : f32 to vector<256x128xf32>
    %31 = arith.maximumf %30, %29 : vector<256x128xf32>
    %32 = vector.broadcast %cst_17 : f32 to vector<256x128xf32>
    %33 = arith.minimumf %32, %31 : vector<256x128xf32>
    %c0_18 = arith.constant 0 : index
    %c0_19 = arith.constant 0 : index
    %34 = vector.load %arg7[%c0_18, %c0_19] : memref<256x128xf32, #tpu.memory_space<vmem>>, vector<256x128xf32>
    tpu.vector_store %arg7[%c0_18, %c0_19], %33 {strides = array<i32>} : memref<256x128xf32, #tpu.memory_space<vmem>>, vector<256x128xf32>,
    %c0_20 = arith.constant 0 : index
    %c0_21 = arith.constant 0 : index
    %35 = vector.load %arg6[%c0_20, %c0_21] : memref<8x128xf32, #tpu.memory_space<vmem>>, vector<1x128xf32>
    tpu.vector_store %arg6[%c0_20, %c0_21], %23 {strides = array<i32>} : memref<8x128xf32, #tpu.memory_space<vmem>>, vector<1x128xf32>,
    %c0_22 = arith.constant 0 : index
    %c0_23 = arith.constant 0 : index
    %36 = vector.load %arg7[%c0_22, %c0_23] : memref<256x128xf32, #tpu.memory_space<vmem>>, vector<256x128xf32>
    %c1 = arith.constant 1 : index
    %c0_24 = arith.constant 0 : index
    %37 = vector.load %arg2[%c1, %c0_24] : memref<8x256xf32, #tpu.memory_space<vmem>>, vector<1x256xf32>
    %c1_25 = arith.constant 1 : index
    %c0_26 = arith.constant 0 : index
    %c0_27 = arith.constant 0 : index
    %38 = vector.load %arg3[%c1_25, %c0_26, %c0_27] : memref<8x256x1xf32, #tpu.memory_space<vmem>>, vector<1x256x1xf32>
    %39 = vector.shape_cast %38 : vector<1x256x1xf32> to vector<256x1xf32>
    %c1_28 = arith.constant 1 : index
    %c0_29 = arith.constant 0 : index
    %c0_30 = arith.constant 0 : index
    %40 = vector.load %arg4[%c1_28, %c0_29, %c0_30] : memref<8x256x128xf32, #tpu.memory_space<vmem>>, vector<1x256x128xf32>
    %41 = vector.shape_cast %40 : vector<1x256x128xf32> to vector<256x128xf32>
    %c1_31 = arith.constant 1 : index
    %c0_32 = arith.constant 0 : index
    %42 = vector.load %arg1[%c1_31, %c0_32] : memref<8x128xf32, #tpu.memory_space<vmem>>, vector<1x128xf32>
    %43 = arith.mulf %3, %36 : vector<256x128xf32>
    %cst_33 = arith.constant dense<0.000000e+00> : vector<1x128xf32>
    %44 = tpu.matmul %37, %43, %cst_33 {dimension_numbers = #tpu.dot_dimension_numbers<[1], [0], [0], [1], [0, 0, 1, 1], [], []>} : vector<1x256xf32>, vector<256x128xf32>, vector<1x128xf32> -> vector<1x128xf32>
    %45 = arith.addf %42, %44 : vector<1x128xf32>
    %cst_34 = arith.constant dense<0xFF800000> : vector<1xf32>
    %46 = vector.multi_reduction <maximumf>, %45, %cst_34 [1] : vector<1x128xf32> to vector<1xf32>
    %47 = vector.shape_cast %46 : vector<1xf32> to vector<1x1xf32>
    %48 = vector.broadcast %47 : vector<1x1xf32> to vector<1x128xf32>
    %49 = arith.subf %45, %48 : vector<1x128xf32>
    %50 = math.exp %49 : vector<1x128xf32>
    %cst_35 = arith.constant dense<0.000000e+00> : vector<1xf32>
    %51 = vector.multi_reduction <add>, %50, %cst_35 [1] : vector<1x128xf32> to vector<1xf32>
    %52 = vector.shape_cast %51 : vector<1xf32> to vector<1x1xf32>
    %53 = tpu.reciprocal %52 {approx = true} : vector<1x1xf32> -> vector<1x1xf32>
    %54 = vector.broadcast %53 : vector<1x1xf32> to vector<1x128xf32>
    %55 = arith.mulf %50, %54 : vector<1x128xf32>
    %56 = vector.broadcast %39 : vector<256x1xf32> to vector<256x128xf32>
    %57 = vector.broadcast %55 : vector<1x128xf32> to vector<256x128xf32>
    %58 = arith.mulf %56, %57 : vector<256x128xf32>
    %59 = arith.subf %58, %36 : vector<256x128xf32>
    %60 = arith.mulf %41, %59 : vector<256x128xf32>
    %61 = arith.addf %36, %60 : vector<256x128xf32>
    %cst_36 = arith.constant -1.000000e+00 : f32
    %cst_37 = arith.constant 1.000000e+00 : f32
    %62 = vector.broadcast %cst_36 : f32 to vector<256x128xf32>
    %63 = arith.maximumf %62, %61 : vector<256x128xf32>
    %64 = vector.broadcast %cst_37 : f32 to vector<256x128xf32>
    %65 = arith.minimumf %64, %63 : vector<256x128xf32>
    %c0_38 = arith.constant 0 : index
    %c0_39 = arith.constant 0 : index
    %66 = vector.load %arg7[%c0_38, %c0_39] : memref<256x128xf32, #tpu.memory_space<vmem>>, vector<256x128xf32>
    tpu.vector_store %arg7[%c0_38, %c0_39], %65 {strides = array<i32>} : memref<256x128xf32, #tpu.memory_space<vmem>>, vector<256x128xf32>,
    %c1_40 = arith.constant 1 : index
    %c0_41 = arith.constant 0 : index
    %67 = vector.load %arg6[%c1_40, %c0_41] : memref<8x128xf32, #tpu.memory_space<vmem>>, vector<1x128xf32>
    tpu.vector_store %arg6[%c1_40, %c0_41], %55 {strides = array<i32>} : memref<8x128xf32, #tpu.memory_space<vmem>>, vector<1x128xf32>,
    %c0_42 = arith.constant 0 : index
    %c0_43 = arith.constant 0 : index
    %68 = vector.load %arg7[%c0_42, %c0_43] : memref<256x128xf32, #tpu.memory_space<vmem>>, vector<256x128xf32>
    %c2 = arith.constant 2 : index
    %c0_44 = arith.constant 0 : index
    %69 = vector.load %arg2[%c2, %c0_44] : memref<8x256xf32, #tpu.memory_space<vmem>>, vector<1x256xf32>
    %c2_45 = arith.constant 2 : index
    %c0_46 = arith.constant 0 : index
    %c0_47 = arith.constant 0 : index
    %70 = vector.load %arg3[%c2_45, %c0_46, %c0_47] : memref<8x256x1xf32, #tpu.memory_space<vmem>>, vector<1x256x1xf32>
    %71 = vector.shape_cast %70 : vector<1x256x1xf32> to vector<256x1xf32>
    %c2_48 = arith.constant 2 : index
    %c0_49 = arith.constant 0 : index
    %c0_50 = arith.constant 0 : index
    %72 = vector.load %arg4[%c2_48, %c0_49, %c0_50] : memref<8x256x128xf32, #tpu.memory_space<vmem>>, vector<1x256x128xf32>
    %73 = vector.shape_cast %72 : vector<1x256x128xf32> to vector<256x128xf32>
    %c2_51 = arith.constant 2 : index
    %c0_52 = arith.constant 0 : index
    %74 = vector.load %arg1[%c2_51, %c0_52] : memref<8x128xf32, #tpu.memory_space<vmem>>, vector<1x128xf32>
    %75 = arith.mulf %3, %68 : vector<256x128xf32>
    %cst_53 = arith.constant dense<0.000000e+00> : vector<1x128xf32>
    %76 = tpu.matmul %69, %75, %cst_53 {dimension_numbers = #tpu.dot_dimension_numbers<[1], [0], [0], [1], [0, 0, 1, 1], [], []>} : vector<1x256xf32>, vector<256x128xf32>, vector<1x128xf32> -> vector<1x128xf32>
    %77 = arith.addf %74, %76 : vector<1x128xf32>
    %cst_54 = arith.constant dense<0xFF800000> : vector<1xf32>
    %78 = vector.multi_reduction <maximumf>, %77, %cst_54 [1] : vector<1x128xf32> to vector<1xf32>
    %79 = vector.shape_cast %78 : vector<1xf32> to vector<1x1xf32>
    %80 = vector.broadcast %79 : vector<1x1xf32> to vector<1x128xf32>
    %81 = arith.subf %77, %80 : vector<1x128xf32>
    %82 = math.exp %81 : vector<1x128xf32>
    %cst_55 = arith.constant dense<0.000000e+00> : vector<1xf32>
    %83 = vector.multi_reduction <add>, %82, %cst_55 [1] : vector<1x128xf32> to vector<1xf32>
    %84 = vector.shape_cast %83 : vector<1xf32> to vector<1x1xf32>
    %85 = tpu.reciprocal %84 {approx = true} : vector<1x1xf32> -> vector<1x1xf32>
    %86 = vector.broadcast %85 : vector<1x1xf32> to vector<1x128xf32>
    %87 = arith.mulf %82, %86 : vector<1x128xf32>
    %88 = vector.broadcast %71 : vector<256x1xf32> to vector<256x128xf32>
    %89 = vector.broadcast %87 : vector<1x128xf32> to vector<256x128xf32>
    %90 = arith.mulf %88, %89 : vector<256x128xf32>
    %91 = arith.subf %90, %68 : vector<256x128xf32>
    %92 = arith.mulf %73, %91 : vector<256x128xf32>
    %93 = arith.addf %68, %92 : vector<256x128xf32>
    %cst_56 = arith.constant -1.000000e+00 : f32
    %cst_57 = arith.constant 1.000000e+00 : f32
    %94 = vector.broadcast %cst_56 : f32 to vector<256x128xf32>
    %95 = arith.maximumf %94, %93 : vector<256x128xf32>
    %96 = vector.broadcast %cst_57 : f32 to vector<256x128xf32>
    %97 = arith.minimumf %96, %95 : vector<256x128xf32>
    %c0_58 = arith.constant 0 : index
    %c0_59 = arith.constant 0 : index
    %98 = vector.load %arg7[%c0_58, %c0_59] : memref<256x128xf32, #tpu.memory_space<vmem>>, vector<256x128xf32>
    tpu.vector_store %arg7[%c0_58, %c0_59], %97 {strides = array<i32>} : memref<256x128xf32, #tpu.memory_space<vmem>>, vector<256x128xf32>,
    %c2_60 = arith.constant 2 : index
    %c0_61 = arith.constant 0 : index
    %99 = vector.load %arg6[%c2_60, %c0_61] : memref<8x128xf32, #tpu.memory_space<vmem>>, vector<1x128xf32>
    tpu.vector_store %arg6[%c2_60, %c0_61], %87 {strides = array<i32>} : memref<8x128xf32, #tpu.memory_space<vmem>>, vector<1x128xf32>,
    %c0_62 = arith.constant 0 : index
    %c0_63 = arith.constant 0 : index
    %100 = vector.load %arg7[%c0_62, %c0_63] : memref<256x128xf32, #tpu.memory_space<vmem>>, vector<256x128xf32>
    %c3 = arith.constant 3 : index
    %c0_64 = arith.constant 0 : index
    %101 = vector.load %arg2[%c3, %c0_64] : memref<8x256xf32, #tpu.memory_space<vmem>>, vector<1x256xf32>
    %c3_65 = arith.constant 3 : index
    %c0_66 = arith.constant 0 : index
    %c0_67 = arith.constant 0 : index
    %102 = vector.load %arg3[%c3_65, %c0_66, %c0_67] : memref<8x256x1xf32, #tpu.memory_space<vmem>>, vector<1x256x1xf32>
    %103 = vector.shape_cast %102 : vector<1x256x1xf32> to vector<256x1xf32>
    %c3_68 = arith.constant 3 : index
    %c0_69 = arith.constant 0 : index
    %c0_70 = arith.constant 0 : index
    %104 = vector.load %arg4[%c3_68, %c0_69, %c0_70] : memref<8x256x128xf32, #tpu.memory_space<vmem>>, vector<1x256x128xf32>
    %105 = vector.shape_cast %104 : vector<1x256x128xf32> to vector<256x128xf32>
    %c3_71 = arith.constant 3 : index
    %c0_72 = arith.constant 0 : index
    %106 = vector.load %arg1[%c3_71, %c0_72] : memref<8x128xf32, #tpu.memory_space<vmem>>, vector<1x128xf32>
    %107 = arith.mulf %3, %100 : vector<256x128xf32>
    %cst_73 = arith.constant dense<0.000000e+00> : vector<1x128xf32>
    %108 = tpu.matmul %101, %107, %cst_73 {dimension_numbers = #tpu.dot_dimension_numbers<[1], [0], [0], [1], [0, 0, 1, 1], [], []>} : vector<1x256xf32>, vector<256x128xf32>, vector<1x128xf32> -> vector<1x128xf32>
    %109 = arith.addf %106, %108 : vector<1x128xf32>
    %cst_74 = arith.constant dense<0xFF800000> : vector<1xf32>
    %110 = vector.multi_reduction <maximumf>, %109, %cst_74 [1] : vector<1x128xf32> to vector<1xf32>
    %111 = vector.shape_cast %110 : vector<1xf32> to vector<1x1xf32>
    %112 = vector.broadcast %111 : vector<1x1xf32> to vector<1x128xf32>
    %113 = arith.subf %109, %112 : vector<1x128xf32>
    %114 = math.exp %113 : vector<1x128xf32>
    %cst_75 = arith.constant dense<0.000000e+00> : vector<1xf32>
    %115 = vector.multi_reduction <add>, %114, %cst_75 [1] : vector<1x128xf32> to vector<1xf32>
    %116 = vector.shape_cast %115 : vector<1xf32> to vector<1x1xf32>
    %117 = tpu.reciprocal %116 {approx = true} : vector<1x1xf32> -> vector<1x1xf32>
    %118 = vector.broadcast %117 : vector<1x1xf32> to vector<1x128xf32>
    %119 = arith.mulf %114, %118 : vector<1x128xf32>
    %120 = vector.broadcast %103 : vector<256x1xf32> to vector<256x128xf32>
    %121 = vector.broadcast %119 : vector<1x128xf32> to vector<256x128xf32>
    %122 = arith.mulf %120, %121 : vector<256x128xf32>
    %123 = arith.subf %122, %100 : vector<256x128xf32>
    %124 = arith.mulf %105, %123 : vector<256x128xf32>
    %125 = arith.addf %100, %124 : vector<256x128xf32>
    %cst_76 = arith.constant -1.000000e+00 : f32
    %cst_77 = arith.constant 1.000000e+00 : f32
    %126 = vector.broadcast %cst_76 : f32 to vector<256x128xf32>
    %127 = arith.maximumf %126, %125 : vector<256x128xf32>
    %128 = vector.broadcast %cst_77 : f32 to vector<256x128xf32>
    %129 = arith.minimumf %128, %127 : vector<256x128xf32>
    %c0_78 = arith.constant 0 : index
    %c0_79 = arith.constant 0 : index
    %130 = vector.load %arg7[%c0_78, %c0_79] : memref<256x128xf32, #tpu.memory_space<vmem>>, vector<256x128xf32>
    tpu.vector_store %arg7[%c0_78, %c0_79], %129 {strides = array<i32>} : memref<256x128xf32, #tpu.memory_space<vmem>>, vector<256x128xf32>,
    %c3_80 = arith.constant 3 : index
    %c0_81 = arith.constant 0 : index
    %131 = vector.load %arg6[%c3_80, %c0_81] : memref<8x128xf32, #tpu.memory_space<vmem>>, vector<1x128xf32>
    tpu.vector_store %arg6[%c3_80, %c0_81], %119 {strides = array<i32>} : memref<8x128xf32, #tpu.memory_space<vmem>>, vector<1x128xf32>,
    %c0_82 = arith.constant 0 : index
    %c0_83 = arith.constant 0 : index
    %132 = vector.load %arg7[%c0_82, %c0_83] : memref<256x128xf32, #tpu.memory_space<vmem>>, vector<256x128xf32>
    %c4 = arith.constant 4 : index
    %c0_84 = arith.constant 0 : index
    %133 = vector.load %arg2[%c4, %c0_84] : memref<8x256xf32, #tpu.memory_space<vmem>>, vector<1x256xf32>
    %c4_85 = arith.constant 4 : index
    %c0_86 = arith.constant 0 : index
    %c0_87 = arith.constant 0 : index
    %134 = vector.load %arg3[%c4_85, %c0_86, %c0_87] : memref<8x256x1xf32, #tpu.memory_space<vmem>>, vector<1x256x1xf32>
    %135 = vector.shape_cast %134 : vector<1x256x1xf32> to vector<256x1xf32>
    %c4_88 = arith.constant 4 : index
    %c0_89 = arith.constant 0 : index
    %c0_90 = arith.constant 0 : index
    %136 = vector.load %arg4[%c4_88, %c0_89, %c0_90] : memref<8x256x128xf32, #tpu.memory_space<vmem>>, vector<1x256x128xf32>
    %137 = vector.shape_cast %136 : vector<1x256x128xf32> to vector<256x128xf32>
    %c4_91 = arith.constant 4 : index
    %c0_92 = arith.constant 0 : index
    %138 = vector.load %arg1[%c4_91, %c0_92] : memref<8x128xf32, #tpu.memory_space<vmem>>, vector<1x128xf32>
    %139 = arith.mulf %3, %132 : vector<256x128xf32>
    %cst_93 = arith.constant dense<0.000000e+00> : vector<1x128xf32>
    %140 = tpu.matmul %133, %139, %cst_93 {dimension_numbers = #tpu.dot_dimension_numbers<[1], [0], [0], [1], [0, 0, 1, 1], [], []>} : vector<1x256xf32>, vector<256x128xf32>, vector<1x128xf32> -> vector<1x128xf32>
    %141 = arith.addf %138, %140 : vector<1x128xf32>
    %cst_94 = arith.constant dense<0xFF800000> : vector<1xf32>
    %142 = vector.multi_reduction <maximumf>, %141, %cst_94 [1] : vector<1x128xf32> to vector<1xf32>
    %143 = vector.shape_cast %142 : vector<1xf32> to vector<1x1xf32>
    %144 = vector.broadcast %143 : vector<1x1xf32> to vector<1x128xf32>
    %145 = arith.subf %141, %144 : vector<1x128xf32>
    %146 = math.exp %145 : vector<1x128xf32>
    %cst_95 = arith.constant dense<0.000000e+00> : vector<1xf32>
    %147 = vector.multi_reduction <add>, %146, %cst_95 [1] : vector<1x128xf32> to vector<1xf32>
    %148 = vector.shape_cast %147 : vector<1xf32> to vector<1x1xf32>
    %149 = tpu.reciprocal %148 {approx = true} : vector<1x1xf32> -> vector<1x1xf32>
    %150 = vector.broadcast %149 : vector<1x1xf32> to vector<1x128xf32>
    %151 = arith.mulf %146, %150 : vector<1x128xf32>
    %152 = vector.broadcast %135 : vector<256x1xf32> to vector<256x128xf32>
    %153 = vector.broadcast %151 : vector<1x128xf32> to vector<256x128xf32>
    %154 = arith.mulf %152, %153 : vector<256x128xf32>
    %155 = arith.subf %154, %132 : vector<256x128xf32>
    %156 = arith.mulf %137, %155 : vector<256x128xf32>
    %157 = arith.addf %132, %156 : vector<256x128xf32>
    %cst_96 = arith.constant -1.000000e+00 : f32
    %cst_97 = arith.constant 1.000000e+00 : f32
    %158 = vector.broadcast %cst_96 : f32 to vector<256x128xf32>
    %159 = arith.maximumf %158, %157 : vector<256x128xf32>
    %160 = vector.broadcast %cst_97 : f32 to vector<256x128xf32>
    %161 = arith.minimumf %160, %159 : vector<256x128xf32>
    %c0_98 = arith.constant 0 : index
    %c0_99 = arith.constant 0 : index
    %162 = vector.load %arg7[%c0_98, %c0_99] : memref<256x128xf32, #tpu.memory_space<vmem>>, vector<256x128xf32>
    tpu.vector_store %arg7[%c0_98, %c0_99], %161 {strides = array<i32>} : memref<256x128xf32, #tpu.memory_space<vmem>>, vector<256x128xf32>,
    %c4_100 = arith.constant 4 : index
    %c0_101 = arith.constant 0 : index
    %163 = vector.load %arg6[%c4_100, %c0_101] : memref<8x128xf32, #tpu.memory_space<vmem>>, vector<1x128xf32>
    tpu.vector_store %arg6[%c4_100, %c0_101], %151 {strides = array<i32>} : memref<8x128xf32, #tpu.memory_space<vmem>>, vector<1x128xf32>,
    %c0_102 = arith.constant 0 : index
    %c0_103 = arith.constant 0 : index
    %164 = vector.load %arg7[%c0_102, %c0_103] : memref<256x128xf32, #tpu.memory_space<vmem>>, vector<256x128xf32>
    %c5 = arith.constant 5 : index
    %c0_104 = arith.constant 0 : index
    %165 = vector.load %arg2[%c5, %c0_104] : memref<8x256xf32, #tpu.memory_space<vmem>>, vector<1x256xf32>
    %c5_105 = arith.constant 5 : index
    %c0_106 = arith.constant 0 : index
    %c0_107 = arith.constant 0 : index
    %166 = vector.load %arg3[%c5_105, %c0_106, %c0_107] : memref<8x256x1xf32, #tpu.memory_space<vmem>>, vector<1x256x1xf32>
    %167 = vector.shape_cast %166 : vector<1x256x1xf32> to vector<256x1xf32>
    %c5_108 = arith.constant 5 : index
    %c0_109 = arith.constant 0 : index
    %c0_110 = arith.constant 0 : index
    %168 = vector.load %arg4[%c5_108, %c0_109, %c0_110] : memref<8x256x128xf32, #tpu.memory_space<vmem>>, vector<1x256x128xf32>
    %169 = vector.shape_cast %168 : vector<1x256x128xf32> to vector<256x128xf32>
    %c5_111 = arith.constant 5 : index
    %c0_112 = arith.constant 0 : index
    %170 = vector.load %arg1[%c5_111, %c0_112] : memref<8x128xf32, #tpu.memory_space<vmem>>, vector<1x128xf32>
    %171 = arith.mulf %3, %164 : vector<256x128xf32>
    %cst_113 = arith.constant dense<0.000000e+00> : vector<1x128xf32>
    %172 = tpu.matmul %165, %171, %cst_113 {dimension_numbers = #tpu.dot_dimension_numbers<[1], [0], [0], [1], [0, 0, 1, 1], [], []>} : vector<1x256xf32>, vector<256x128xf32>, vector<1x128xf32> -> vector<1x128xf32>
    %173 = arith.addf %170, %172 : vector<1x128xf32>
    %cst_114 = arith.constant dense<0xFF800000> : vector<1xf32>
    %174 = vector.multi_reduction <maximumf>, %173, %cst_114 [1] : vector<1x128xf32> to vector<1xf32>
    %175 = vector.shape_cast %174 : vector<1xf32> to vector<1x1xf32>
    %176 = vector.broadcast %175 : vector<1x1xf32> to vector<1x128xf32>
    %177 = arith.subf %173, %176 : vector<1x128xf32>
    %178 = math.exp %177 : vector<1x128xf32>
    %cst_115 = arith.constant dense<0.000000e+00> : vector<1xf32>
    %179 = vector.multi_reduction <add>, %178, %cst_115 [1] : vector<1x128xf32> to vector<1xf32>
    %180 = vector.shape_cast %179 : vector<1xf32> to vector<1x1xf32>
    %181 = tpu.reciprocal %180 {approx = true} : vector<1x1xf32> -> vector<1x1xf32>
    %182 = vector.broadcast %181 : vector<1x1xf32> to vector<1x128xf32>
    %183 = arith.mulf %178, %182 : vector<1x128xf32>
    %184 = vector.broadcast %167 : vector<256x1xf32> to vector<256x128xf32>
    %185 = vector.broadcast %183 : vector<1x128xf32> to vector<256x128xf32>
    %186 = arith.mulf %184, %185 : vector<256x128xf32>
    %187 = arith.subf %186, %164 : vector<256x128xf32>
    %188 = arith.mulf %169, %187 : vector<256x128xf32>
    %189 = arith.addf %164, %188 : vector<256x128xf32>
    %cst_116 = arith.constant -1.000000e+00 : f32
    %cst_117 = arith.constant 1.000000e+00 : f32
    %190 = vector.broadcast %cst_116 : f32 to vector<256x128xf32>
    %191 = arith.maximumf %190, %189 : vector<256x128xf32>
    %192 = vector.broadcast %cst_117 : f32 to vector<256x128xf32>
    %193 = arith.minimumf %192, %191 : vector<256x128xf32>
    %c0_118 = arith.constant 0 : index
    %c0_119 = arith.constant 0 : index
    %194 = vector.load %arg7[%c0_118, %c0_119] : memref<256x128xf32, #tpu.memory_space<vmem>>, vector<256x128xf32>
    tpu.vector_store %arg7[%c0_118, %c0_119], %193 {strides = array<i32>} : memref<256x128xf32, #tpu.memory_space<vmem>>, vector<256x128xf32>,
    %c5_120 = arith.constant 5 : index
    %c0_121 = arith.constant 0 : index
    %195 = vector.load %arg6[%c5_120, %c0_121] : memref<8x128xf32, #tpu.memory_space<vmem>>, vector<1x128xf32>
    tpu.vector_store %arg6[%c5_120, %c0_121], %183 {strides = array<i32>} : memref<8x128xf32, #tpu.memory_space<vmem>>, vector<1x128xf32>,
    %c0_122 = arith.constant 0 : index
    %c0_123 = arith.constant 0 : index
    %196 = vector.load %arg7[%c0_122, %c0_123] : memref<256x128xf32, #tpu.memory_space<vmem>>, vector<256x128xf32>
    %c6 = arith.constant 6 : index
    %c0_124 = arith.constant 0 : index
    %197 = vector.load %arg2[%c6, %c0_124] : memref<8x256xf32, #tpu.memory_space<vmem>>, vector<1x256xf32>
    %c6_125 = arith.constant 6 : index
    %c0_126 = arith.constant 0 : index
    %c0_127 = arith.constant 0 : index
    %198 = vector.load %arg3[%c6_125, %c0_126, %c0_127] : memref<8x256x1xf32, #tpu.memory_space<vmem>>, vector<1x256x1xf32>
    %199 = vector.shape_cast %198 : vector<1x256x1xf32> to vector<256x1xf32>
    %c6_128 = arith.constant 6 : index
    %c0_129 = arith.constant 0 : index
    %c0_130 = arith.constant 0 : index
    %200 = vector.load %arg4[%c6_128, %c0_129, %c0_130] : memref<8x256x128xf32, #tpu.memory_space<vmem>>, vector<1x256x128xf32>
    %201 = vector.shape_cast %200 : vector<1x256x128xf32> to vector<256x128xf32>
    %c6_131 = arith.constant 6 : index
    %c0_132 = arith.constant 0 : index
    %202 = vector.load %arg1[%c6_131, %c0_132] : memref<8x128xf32, #tpu.memory_space<vmem>>, vector<1x128xf32>
    %203 = arith.mulf %3, %196 : vector<256x128xf32>
    %cst_133 = arith.constant dense<0.000000e+00> : vector<1x128xf32>
    %204 = tpu.matmul %197, %203, %cst_133 {dimension_numbers = #tpu.dot_dimension_numbers<[1], [0], [0], [1], [0, 0, 1, 1], [], []>} : vector<1x256xf32>, vector<256x128xf32>, vector<1x128xf32> -> vector<1x128xf32>
    %205 = arith.addf %202, %204 : vector<1x128xf32>
    %cst_134 = arith.constant dense<0xFF800000> : vector<1xf32>
    %206 = vector.multi_reduction <maximumf>, %205, %cst_134 [1] : vector<1x128xf32> to vector<1xf32>
    %207 = vector.shape_cast %206 : vector<1xf32> to vector<1x1xf32>
    %208 = vector.broadcast %207 : vector<1x1xf32> to vector<1x128xf32>
    %209 = arith.subf %205, %208 : vector<1x128xf32>
    %210 = math.exp %209 : vector<1x128xf32>
    %cst_135 = arith.constant dense<0.000000e+00> : vector<1xf32>
    %211 = vector.multi_reduction <add>, %210, %cst_135 [1] : vector<1x128xf32> to vector<1xf32>
    %212 = vector.shape_cast %211 : vector<1xf32> to vector<1x1xf32>
    %213 = tpu.reciprocal %212 {approx = true} : vector<1x1xf32> -> vector<1x1xf32>
    %214 = vector.broadcast %213 : vector<1x1xf32> to vector<1x128xf32>
    %215 = arith.mulf %210, %214 : vector<1x128xf32>
    %216 = vector.broadcast %199 : vector<256x1xf32> to vector<256x128xf32>
    %217 = vector.broadcast %215 : vector<1x128xf32> to vector<256x128xf32>
    %218 = arith.mulf %216, %217 : vector<256x128xf32>
    %219 = arith.subf %218, %196 : vector<256x128xf32>
    %220 = arith.mulf %201, %219 : vector<256x128xf32>
    %221 = arith.addf %196, %220 : vector<256x128xf32>
    %cst_136 = arith.constant -1.000000e+00 : f32
    %cst_137 = arith.constant 1.000000e+00 : f32
    %222 = vector.broadcast %cst_136 : f32 to vector<256x128xf32>
    %223 = arith.maximumf %222, %221 : vector<256x128xf32>
    %224 = vector.broadcast %cst_137 : f32 to vector<256x128xf32>
    %225 = arith.minimumf %224, %223 : vector<256x128xf32>
    %c0_138 = arith.constant 0 : index
    %c0_139 = arith.constant 0 : index
    %226 = vector.load %arg7[%c0_138, %c0_139] : memref<256x128xf32, #tpu.memory_space<vmem>>, vector<256x128xf32>
    tpu.vector_store %arg7[%c0_138, %c0_139], %225 {strides = array<i32>} : memref<256x128xf32, #tpu.memory_space<vmem>>, vector<256x128xf32>,
    %c6_140 = arith.constant 6 : index
    %c0_141 = arith.constant 0 : index
    %227 = vector.load %arg6[%c6_140, %c0_141] : memref<8x128xf32, #tpu.memory_space<vmem>>, vector<1x128xf32>
    tpu.vector_store %arg6[%c6_140, %c0_141], %215 {strides = array<i32>} : memref<8x128xf32, #tpu.memory_space<vmem>>, vector<1x128xf32>,
    %c0_142 = arith.constant 0 : index
    %c0_143 = arith.constant 0 : index
    %228 = vector.load %arg7[%c0_142, %c0_143] : memref<256x128xf32, #tpu.memory_space<vmem>>, vector<256x128xf32>
    %c7 = arith.constant 7 : index
    %c0_144 = arith.constant 0 : index
    %229 = vector.load %arg2[%c7, %c0_144] : memref<8x256xf32, #tpu.memory_space<vmem>>, vector<1x256xf32>
    %c7_145 = arith.constant 7 : index
    %c0_146 = arith.constant 0 : index
    %c0_147 = arith.constant 0 : index
    %230 = vector.load %arg3[%c7_145, %c0_146, %c0_147] : memref<8x256x1xf32, #tpu.memory_space<vmem>>, vector<1x256x1xf32>
    %231 = vector.shape_cast %230 : vector<1x256x1xf32> to vector<256x1xf32>
    %c7_148 = arith.constant 7 : index
    %c0_149 = arith.constant 0 : index
    %c0_150 = arith.constant 0 : index
    %232 = vector.load %arg4[%c7_148, %c0_149, %c0_150] : memref<8x256x128xf32, #tpu.memory_space<vmem>>, vector<1x256x128xf32>
    %233 = vector.shape_cast %232 : vector<1x256x128xf32> to vector<256x128xf32>
    %c7_151 = arith.constant 7 : index
    %c0_152 = arith.constant 0 : index
    %234 = vector.load %arg1[%c7_151, %c0_152] : memref<8x128xf32, #tpu.memory_space<vmem>>, vector<1x128xf32>
    %235 = arith.mulf %3, %228 : vector<256x128xf32>
    %cst_153 = arith.constant dense<0.000000e+00> : vector<1x128xf32>
    %236 = tpu.matmul %229, %235, %cst_153 {dimension_numbers = #tpu.dot_dimension_numbers<[1], [0], [0], [1], [0, 0, 1, 1], [], []>} : vector<1x256xf32>, vector<256x128xf32>, vector<1x128xf32> -> vector<1x128xf32>
    %237 = arith.addf %234, %236 : vector<1x128xf32>
    %cst_154 = arith.constant dense<0xFF800000> : vector<1xf32>
    %238 = vector.multi_reduction <maximumf>, %237, %cst_154 [1] : vector<1x128xf32> to vector<1xf32>
    %239 = vector.shape_cast %238 : vector<1xf32> to vector<1x1xf32>
    %240 = vector.broadcast %239 : vector<1x1xf32> to vector<1x128xf32>
    %241 = arith.subf %237, %240 : vector<1x128xf32>
    %242 = math.exp %241 : vector<1x128xf32>
    %cst_155 = arith.constant dense<0.000000e+00> : vector<1xf32>
    %243 = vector.multi_reduction <add>, %242, %cst_155 [1] : vector<1x128xf32> to vector<1xf32>
    %244 = vector.shape_cast %243 : vector<1xf32> to vector<1x1xf32>
    %245 = tpu.reciprocal %244 {approx = true} : vector<1x1xf32> -> vector<1x1xf32>
    %246 = vector.broadcast %245 : vector<1x1xf32> to vector<1x128xf32>
    %247 = arith.mulf %242, %246 : vector<1x128xf32>
    %248 = vector.broadcast %231 : vector<256x1xf32> to vector<256x128xf32>
    %249 = vector.broadcast %247 : vector<1x128xf32> to vector<256x128xf32>
    %250 = arith.mulf %248, %249 : vector<256x128xf32>
    %251 = arith.subf %250, %228 : vector<256x128xf32>
    %252 = arith.mulf %233, %251 : vector<256x128xf32>
    %253 = arith.addf %228, %252 : vector<256x128xf32>
    %cst_156 = arith.constant -1.000000e+00 : f32
    %cst_157 = arith.constant 1.000000e+00 : f32
    %254 = vector.broadcast %cst_156 : f32 to vector<256x128xf32>
    %255 = arith.maximumf %254, %253 : vector<256x128xf32>
    %256 = vector.broadcast %cst_157 : f32 to vector<256x128xf32>
    %257 = arith.minimumf %256, %255 : vector<256x128xf32>
    %c0_158 = arith.constant 0 : index
    %c0_159 = arith.constant 0 : index
    %258 = vector.load %arg7[%c0_158, %c0_159] : memref<256x128xf32, #tpu.memory_space<vmem>>, vector<256x128xf32>
    tpu.vector_store %arg7[%c0_158, %c0_159], %257 {strides = array<i32>} : memref<256x128xf32, #tpu.memory_space<vmem>>, vector<256x128xf32>,
    %c7_160 = arith.constant 7 : index
    %c0_161 = arith.constant 0 : index
    %259 = vector.load %arg6[%c7_160, %c0_161] : memref<8x128xf32, #tpu.memory_space<vmem>>, vector<1x128xf32>
    tpu.vector_store %arg6[%c7_160, %c0_161], %247 {strides = array<i32>} : memref<8x128xf32, #tpu.memory_space<vmem>>, vector<1x128xf32>,
    return
  }
  func.func @transform_0(%arg0: i32) -> (i32, i32) {
    %c0_i32 = arith.constant 0 : i32
    %c0_i32_0 = arith.constant 0 : i32
    return %arg0, %c0_i32 : i32, i32
  }
  func.func @transform_1(%arg0: i32) -> (i32, i32) {
    %c0_i32 = arith.constant 0 : i32
    %c0_i32_0 = arith.constant 0 : i32
    return %arg0, %c0_i32 : i32, i32
  }
  func.func @transform_2(%arg0: i32) -> (i32, i32, i32) {
    %c0_i32 = arith.constant 0 : i32
    %c0_i32_0 = arith.constant 0 : i32
    %c0_i32_1 = arith.constant 0 : i32
    return %arg0, %c0_i32, %c0_i32_0 : i32, i32, i32
  }
  func.func @transform_3(%arg0: i32) -> (i32, i32, i32) {
    %c0_i32 = arith.constant 0 : i32
    %c0_i32_0 = arith.constant 0 : i32
    %c0_i32_1 = arith.constant 0 : i32
    return %arg0, %c0_i32, %c0_i32_0 : i32, i32, i32
  }
  func.func @transform_4(%arg0: i32) -> (i32, i32) {
    %c0_i32 = arith.constant 0 : i32
    %c0_i32_0 = arith.constant 0 : i32
    %c0_i32_1 = arith.constant 0 : i32
    return %c0_i32, %c0_i32_0 : i32, i32
  }
  func.func @transform_5(%arg0: i32) -> (i32, i32) {
    %c0_i32 = arith.constant 0 : i32
    %c0_i32_0 = arith.constant 0 : i32
    return %arg0, %c0_i32 : i32, i32
  }
}

</mosaic_0001>

<llo_original>
// kernel: tpu_custom_call.1
$region0: #{tpu_custom_call.1}
  #allocation0 [shape = 'u32[]', space=smem, size = 0x4, offset = 0x4, fixed_abs, tag = 'smem constant byte address 0x4 - core index']
  #allocation1 [shape = 'u32[72,128]{1,0:T(1,128)}', space=vmem, size = 0x9000, scoped, tag = 'internal scratch']
  #allocation2 [shape = 'f32[256,128]{1,0:T(8,128)}', space=vmem, size = 0x20000, scoped, tag = 'scratch operand']
  %s0 = inlined_call_operand.hbm [shape: f32[24,128], index: 0, kind: input, shape index: {}]
  %s1 = inlined_call_operand.vmem [shape: f32[24,256], index: 1, kind: input, shape index: {}]
  %s2 = inlined_call_operand.vmem [shape: f32[24,256,1], index: 2, kind: input, shape index: {}]
  %s3 = inlined_call_operand.vmem [shape: f32[24,256,128], index: 3, kind: input, shape index: {}]
  %s4 = inlined_call_operand.hbm [shape: f32[256,128], index: 4, kind: input, shape index: {}]
  %s5 = inlined_call_operand.hbm [shape: f32[24,128], index: 5, kind: output, shape index: {}]
  %s6 = sld [smem:[#allocation0]]
  $region65: #{tpu_custom_call.1} parent=0
    _
  %s8 = ssub.s32 1, %s6
  %s9 = scalar_select 0, %s8, %s6
  $region1: #{tpu_custom_call.1} parent=0
    #allocation3 [shape = 'u8[8192]{0}', space=vmem, size = 0x2000, scoped, tag = 'input window, operand 0']
    #allocation4 [shape = 's32[2]{0}', space=sflag, size = 0x8, scoped, tag = 'scoped memory for tpu_custom_call.1']
    #allocation5 [shape = 's32[2]{0}', space=sflag, size = 0x8, scoped, tag = 'scoped memory for tpu_custom_call.1']
    #allocation6 [shape = 'u8[131072]{0}', space=vmem, size = 0x20000, scoped, tag = 'input window, operand 4, single buffered']
    #allocation7 [shape = 's32[1]{0}', space=sflag, size = 0x4, scoped, tag = 'scoped memory for tpu_custom_call.1']
    #allocation8 [shape = 'u8[8192]{0}', space=vmem, size = 0x2000, scoped, tag = 'output window, operand 0']
    %10 = vsyncpa [#allocation4], 0
    %s11 = scalar_lea.sflag [#allocation4], 1
    %12 = vsyncpa %s11, 0
    %13 = vsyncpa [#allocation7], 0
    %14 = vsyncpa [#allocation5], 0
    %s15 = scalar_lea.sflag [#allocation5], 1
    %16 = vsyncpa %s15, 0
    loop: start=0, step=1, limit=5
    $region2: #{tpu_custom_call.1} parent=1 // loop_pre_header
      _
    $region3: #{tpu_custom_call.1} parent=1 // loop_header
      %s18 = sphi 0, %s22
      %p19 = scmp.ge.s32.totalorder %s18, 5
      %s28 = sphi 0, %s30
      %s31 = sphi 0, %s28
      %s32 = sphi 0, %s31
      %s48 = sphi 0, %s32
      %s54 = sphi 0, %s56
      %s57 = sphi 0, %s54
      %s58 = sphi 0, %s57
      %s74 = sphi 0, %s58
      %s80 = sphi 0, %s82
      %s83 = sphi 0, %s80
      %s84 = sphi 0, %s83
      %s100 = sphi 0, %s84
      %s106 = sphi 0, %s108
      %s109 = sphi 0, %s106
      %s110 = sphi 0, %s109
      %s126 = sphi 0, %s110
      %s130 = sphi 0, %s130
      %s132 = sphi 0, %s130
      %s133 = sphi 0, %s132
      %s147 = sphi 0, %s133
      %s153 = sphi 0, %s155
      %s156 = sphi 0, %s153
      %s157 = sphi 0, %s156
      %s173 = sphi 0, %s157
    $region4: #{tpu_custom_call.1} parent=1 // loop_header_branch
      %21 = sbr.rel (%p19) target = $region8
    $region5: #{tpu_custom_call.1} parent=1 // loop_body
      %s23 = ssub.s32 %s18, 1
      %s24 = ssub.s32 %s18, 2
      %s25 = sadd.s32 %s18, 1
      %s26 = ssub.s32 %s18, %s25
      %p27 = scmp.eq.s32.totalorder %s26, 0
      %s29 = sadd.s32 %s28, 1
      %s30 = scalar_select %p27, %s28, %s29
      %p33 = pneg %p27
      %p34 = scmp.eq.s32.totalorder %s18, 2
      %p35 = por %p33, %p34
      %p36 = scmp.ne.s32.totalorder %s28, %s31
      %p37 = scmp.eq.s32.totalorder %s18, 0
      %p38 = por %p36, %p37
      %p39 = scmp.ne.s32.totalorder %s28, %s31
      %p40 = scmp.eq.s32.totalorder %s23, 2
      %p41 = por %p39, %p40
      %p42 = scmp.ne.s32.totalorder %s31, %s32
      %p43 = scmp.eq.s32.totalorder %s23, 0
      %p44 = por %p42, %p43
      %p45 = scmp.ne.s32.totalorder %s31, %s32
      %p46 = scmp.eq.s32.totalorder %s24, 2
      %p47 = por %p45, %p46
      %p49 = scmp.ne.s32.totalorder %s32, %s48
      %p50 = scmp.eq.s32.totalorder %s24, 0
      %p51 = por %p49, %p50
      %s52 = ssub.s32 %s18, %s25
      %p53 = scmp.eq.s32.totalorder %s52, 0
      %s55 = sadd.s32 %s54, 1
      %s56 = scalar_select %p53, %s54, %s55
      %p59 = pneg %p53
      %p60 = scmp.eq.s32.totalorder %s18, 2
      %p61 = por %p59, %p60
      %p62 = scmp.ne.s32.totalorder %s54, %s57
      %p63 = scmp.eq.s32.totalorder %s18, 0
      %p64 = por %p62, %p63
      %p65 = scmp.ne.s32.totalorder %s54, %s57
      %p66 = scmp.eq.s32.totalorder %s23, 2
      %p67 = por %p65, %p66
      %p68 = scmp.ne.s32.totalorder %s57, %s58
      %p69 = scmp.eq.s32.totalorder %s23, 0
      %p70 = por %p68, %p69
      %p71 = scmp.ne.s32.totalorder %s57, %s58
      %p72 = scmp.eq.s32.totalorder %s24, 2
      %p73 = por %p71, %p72
      %p75 = scmp.ne.s32.totalorder %s58, %s74
      %p76 = scmp.eq.s32.totalorder %s24, 0
      %p77 = por %p75, %p76
      %s78 = ssub.s32 %s18, %s25
      %p79 = scmp.eq.s32.totalorder %s78, 0
      %s81 = sadd.s32 %s80, 1
      %s82 = scalar_select %p79, %s80, %s81
      %p85 = pneg %p79
      %p86 = scmp.eq.s32.totalorder %s18, 2
      %p87 = por %p85, %p86
      %p88 = scmp.ne.s32.totalorder %s80, %s83
      %p89 = scmp.eq.s32.totalorder %s18, 0
      %p90 = por %p88, %p89
      %p91 = scmp.ne.s32.totalorder %s80, %s83
      %p92 = scmp.eq.s32.totalorder %s23, 2
      %p93 = por %p91, %p92
      %p94 = scmp.ne.s32.totalorder %s83, %s84
      %p95 = scmp.eq.s32.totalorder %s23, 0
      %p96 = por %p94, %p95
      %p97 = scmp.ne.s32.totalorder %s83, %s84
      %p98 = scmp.eq.s32.totalorder %s24, 2
      %p99 = por %p97, %p98
      %p101 = scmp.ne.s32.totalorder %s84, %s100
      %p102 = scmp.eq.s32.totalorder %s24, 0
      %p103 = por %p101, %p102
      %s104 = ssub.s32 %s18, %s25
      %p105 = scmp.eq.s32.totalorder %s104, 0
      %s107 = sadd.s32 %s106, 1
      %s108 = scalar_select %p105, %s106, %s107
      %p111 = pneg %p105
      %p112 = scmp.eq.s32.totalorder %s18, 2
      %p113 = por %p111, %p112
      %p114 = scmp.ne.s32.totalorder %s106, %s109
      %p115 = scmp.eq.s32.totalorder %s18, 0
      %p116 = por %p114, %p115
      %p117 = scmp.ne.s32.totalorder %s106, %s109
      %p118 = scmp.eq.s32.totalorder %s23, 2
      %p119 = por %p117, %p118
      %p120 = scmp.ne.s32.totalorder %s109, %s110
      %p121 = scmp.eq.s32.totalorder %s23, 0
      %p122 = por %p120, %p121
      %p123 = scmp.ne.s32.totalorder %s109, %s110
      %p124 = scmp.eq.s32.totalorder %s24, 2
      %p125 = por %p123, %p124
      %p127 = scmp.ne.s32.totalorder %s110, %s126
      %p128 = scmp.eq.s32.totalorder %s24, 0
      %p129 = por %p127, %p128
      %s131 = sadd.s32 %s130, 1
      %p134 = scmp.eq.s32.totalorder %s18, 2
      %p135 = scmp.ne.s32.totalorder %s130, %s132
      %p136 = scmp.eq.s32.totalorder %s18, 0
      %p137 = por %p135, %p136
      %p138 = scmp.ne.s32.totalorder %s130, %s132
      %p139 = scmp.eq.s32.totalorder %s23, 2
      %p140 = por %p138, %p139
      %p141 = scmp.ne.s32.totalorder %s132, %s133
      %p142 = scmp.eq.s32.totalorder %s23, 0
      %p143 = por %p141, %p142
      %p144 = scmp.ne.s32.totalorder %s132, %s133
      %p145 = scmp.eq.s32.totalorder %s24, 2
      %p146 = por %p144, %p145
      %p148 = scmp.ne.s32.totalorder %s133, %s147
      %p149 = scmp.eq.s32.totalorder %s24, 0
      %p150 = por %p148, %p149
      %s151 = ssub.s32 %s18, %s25
      %p152 = scmp.eq.s32.totalorder %s151, 0
      %s154 = sadd.s32 %s153, 1
      %s155 = scalar_select %p152, %s153, %s154
      %p158 = pneg %p152
      %p159 = scmp.eq.s32.totalorder %s18, 2
      %p160 = por %p158, %p159
      %p161 = scmp.ne.s32.totalorder %s153, %s156
      %p162 = scmp.eq.s32.totalorder %s18, 0
      %p163 = por %p161, %p162
      %p164 = scmp.ne.s32.totalorder %s153, %s156
      %p165 = scmp.eq.s32.totalorder %s23, 2
      %p166 = por %p164, %p165
      %p167 = scmp.ne.s32.totalorder %s156, %s157
      %p168 = scmp.eq.s32.totalorder %s23, 0
      %p169 = por %p167, %p168
      %p170 = scmp.ne.s32.totalorder %s156, %s157
      %p171 = scmp.eq.s32.totalorder %s24, 2
      %p172 = por %p170, %p171
      %p174 = scmp.ne.s32.totalorder %s157, %s173
      %p175 = scmp.eq.s32.totalorder %s24, 0
      %p176 = por %p174, %p175
      %p177 = scmp.le.s32.totalorder 1, %s18
      %p178 = scmp.lt.s32.totalorder %s18, 4
      %p179 = pnand %p177, %p178
      %p180 = pneg %p179
      // Predicated region
      $region9: #{tpu_custom_call.1} parent=5 // pred_check
        _
      $region10: #{tpu_custom_call.1} parent=5 // pred_check_branch
        %182 = sbr.rel (%p179) target = $region12
      $region11: #{tpu_custom_call.1} parent=5 // pred_region
        %s183 = ssub.s32 %s18, 1
        // Predicated region
        $region13: #{tpu_custom_call.1} parent=11 // pred_check
          %p184 = pneg %p143
        $region14: #{tpu_custom_call.1} parent=11 // pred_check_branch
          %186 = sbr.rel (%p184) target = $region16
        $region15: #{tpu_custom_call.1} parent=11 // pred_region
          %188 = vsyncadd [#allocation7], 0
          %s189 = sshll.u32 %s4, 4
          %s190 = int_to_ptr.hbm [resolvable:$true] %s189
          %s191 = sshll.u32 [#allocation6], 4
          %s192 = int_to_ptr.vmem [resolvable:$true] %s191
          %197 = dma.hbm_to_vmem [thread:$0]  %s190, 4096, %s192, [#allocation7], 128, 128, 8
        $region16: #{tpu_custom_call.1} parent=11 // pred_fallthru
          _
      $region12: #{tpu_custom_call.1} parent=5 // pred_fallthru
        _
      %p198 = scmp.lt.s32.totalorder %s18, 3
      // Predicated region
      $region17: #{tpu_custom_call.1} parent=5 // pred_check
        %p199 = pneg %p198
      $region18: #{tpu_custom_call.1} parent=5 // pred_check_branch
        %201 = sbr.rel (%p199) target = $region20
      $region19: #{tpu_custom_call.1} parent=5 // pred_region
        // Predicated region
        $region21: #{tpu_custom_call.1} parent=19 // pred_check
          %p202 = pneg %p38
        $region22: #{tpu_custom_call.1} parent=19 // pred_check_branch
          %204 = sbr.rel (%p202) target = $region24
        $region23: #{tpu_custom_call.1} parent=19 // pred_region
          %s205 = sand.u32 %s28, 1
          %s206 = scalar_lea.sflag [#allocation4], %s205
          %s207 = sand.u32 %s28, 1
          %s208 = smul.addr %s207, 8
          %s209 = scalar_lea.vmem [#allocation3], %s208
          %211 = vsyncadd %s206, 0
          %s212 = smul.addr %s18, 8
          %s213 = scalar_lea.hbm %s0, %s212
          %s215 = sshll.u32 %s213, 4
          %s216 = int_to_ptr.hbm [resolvable:$true] %s215
          %s217 = sshll.u32 %s209, 4
          %s218 = int_to_ptr.vmem [resolvable:$true] %s217
          %220 = dma.hbm_to_vmem [thread:$0]  %s216, 128, %s218, %s206
        $region24: #{tpu_custom_call.1} parent=19 // pred_fallthru
          _
        // Predicated region
        $region25: #{tpu_custom_call.1} parent=19 // pred_check
          %p221 = pneg %p64
        $region26: #{tpu_custom_call.1} parent=19 // pred_check_branch
          %223 = sbr.rel (%p221) target = $region28
        $region27: #{tpu_custom_call.1} parent=19 // pred_region
          %p224 = scmp.lt.s32.totalorder %s18, 2
          %s225 = scalar_select %p224, %s18, 2
          %s226 = smul.addr %s225, 2
          %s227 = smul.addr %s226, 8
          %s228 = scalar_lea.vmem %s1, %s227
        $region28: #{tpu_custom_call.1} parent=19 // pred_fallthru
          _
        // Predicated region
        $region29: #{tpu_custom_call.1} parent=19 // pred_check
          %p229 = pneg %p90
        $region30: #{tpu_custom_call.1} parent=19 // pred_check_branch
          %231 = sbr.rel (%p229) target = $region32
        $region31: #{tpu_custom_call.1} parent=19 // pred_region
          %s232 = smul.u32 8, %s18
          %p233 = scmp.lt.s32.totalorder %s232, 23
          %s234 = scalar_select %p233, %s232, 23
          %s235 = smul.addr %s234, 32
          %s236 = smul.addr %s235, 8
          %s237 = scalar_lea.vmem %s2, %s236
          %s238 = smul.u32 8, %s18
        $region32: #{tpu_custom_call.1} parent=19 // pred_fallthru
          _
        // Predicated region
        $region33: #{tpu_custom_call.1} parent=19 // pred_check
          %p239 = pneg %p116
        $region34: #{tpu_custom_call.1} parent=19 // pred_check_branch
          %241 = sbr.rel (%p239) target = $region36
        $region35: #{tpu_custom_call.1} parent=19 // pred_region
          %s242 = smul.u32 8, %s18
          %p243 = scmp.lt.s32.totalorder %s242, 23
          %s244 = scalar_select %p243, %s242, 23
          %s245 = smul.addr %s244, 32
          %s246 = smul.addr %s245, 8
          %s247 = scalar_lea.vmem %s3, %s246
          %s248 = smul.u32 8, %s18
        $region36: #{tpu_custom_call.1} parent=19 // pred_fallthru
          _
      $region20: #{tpu_custom_call.1} parent=5 // pred_fallthru
        _
      %p249 = scmp.le.s32.totalorder 1, %s18
      %p250 = scmp.lt.s32.totalorder %s18, 4
      %p251 = pnand %p249, %p250
      %p252 = pneg %p251
      // Predicated region
      $region37: #{tpu_custom_call.1} parent=5 // pred_check
        _
      $region38: #{tpu_custom_call.1} parent=5 // pred_check_branch
        %254 = sbr.rel (%p251) target = $region40
      $region39: #{tpu_custom_call.1} parent=5 // pred_region
        %s255 = ssub.s32 %s18, 1
        %s256 = sand.u32 %s31, 1
        %s257 = scalar_lea.sflag [#allocation4], %s256
        %s258 = sand.u32 %s31, 1
        %s259 = smul.addr %s258, 8
        %s260 = scalar_lea.vmem [#allocation3], %s259
        // Predicated region
        $region41: #{tpu_custom_call.1} parent=39 // pred_check
          %p261 = pneg %p44
        $region42: #{tpu_custom_call.1} parent=39 // pred_check_branch
          %263 = sbr.rel (%p261) target = $region44
        $region43: #{tpu_custom_call.1} parent=39 // pred_region
          %265 = dma.done %s257, 128
        $region44: #{tpu_custom_call.1} parent=39 // pred_fallthru
          _
        // Predicated region
        $region45: #{tpu_custom_call.1} parent=39 // pred_check
          %p266 = pneg %p143
        $region46: #{tpu_custom_call.1} parent=39 // pred_check_branch
          %268 = sbr.rel (%p266) target = $region48
        $region47: #{tpu_custom_call.1} parent=39 // pred_region
          %270 = dma.done [#allocation7], 4096
        $region48: #{tpu_custom_call.1} parent=39 // pred_fallthru
          _
        %s271 = sand.u32 %s31, 1
        %s272 = scalar_lea.sflag [#allocation4], %s271
        %s273 = sand.u32 %s31, 1
        %s274 = smul.addr %s273, 8
        %s275 = scalar_lea.vmem [#allocation3], %s274
        %p276 = pneg %p44
        %p277 = pneg %p41
        %p278 = scmp.lt.s32.totalorder %s23, 2
        %s279 = scalar_select %p278, %s23, 2
        %s280 = smul.addr %s279, 2
        %s281 = smul.addr %s280, 8
        %s282 = scalar_lea.vmem %s1, %s281
        %p283 = pneg %p70
        %p284 = pneg %p67
        %s285 = smul.u32 8, %s23
        %p286 = scmp.lt.s32.totalorder %s285, 23
        %s287 = scalar_select %p286, %s285, 23
        %s288 = smul.addr %s287, 32
        %s289 = smul.addr %s288, 8
        %s290 = scalar_lea.vmem %s2, %s289
        %p291 = pneg %p96
        %p292 = pneg %p93
        %s293 = smul.u32 8, %s23
        %p294 = scmp.lt.s32.totalorder %s293, 23
        %s295 = scalar_select %p294, %s293, 23
        %s296 = smul.addr %s295, 32
        %s297 = smul.addr %s296, 8
        %s298 = scalar_lea.vmem %s3, %s297
        %p299 = pneg %p122
        %p300 = pneg %p119
        %p301 = pneg %p143
        %p302 = pneg %p140
        %p303 = pneg %p169
        %p304 = pneg %p166
        %s305 = sand.u32 %s156, 1
        %s306 = scalar_lea.sflag [#allocation5], %s305
        %s307 = sand.u32 %s156, 1
        %s308 = smul.addr %s307, 8
        %s309 = scalar_lea.vmem [#allocation8], %s308
        %p310 = scmp.lt.s32.totalorder %s23, 2
        %s311 = scalar_select %p310, %s23, 2
        %s312 = smul.addr %s311, 2
        %s313 = smul.addr %s312, 8
        %s314 = scalar_lea.vmem %s1, %s313
        %s315 = smul.u32 8, %s23
        %p316 = scmp.lt.s32.totalorder %s315, 23
        %s317 = scalar_select %p316, %s315, 23
        %s318 = smul.addr %s317, 32
        %s319 = smul.addr %s318, 8
        %s320 = scalar_lea.vmem %s2, %s319
        %s321 = smul.u32 8, %s23
        %s322 = smul.u32 8, %s23
        %p323 = scmp.lt.s32.totalorder %s322, 23
        %s324 = scalar_select %p323, %s322, 23
        %s325 = smul.addr %s324, 32
        %s326 = smul.addr %s325, 8
        %s327 = scalar_lea.vmem %s3, %s326
        %s328 = smul.u32 8, %s23
        %p329 = scmp.eq.s32.totalorder %s23, 0
        // Predicated region
        $region49: #{tpu_custom_call.1} parent=39 // pred_check
          %p330 = pneg %p329
        $region50: #{tpu_custom_call.1} parent=39 // pred_check_branch
          %332 = sbr.rel (%p330) target = $region52
        $region51: #{tpu_custom_call.1} parent=39 // pred_region
          %333 = vst [vmem:[#allocation2] sm:$0xff] 0.0
          %334 = vst [vmem:[#allocation2 + $0x8] sm:$0xff] 0.0
          %335 = vst [vmem:[#allocation2 + $0x10] sm:$0xff] 0.0
          %336 = vst [vmem:[#allocation2 + $0x18] sm:$0xff] 0.0
          %337 = vst [vmem:[#allocation2 + $0x20] sm:$0xff] 0.0
          %338 = vst [vmem:[#allocation2 + $0x28] sm:$0xff] 0.0
          %339 = vst [vmem:[#allocation2 + $0x30] sm:$0xff] 0.0
          %340 = vst [vmem:[#allocation2 + $0x38] sm:$0xff] 0.0
          %341 = vst [vmem:[#allocation2 + $0x40] sm:$0xff] 0.0
          %342 = vst [vmem:[#allocation2 + $0x48] sm:$0xff] 0.0
          %343 = vst [vmem:[#allocation2 + $0x50] sm:$0xff] 0.0
          %344 = vst [vmem:[#allocation2 + $0x58] sm:$0xff] 0.0
          %345 = vst [vmem:[#allocation2 + $0x60] sm:$0xff] 0.0
          %346 = vst [vmem:[#allocation2 + $0x68] sm:$0xff] 0.0
          %347 = vst [vmem:[#allocation2 + $0x70] sm:$0xff] 0.0
          %348 = vst [vmem:[#allocation2 + $0x78] sm:$0xff] 0.0
          %349 = vst [vmem:[#allocation2 + $0x80] sm:$0xff] 0.0
          %350 = vst [vmem:[#allocation2 + $0x88] sm:$0xff] 0.0
          %351 = vst [vmem:[#allocation2 + $0x90] sm:$0xff] 0.0
          %352 = vst [vmem:[#allocation2 + $0x98] sm:$0xff] 0.0
          %353 = vst [vmem:[#allocation2 + $0xa0] sm:$0xff] 0.0
          %354 = vst [vmem:[#allocation2 + $0xa8] sm:$0xff] 0.0
          %355 = vst [vmem:[#allocation2 + $0xb0] sm:$0xff] 0.0
          %356 = vst [vmem:[#allocation2 + $0xb8] sm:$0xff] 0.0
          %357 = vst [vmem:[#allocation2 + $0xc0] sm:$0xff] 0.0
          %358 = vst [vmem:[#allocation2 + $0xc8] sm:$0xff] 0.0
          %359 = vst [vmem:[#allocation2 + $0xd0] sm:$0xff] 0.0
          %360 = vst [vmem:[#allocation2 + $0xd8] sm:$0xff] 0.0
          %361 = vst [vmem:[#allocation2 + $0xe0] sm:$0xff] 0.0
          %362 = vst [vmem:[#allocation2 + $0xe8] sm:$0xff] 0.0
          %363 = vst [vmem:[#allocation2 + $0xf0] sm:$0xff] 0.0
          %364 = vst [vmem:[#allocation2 + $0xf8] sm:$0xff] 0.0
        $region52: #{tpu_custom_call.1} parent=39 // pred_fallthru
          _
        %v365 = vld [vmem:[#allocation6] sm:$0xff]
        %v366 = vld [vmem:[#allocation6 + $0x8] sm:$0xff]
        %v367 = vld [vmem:[#allocation6 + $0x10] sm:$0xff]
        %v368 = vld [vmem:[#allocation6 + $0x18] sm:$0xff]
        %v369 = vld [vmem:[#allocation6 + $0x20] sm:$0xff]
        %v370 = vld [vmem:[#allocation6 + $0x28] sm:$0xff]
        %v371 = vld [vmem:[#allocation6 + $0x30] sm:$0xff]
        %v372 = vld [vmem:[#allocation6 + $0x38] sm:$0xff]
        %v373 = vld [vmem:[#allocation6 + $0x40] sm:$0xff]
        %v374 = vld [vmem:[#allocation6 + $0x48] sm:$0xff]
        %v375 = vld [vmem:[#allocation6 + $0x50] sm:$0xff]
        %v376 = vld [vmem:[#allocation6 + $0x58] sm:$0xff]
        %v377 = vld [vmem:[#allocation6 + $0x60] sm:$0xff]
        %v378 = vld [vmem:[#allocation6 + $0x68] sm:$0xff]
        %v379 = vld [vmem:[#allocation6 + $0x70] sm:$0xff]
        %v380 = vld [vmem:[#allocation6 + $0x78] sm:$0xff]
        %v381 = vld [vmem:[#allocation6 + $0x80] sm:$0xff]
        %v382 = vld [vmem:[#allocation6 + $0x88] sm:$0xff]
        %v383 = vld [vmem:[#allocation6 + $0x90] sm:$0xff]
        %v384 = vld [vmem:[#allocation6 + $0x98] sm:$0xff]
        %v385 = vld [vmem:[#allocation6 + $0xa0] sm:$0xff]
        %v386 = vld [vmem:[#allocation6 + $0xa8] sm:$0xff]
        %v387 = vld [vmem:[#allocation6 + $0xb0] sm:$0xff]
        %v388 = vld [vmem:[#allocation6 + $0xb8] sm:$0xff]
        %v389 = vld [vmem:[#allocation6 + $0xc0] sm:$0xff]
        %v390 = vld [vmem:[#allocation6 + $0xc8] sm:$0xff]
        %v391 = vld [vmem:[#allocation6 + $0xd0] sm:$0xff]
        %v392 = vld [vmem:[#allocation6 + $0xd8] sm:$0xff]
        %v393 = vld [vmem:[#allocation6 + $0xe0] sm:$0xff]
        %v394 = vld [vmem:[#allocation6 + $0xe8] sm:$0xff]
        %v395 = vld [vmem:[#allocation6 + $0xf0] sm:$0xff]
        %v396 = vld [vmem:[#allocation6 + $0xf8] sm:$0xff]
        %v397 = vld [vmem:[#allocation2] sm:$0xff]
        %v398 = vld [vmem:[#allocation2 + $0x8] sm:$0xff]
        %v399 = vld [vmem:[#allocation2 + $0x10] sm:$0xff]
        %v400 = vld [vmem:[#allocation2 + $0x18] sm:$0xff]
        %v401 = vld [vmem:[#allocation2 + $0x20] sm:$0xff]
        %v402 = vld [vmem:[#allocation2 + $0x28] sm:$0xff]
        %v403 = vld [vmem:[#allocation2 + $0x30] sm:$0xff]
        %v404 = vld [vmem:[#allocation2 + $0x38] sm:$0xff]
        %v405 = vld [vmem:[#allocation2 + $0x40] sm:$0xff]
        %v406 = vld [vmem:[#allocation2 + $0x48] sm:$0xff]
        %v407 = vld [vmem:[#allocation2 + $0x50] sm:$0xff]
        %v408 = vld [vmem:[#allocation2 + $0x58] sm:$0xff]
        %v409 = vld [vmem:[#allocation2 + $0x60] sm:$0xff]
        %v410 = vld [vmem:[#allocation2 + $0x68] sm:$0xff]
        %v411 = vld [vmem:[#allocation2 + $0x70] sm:$0xff]
        %v412 = vld [vmem:[#allocation2 + $0x78] sm:$0xff]
        %v413 = vld [vmem:[#allocation2 + $0x80] sm:$0xff]
        %v414 = vld [vmem:[#allocation2 + $0x88] sm:$0xff]
        %v415 = vld [vmem:[#allocation2 + $0x90] sm:$0xff]
        %v416 = vld [vmem:[#allocation2 + $0x98] sm:$0xff]
        %v417 = vld [vmem:[#allocation2 + $0xa0] sm:$0xff]
        %v418 = vld [vmem:[#allocation2 + $0xa8] sm:$0xff]
        %v419 = vld [vmem:[#allocation2 + $0xb0] sm:$0xff]
        %v420 = vld [vmem:[#allocation2 + $0xb8] sm:$0xff]
        %v421 = vld [vmem:[#allocation2 + $0xc0] sm:$0xff]
        %v422 = vld [vmem:[#allocation2 + $0xc8] sm:$0xff]
        %v423 = vld [vmem:[#allocation2 + $0xd0] sm:$0xff]
        %v424 = vld [vmem:[#allocation2 + $0xd8] sm:$0xff]
        %v425 = vld [vmem:[#allocation2 + $0xe0] sm:$0xff]
        %v426 = vld [vmem:[#allocation2 + $0xe8] sm:$0xff]
        %v427 = vld [vmem:[#allocation2 + $0xf0] sm:$0xff]
        %v428 = vld [vmem:[#allocation2 + $0xf8] sm:$0xff]
        %v429 = vld [vmem:[%s314] ss:$8 sm:$0x3]
        %v430 = vld [vmem:[%s320] sm:$0xff]
        %v431 = vld [vmem:[%s320 + $0x8] sm:$0xff]
        %v432 = vld [vmem:[%s320 + $0x10] sm:$0xff]
        %v433 = vld [vmem:[%s320 + $0x18] sm:$0xff]
        %v434 = vld [vmem:[%s320 + $0x20] sm:$0xff]
        %v435 = vld [vmem:[%s320 + $0x28] sm:$0xff]
        %v436 = vld [vmem:[%s320 + $0x30] sm:$0xff]
        %v437 = vld [vmem:[%s320 + $0x38] sm:$0xff]
        %v438 = vld [vmem:[%s320 + $0x40] sm:$0xff]
        %v439 = vld [vmem:[%s320 + $0x48] sm:$0xff]
        %v440 = vld [vmem:[%s320 + $0x50] sm:$0xff]
        %v441 = vld [vmem:[%s320 + $0x58] sm:$0xff]
        %v442 = vld [vmem:[%s320 + $0x60] sm:$0xff]
        %v443 = vld [vmem:[%s320 + $0x68] sm:$0xff]
        %v444 = vld [vmem:[%s320 + $0x70] sm:$0xff]
        %v445 = vld [vmem:[%s320 + $0x78] sm:$0xff]
        %v446 = vld [vmem:[%s320 + $0x80] sm:$0xff]
        %v447 = vld [vmem:[%s320 + $0x88] sm:$0xff]
        %v448 = vld [vmem:[%s320 + $0x90] sm:$0xff]
        %v449 = vld [vmem:[%s320 + $0x98] sm:$0xff]
        %v450 = vld [vmem:[%s320 + $0xa0] sm:$0xff]
        %v451 = vld [vmem:[%s320 + $0xa8] sm:$0xff]
        %v452 = vld [vmem:[%s320 + $0xb0] sm:$0xff]
        %v453 = vld [vmem:[%s320 + $0xb8] sm:$0xff]
        %v454 = vld [vmem:[%s320 + $0xc0] sm:$0xff]
        %v455 = vld [vmem:[%s320 + $0xc8] sm:$0xff]
        %v456 = vld [vmem:[%s320 + $0xd0] sm:$0xff]
        %v457 = vld [vmem:[%s320 + $0xd8] sm:$0xff]
        %v458 = vld [vmem:[%s320 + $0xe0] sm:$0xff]
        %v459 = vld [vmem:[%s320 + $0xe8] sm:$0xff]
        %v460 = vld [vmem:[%s320 + $0xf0] sm:$0xff]
        %v461 = vld [vmem:[%s320 + $0xf8] sm:$0xff]
        %v462 = vld [vmem:[%s327] sm:$0xff]
        %v463 = vld [vmem:[%s327 + $0x8] sm:$0xff]
        %v464 = vld [vmem:[%s327 + $0x10] sm:$0xff]
        %v465 = vld [vmem:[%s327 + $0x18] sm:$0xff]
        %v466 = vld [vmem:[%s327 + $0x20] sm:$0xff]
        %v467 = vld [vmem:[%s327 + $0x28] sm:$0xff]
        %v468 = vld [vmem:[%s327 + $0x30] sm:$0xff]
        %v469 = vld [vmem:[%s327 + $0x38] sm:$0xff]
        %v470 = vld [vmem:[%s327 + $0x40] sm:$0xff]
        %v471 = vld [vmem:[%s327 + $0x48] sm:$0xff]
        %v472 = vld [vmem:[%s327 + $0x50] sm:$0xff]
        %v473 = vld [vmem:[%s327 + $0x58] sm:$0xff]
        %v474 = vld [vmem:[%s327 + $0x60] sm:$0xff]
        %v475 = vld [vmem:[%s327 + $0x68] sm:$0xff]
        %v476 = vld [vmem:[%s327 + $0x70] sm:$0xff]
        %v477 = vld [vmem:[%s327 + $0x78] sm:$0xff]
        %v478 = vld [vmem:[%s327 + $0x80] sm:$0xff]
        %v479 = vld [vmem:[%s327 + $0x88] sm:$0xff]
        %v480 = vld [vmem:[%s327 + $0x90] sm:$0xff]
        %v481 = vld [vmem:[%s327 + $0x98] sm:$0xff]
        %v482 = vld [vmem:[%s327 + $0xa0] sm:$0xff]
        %v483 = vld [vmem:[%s327 + $0xa8] sm:$0xff]
        %v484 = vld [vmem:[%s327 + $0xb0] sm:$0xff]
        %v485 = vld [vmem:[%s327 + $0xb8] sm:$0xff]
        %v486 = vld [vmem:[%s327 + $0xc0] sm:$0xff]
        %v487 = vld [vmem:[%s327 + $0xc8] sm:$0xff]
        %v488 = vld [vmem:[%s327 + $0xd0] sm:$0xff]
        %v489 = vld [vmem:[%s327 + $0xd8] sm:$0xff]
        %v490 = vld [vmem:[%s327 + $0xe0] sm:$0xff]
        %v491 = vld [vmem:[%s327 + $0xe8] sm:$0xff]
        %v492 = vld [vmem:[%s327 + $0xf0] sm:$0xff]
        %v493 = vld [vmem:[%s327 + $0xf8] sm:$0xff]
        %v494 = vld [vmem:[%s260] sm:$0x1]
        %v495 = vmul.f32 %v365, %v397
        %v496 = vmul.f32 %v366, %v398
        %v497 = vmul.f32 %v367, %v399
        %v498 = vmul.f32 %v368, %v400
        %v499 = vmul.f32 %v369, %v401
        %v500 = vmul.f32 %v370, %v402
        %v501 = vmul.f32 %v371, %v403
        %v502 = vmul.f32 %v372, %v404
        %v503 = vmul.f32 %v373, %v405
        %v504 = vmul.f32 %v374, %v406
        %v505 = vmul.f32 %v375, %v407
        %v506 = vmul.f32 %v376, %v408
        %v507 = vmul.f32 %v377, %v409
        %v508 = vmul.f32 %v378, %v410
        %v509 = vmul.f32 %v379, %v411
        %v510 = vmul.f32 %v380, %v412
        %v511 = vmul.f32 %v381, %v413
        %v512 = vmul.f32 %v382, %v414
        %v513 = vmul.f32 %v383, %v415
        %v514 = vmul.f32 %v384, %v416
        %v515 = vmul.f32 %v385, %v417
        %v516 = vmul.f32 %v386, %v418
        %v517 = vmul.f32 %v387, %v419
        %v518 = vmul.f32 %v388, %v420
        %v519 = vmul.f32 %v389, %v421
        %v520 = vmul.f32 %v390, %v422
        %v521 = vmul.f32 %v391, %v423
        %v522 = vmul.f32 %v392, %v424
        %v523 = vmul.f32 %v393, %v425
        %v524 = vmul.f32 %v394, %v426
        %v525 = vmul.f32 %v395, %v427
        %v526 = vmul.f32 %v396, %v428
        %v528 = vperm.slane %v429, 0
        %v529 = vperm.slane %v429, 1
        %532 = vmatpush.msra.mxu0 %v510
        %533 = vmatpush.msra.mxu0 %v509
        %534 = vmatpush.msra.mxu0 %v508
        %535 = vmatpush.msra.mxu0 %v507
        %536 = vmatpush.msra.mxu0 %v506
        %537 = vmatpush.msra.mxu0 %v505
        %538 = vmatpush.msra.mxu0 %v504
        %539 = vmatpush.msra.mxu0 %v503
        %540 = vmatpush.msra.mxu0 %v502
        %541 = vmatpush.msra.mxu0 %v501
        %542 = vmatpush.msra.mxu0 %v500
        %543 = vmatpush.msra.mxu0 %v499
        %544 = vmatpush.msra.mxu0 %v498
        %545 = vmatpush.msra.mxu0 %v497
        %546 = vmatpush.msra.mxu0 %v496
        %547 = vmatpush.msra.mxu0 %v495
        %548 = vmatmul.f32.gmra.mxu0 %v528
        %v549 = vpop.f32.mrf.mxu0
        %v550 = vadd.f32 0.0, %v549
        %551 = vdwg.mxu0
        %552 = vmatpush.msra.mxu0 %v526
        %553 = vmatpush.msra.mxu0 %v525
        %554 = vmatpush.msra.mxu0 %v524
        %555 = vmatpush.msra.mxu0 %v523
        %556 = vmatpush.msra.mxu0 %v522
        %557 = vmatpush.msra.mxu0 %v521
        %558 = vmatpush.msra.mxu0 %v520
        %559 = vmatpush.msra.mxu0 %v519
        %560 = vmatpush.msra.mxu0 %v518
        %561 = vmatpush.msra.mxu0 %v517
        %562 = vmatpush.msra.mxu0 %v516
        %563 = vmatpush.msra.mxu0 %v515
        %564 = vmatpush.msra.mxu0 %v514
        %565 = vmatpush.msra.mxu0 %v513
        %566 = vmatpush.msra.mxu0 %v512
        %567 = vmatpush.msra.mxu0 %v511
        %568 = vmatmul.f32.gmra.mxu0 %v529
        %v569 = vpop.f32.mrf.mxu0
        %v570 = vadd.f32 %v550, %v569
        %571 = vdwg.mxu0
        %v572 = vadd.f32 %v494, %v570
        %vm573 = vcmask 1040384
        %v574 = vsel %vm573, %v572, -inf
        %575 = vmax.xlane.f32.xlu0 %v574
        %v576 = vpop.xlane.xlu0 %575
        %v577 = vsub.f32 %v572, %v576
        %v578 = vmul.f32 %v577, 1.442695
        %v579 = vpow.pop %v578
        %v580 = vsel %vm573, %v579, 0.0
        %581 = vadd.xlane.f32.xlu0 %v580
        %v582 = vpop.xlane.xlu0 %581
        %v583 = vrcp.pop %v582
        %v584 = vmul.f32 %v579, %v583
        %586 = vset.pattern.permute.xlu0 0
        %587 = vperm.xlu0 %586, %v430
        %v588 = vpop.permute.xlu0 %587
        %591 = vset.pattern.permute.xlu0 0
        %592 = vperm.xlu0 %591, %v431
        %v593 = vpop.permute.xlu0 %592
        %596 = vset.pattern.permute.xlu0 0
        %597 = vperm.xlu0 %596, %v432
        %v598 = vpop.permute.xlu0 %597
        %601 = vset.pattern.permute.xlu0 0
        %602 = vperm.xlu0 %601, %v433
        %v603 = vpop.permute.xlu0 %602
        %606 = vset.pattern.permute.xlu0 0
        %607 = vperm.xlu0 %606, %v434
        %v608 = vpop.permute.xlu0 %607
        %611 = vset.pattern.permute.xlu0 0
        %612 = vperm.xlu0 %611, %v435
        %v613 = vpop.permute.xlu0 %612
        %616 = vset.pattern.permute.xlu0 0
        %617 = vperm.xlu0 %616, %v436
        %v618 = vpop.permute.xlu0 %617
        %621 = vset.pattern.permute.xlu0 0
        %622 = vperm.xlu0 %621, %v437
        %v623 = vpop.permute.xlu0 %622
        %626 = vset.pattern.permute.xlu0 0
        %627 = vperm.xlu0 %626, %v438
        %v628 = vpop.permute.xlu0 %627
        %631 = vset.pattern.permute.xlu0 0
        %632 = vperm.xlu0 %631, %v439
        %v633 = vpop.permute.xlu0 %632
        %636 = vset.pattern.permute.xlu0 0
        %637 = vperm.xlu0 %636, %v440
        %v638 = vpop.permute.xlu0 %637
        %641 = vset.pattern.permute.xlu0 0
        %642 = vperm.xlu0 %641, %v441
        %v643 = vpop.permute.xlu0 %642
        %646 = vset.pattern.permute.xlu0 0
        %647 = vperm.xlu0 %646, %v442
        %v648 = vpop.permute.xlu0 %647
        %651 = vset.pattern.permute.xlu0 0
        %652 = vperm.xlu0 %651, %v443
        %v653 = vpop.permute.xlu0 %652
        %656 = vset.pattern.permute.xlu0 0
        %657 = vperm.xlu0 %656, %v444
        %v658 = vpop.permute.xlu0 %657
        %661 = vset.pattern.permute.xlu0 0
        %662 = vperm.xlu0 %661, %v445
        %v663 = vpop.permute.xlu0 %662
        %666 = vset.pattern.permute.xlu0 0
        %667 = vperm.xlu0 %666, %v446
        %v668 = vpop.permute.xlu0 %667
        %671 = vset.pattern.permute.xlu0 0
        %672 = vperm.xlu0 %671, %v447
        %v673 = vpop.permute.xlu0 %672
        %676 = vset.pattern.permute.xlu0 0
        %677 = vperm.xlu0 %676, %v448
        %v678 = vpop.permute.xlu0 %677
        %681 = vset.pattern.permute.xlu0 0
        %682 = vperm.xlu0 %681, %v449
        %v683 = vpop.permute.xlu0 %682
        %686 = vset.pattern.permute.xlu0 0
        %687 = vperm.xlu0 %686, %v450
        %v688 = vpop.permute.xlu0 %687
        %691 = vset.pattern.permute.xlu0 0
        %692 = vperm.xlu0 %691, %v451
        %v693 = vpop.permute.xlu0 %692
        %696 = vset.pattern.permute.xlu0 0
        %697 = vperm.xlu0 %696, %v452
        %v698 = vpop.permute.xlu0 %697
        %701 = vset.pattern.permute.xlu0 0
        %702 = vperm.xlu0 %701, %v453
        %v703 = vpop.permute.xlu0 %702
        %706 = vset.pattern.permute.xlu0 0
        %707 = vperm.xlu0 %706, %v454
        %v708 = vpop.permute.xlu0 %707
        %711 = vset.pattern.permute.xlu0 0
        %712 = vperm.xlu0 %711, %v455
        %v713 = vpop.permute.xlu0 %712
        %716 = vset.pattern.permute.xlu0 0
        %717 = vperm.xlu0 %716, %v456
        %v718 = vpop.permute.xlu0 %717
        %721 = vset.pattern.permute.xlu0 0
        %722 = vperm.xlu0 %721, %v457
        %v723 = vpop.permute.xlu0 %722
        %726 = vset.pattern.permute.xlu0 0
        %727 = vperm.xlu0 %726, %v458
        %v728 = vpop.permute.xlu0 %727
        %731 = vset.pattern.permute.xlu0 0
        %732 = vperm.xlu0 %731, %v459
        %v733 = vpop.permute.xlu0 %732
        %736 = vset.pattern.permute.xlu0 0
        %737 = vperm.xlu0 %736, %v460
        %v738 = vpop.permute.xlu0 %737
        %741 = vset.pattern.permute.xlu0 0
        %742 = vperm.xlu0 %741, %v461
        %v743 = vpop.permute.xlu0 %742
        %v745 = vperm.slane %v584, 0
        %v746 = vmul.f32 %v588, %v745
        %v747 = vmul.f32 %v593, %v745
        %v748 = vmul.f32 %v598, %v745
        %v749 = vmul.f32 %v603, %v745
        %v750 = vmul.f32 %v608, %v745
        %v751 = vmul.f32 %v613, %v745
        %v752 = vmul.f32 %v618, %v745
        %v753 = vmul.f32 %v623, %v745
        %v754 = vmul.f32 %v628, %v745
        %v755 = vmul.f32 %v633, %v745
        %v756 = vmul.f32 %v638, %v745
        %v757 = vmul.f32 %v643, %v745
        %v758 = vmul.f32 %v648, %v745
        %v759 = vmul.f32 %v653, %v745
        %v760 = vmul.f32 %v658, %v745
        %v761 = vmul.f32 %v663, %v745
        %v762 = vmul.f32 %v668, %v745
        %v763 = vmul.f32 %v673, %v745
        %v764 = vmul.f32 %v678, %v745
        %v765 = vmul.f32 %v683, %v745
        %v766 = vmul.f32 %v688, %v745
        %v767 = vmul.f32 %v693, %v745
        %v768 = vmul.f32 %v698, %v745
        %v769 = vmul.f32 %v703, %v745
        %v770 = vmul.f32 %v708, %v745
        %v771 = vmul.f32 %v713, %v745
        %v772 = vmul.f32 %v718, %v745
        %v773 = vmul.f32 %v723, %v745
        %v774 = vmul.f32 %v728, %v745
        %v775 = vmul.f32 %v733, %v745
        %v776 = vmul.f32 %v738, %v745
        %v777 = vmul.f32 %v743, %v745
        %v778 = vsub.f32 %v746, %v397
        %v779 = vsub.f32 %v747, %v398
        %v780 = vsub.f32 %v748, %v399
        %v781 = vsub.f32 %v749, %v400
        %v782 = vsub.f32 %v750, %v401
        %v783 = vsub.f32 %v751, %v402
        %v784 = vsub.f32 %v752, %v403
        %v785 = vsub.f32 %v753, %v404
        %v786 = vsub.f32 %v754, %v405
        %v787 = vsub.f32 %v755, %v406
        %v788 = vsub.f32 %v756, %v407
        %v789 = vsub.f32 %v757, %v408
        %v790 = vsub.f32 %v758, %v409
        %v791 = vsub.f32 %v759, %v410
        %v792 = vsub.f32 %v760, %v411
        %v793 = vsub.f32 %v761, %v412
        %v794 = vsub.f32 %v762, %v413
        %v795 = vsub.f32 %v763, %v414
        %v796 = vsub.f32 %v764, %v415
        %v797 = vsub.f32 %v765, %v416
        %v798 = vsub.f32 %v766, %v417
        %v799 = vsub.f32 %v767, %v418
        %v800 = vsub.f32 %v768, %v419
        %v801 = vsub.f32 %v769, %v420
        %v802 = vsub.f32 %v770, %v421
        %v803 = vsub.f32 %v771, %v422
        %v804 = vsub.f32 %v772, %v423
        %v805 = vsub.f32 %v773, %v424
        %v806 = vsub.f32 %v774, %v425
        %v807 = vsub.f32 %v775, %v426
        %v808 = vsub.f32 %v776, %v427
        %v809 = vsub.f32 %v777, %v428
        %v810 = vmul.f32 %v462, %v778
        %v811 = vmul.f32 %v463, %v779
        %v812 = vmul.f32 %v464, %v780
        %v813 = vmul.f32 %v465, %v781
        %v814 = vmul.f32 %v466, %v782
        %v815 = vmul.f32 %v467, %v783
        %v816 = vmul.f32 %v468, %v784
        %v817 = vmul.f32 %v469, %v785
        %v818 = vmul.f32 %v470, %v786
        %v819 = vmul.f32 %v471, %v787
        %v820 = vmul.f32 %v472, %v788
        %v821 = vmul.f32 %v473, %v789
        %v822 = vmul.f32 %v474, %v790
        %v823 = vmul.f32 %v475, %v791
        %v824 = vmul.f32 %v476, %v792
        %v825 = vmul.f32 %v477, %v793
        %v826 = vmul.f32 %v478, %v794
        %v827 = vmul.f32 %v479, %v795
        %v828 = vmul.f32 %v480, %v796
        %v829 = vmul.f32 %v481, %v797
        %v830 = vmul.f32 %v482, %v798
        %v831 = vmul.f32 %v483, %v799
        %v832 = vmul.f32 %v484, %v800
        %v833 = vmul.f32 %v485, %v801
        %v834 = vmul.f32 %v486, %v802
        %v835 = vmul.f32 %v487, %v803
        %v836 = vmul.f32 %v488, %v804
        %v837 = vmul.f32 %v489, %v805
        %v838 = vmul.f32 %v490, %v806
        %v839 = vmul.f32 %v491, %v807
        %v840 = vmul.f32 %v492, %v808
        %v841 = vmul.f32 %v493, %v809
        %v842 = vadd.f32 %v397, %v810
        %v843 = vadd.f32 %v398, %v811
        %v844 = vadd.f32 %v399, %v812
        %v845 = vadd.f32 %v400, %v813
        %v846 = vadd.f32 %v401, %v814
        %v847 = vadd.f32 %v402, %v815
        %v848 = vadd.f32 %v403, %v816
        %v849 = vadd.f32 %v404, %v817
        %v850 = vadd.f32 %v405, %v818
        %v851 = vadd.f32 %v406, %v819
        %v852 = vadd.f32 %v407, %v820
        %v853 = vadd.f32 %v408, %v821
        %v854 = vadd.f32 %v409, %v822
        %v855 = vadd.f32 %v410, %v823
        %v856 = vadd.f32 %v411, %v824
        %v857 = vadd.f32 %v412, %v825
        %v858 = vadd.f32 %v413, %v826
        %v859 = vadd.f32 %v414, %v827
        %v860 = vadd.f32 %v415, %v828
        %v861 = vadd.f32 %v416, %v829
        %v862 = vadd.f32 %v417, %v830
        %v863 = vadd.f32 %v418, %v831
        %v864 = vadd.f32 %v419, %v832
        %v865 = vadd.f32 %v420, %v833
        %v866 = vadd.f32 %v421, %v834
        %v867 = vadd.f32 %v422, %v835
        %v868 = vadd.f32 %v423, %v836
        %v869 = vadd.f32 %v424, %v837
        %v870 = vadd.f32 %v425, %v838
        %v871 = vadd.f32 %v426, %v839
        %v872 = vadd.f32 %v427, %v840
        %v873 = vadd.f32 %v428, %v841
        %v874 = vmax.f32 %v842, -1.0
        %v875 = vmax.f32 %v843, -1.0
        %v876 = vmax.f32 %v844, -1.0
        %v877 = vmax.f32 %v845, -1.0
        %v878 = vmax.f32 %v846, -1.0
        %v879 = vmax.f32 %v847, -1.0
        %v880 = vmax.f32 %v848, -1.0
        %v881 = vmax.f32 %v849, -1.0
        %v882 = vmax.f32 %v850, -1.0
        %v883 = vmax.f32 %v851, -1.0
        %v884 = vmax.f32 %v852, -1.0
        %v885 = vmax.f32 %v853, -1.0
        %v886 = vmax.f32 %v854, -1.0
        %v887 = vmax.f32 %v855, -1.0
        %v888 = vmax.f32 %v856, -1.0
        %v889 = vmax.f32 %v857, -1.0
        %v890 = vmax.f32 %v858, -1.0
        %v891 = vmax.f32 %v859, -1.0
        %v892 = vmax.f32 %v860, -1.0
        %v893 = vmax.f32 %v861, -1.0
        %v894 = vmax.f32 %v862, -1.0
        %v895 = vmax.f32 %v863, -1.0
        %v896 = vmax.f32 %v864, -1.0
        %v897 = vmax.f32 %v865, -1.0
        %v898 = vmax.f32 %v866, -1.0
        %v899 = vmax.f32 %v867, -1.0
        %v900 = vmax.f32 %v868, -1.0
        %v901 = vmax.f32 %v869, -1.0
        %v902 = vmax.f32 %v870, -1.0
        %v903 = vmax.f32 %v871, -1.0
        %v904 = vmax.f32 %v872, -1.0
        %v905 = vmax.f32 %v873, -1.0
        %v906 = vmin.f32 %v874, 1.0
        %v907 = vmin.f32 %v875, 1.0
        %v908 = vmin.f32 %v876, 1.0
        %v909 = vmin.f32 %v877, 1.0
        %v910 = vmin.f32 %v878, 1.0
        %v911 = vmin.f32 %v879, 1.0
        %v912 = vmin.f32 %v880, 1.0
        %v913 = vmin.f32 %v881, 1.0
        %v914 = vmin.f32 %v882, 1.0
        %v915 = vmin.f32 %v883, 1.0
        %v916 = vmin.f32 %v884, 1.0
        %v917 = vmin.f32 %v885, 1.0
        %v918 = vmin.f32 %v886, 1.0
        %v919 = vmin.f32 %v887, 1.0
        %v920 = vmin.f32 %v888, 1.0
        %v921 = vmin.f32 %v889, 1.0
        %v922 = vmin.f32 %v890, 1.0
        %v923 = vmin.f32 %v891, 1.0
        %v924 = vmin.f32 %v892, 1.0
        %v925 = vmin.f32 %v893, 1.0
        %v926 = vmin.f32 %v894, 1.0
        %v927 = vmin.f32 %v895, 1.0
        %v928 = vmin.f32 %v896, 1.0
        %v929 = vmin.f32 %v897, 1.0
        %v930 = vmin.f32 %v898, 1.0
        %v931 = vmin.f32 %v899, 1.0
        %v932 = vmin.f32 %v900, 1.0
        %v933 = vmin.f32 %v901, 1.0
        %v934 = vmin.f32 %v902, 1.0
        %v935 = vmin.f32 %v903, 1.0
        %v936 = vmin.f32 %v904, 1.0
        %v937 = vmin.f32 %v905, 1.0
        %938 = vst [vmem:[#allocation2] sm:$0xff] %v906
        %939 = vst [vmem:[#allocation2 + $0x8] sm:$0xff] %v907
        %940 = vst [vmem:[#allocation2 + $0x10] sm:$0xff] %v908
        %941 = vst [vmem:[#allocation2 + $0x18] sm:$0xff] %v909
        %942 = vst [vmem:[#allocation2 + $0x20] sm:$0xff] %v910
        %943 = vst [vmem:[#allocation2 + $0x28] sm:$0xff] %v911
        %944 = vst [vmem:[#allocation2 + $0x30] sm:$0xff] %v912
        %945 = vst [vmem:[#allocation2 + $0x38] sm:$0xff] %v913
        %946 = vst [vmem:[#allocation2 + $0x40] sm:$0xff] %v914
        %947 = vst [vmem:[#allocation2 + $0x48] sm:$0xff] %v915
        %948 = vst [vmem:[#allocation2 + $0x50] sm:$0xff] %v916
        %949 = vst [vmem:[#allocation2 + $0x58] sm:$0xff] %v917
        %950 = vst [vmem:[#allocation2 + $0x60] sm:$0xff] %v918
        %951 = vst [vmem:[#allocation2 + $0x68] sm:$0xff] %v919
        %952 = vst [vmem:[#allocation2 + $0x70] sm:$0xff] %v920
        %953 = vst [vmem:[#allocation2 + $0x78] sm:$0xff] %v921
        %954 = vst [vmem:[#allocation2 + $0x80] sm:$0xff] %v922
        %955 = vst [vmem:[#allocation2 + $0x88] sm:$0xff] %v923
        %956 = vst [vmem:[#allocation2 + $0x90] sm:$0xff] %v924
        %957 = vst [vmem:[#allocation2 + $0x98] sm:$0xff] %v925
        %958 = vst [vmem:[#allocation2 + $0xa0] sm:$0xff] %v926
        %959 = vst [vmem:[#allocation2 + $0xa8] sm:$0xff] %v927
        %960 = vst [vmem:[#allocation2 + $0xb0] sm:$0xff] %v928
        %961 = vst [vmem:[#allocation2 + $0xb8] sm:$0xff] %v929
        %962 = vst [vmem:[#allocation2 + $0xc0] sm:$0xff] %v930
        %963 = vst [vmem:[#allocation2 + $0xc8] sm:$0xff] %v931
        %964 = vst [vmem:[#allocation2 + $0xd0] sm:$0xff] %v932
        %965 = vst [vmem:[#allocation2 + $0xd8] sm:$0xff] %v933
        %966 = vst [vmem:[#allocation2 + $0xe0] sm:$0xff] %v934
        %967 = vst [vmem:[#allocation2 + $0xe8] sm:$0xff] %v935
        %968 = vst [vmem:[#allocation2 + $0xf0] sm:$0xff] %v936
        %969 = vst [vmem:[#allocation2 + $0xf8] sm:$0xff] %v937
        %970 = vst [vmem:[%s309] sm:$0x1] %v584
        %v971 = vld [vmem:[#allocation2] sm:$0xff]
        %v972 = vld [vmem:[#allocation2 + $0x8] sm:$0xff]
        %v973 = vld [vmem:[#allocation2 + $0x10] sm:$0xff]
        %v974 = vld [vmem:[#allocation2 + $0x18] sm:$0xff]
        %v975 = vld [vmem:[#allocation2 + $0x20] sm:$0xff]
        %v976 = vld [vmem:[#allocation2 + $0x28] sm:$0xff]
        %v977 = vld [vmem:[#allocation2 + $0x30] sm:$0xff]
        %v978 = vld [vmem:[#allocation2 + $0x38] sm:$0xff]
        %v979 = vld [vmem:[#allocation2 + $0x40] sm:$0xff]
        %v980 = vld [vmem:[#allocation2 + $0x48] sm:$0xff]
        %v981 = vld [vmem:[#allocation2 + $0x50] sm:$0xff]
        %v982 = vld [vmem:[#allocation2 + $0x58] sm:$0xff]
        %v983 = vld [vmem:[#allocation2 + $0x60] sm:$0xff]
        %v984 = vld [vmem:[#allocation2 + $0x68] sm:$0xff]
        %v985 = vld [vmem:[#allocation2 + $0x70] sm:$0xff]
        %v986 = vld [vmem:[#allocation2 + $0x78] sm:$0xff]
        %v987 = vld [vmem:[#allocation2 + $0x80] sm:$0xff]
        %v988 = vld [vmem:[#allocation2 + $0x88] sm:$0xff]
        %v989 = vld [vmem:[#allocation2 + $0x90] sm:$0xff]
        %v990 = vld [vmem:[#allocation2 + $0x98] sm:$0xff]
        %v991 = vld [vmem:[#allocation2 + $0xa0] sm:$0xff]
        %v992 = vld [vmem:[#allocation2 + $0xa8] sm:$0xff]
        %v993 = vld [vmem:[#allocation2 + $0xb0] sm:$0xff]
        %v994 = vld [vmem:[#allocation2 + $0xb8] sm:$0xff]
        %v995 = vld [vmem:[#allocation2 + $0xc0] sm:$0xff]
        %v996 = vld [vmem:[#allocation2 + $0xc8] sm:$0xff]
        %v997 = vld [vmem:[#allocation2 + $0xd0] sm:$0xff]
        %v998 = vld [vmem:[#allocation2 + $0xd8] sm:$0xff]
        %v999 = vld [vmem:[#allocation2 + $0xe0] sm:$0xff]
        %v1000 = vld [vmem:[#allocation2 + $0xe8] sm:$0xff]
        %v1001 = vld [vmem:[#allocation2 + $0xf0] sm:$0xff]
        %v1002 = vld [vmem:[#allocation2 + $0xf8] sm:$0xff]
        %s1003 = scalar_lea.vmem %s314, 1
        %v1004 = vld [vmem:[%s1003] ss:$8 sm:$0x3]
        %s1005 = scalar_lea.vmem %s320, 256
        %v1006 = vld [vmem:[%s1005] sm:$0xff]
        %v1007 = vld [vmem:[%s1005 + $0x8] sm:$0xff]
        %v1008 = vld [vmem:[%s1005 + $0x10] sm:$0xff]
        %v1009 = vld [vmem:[%s1005 + $0x18] sm:$0xff]
        %v1010 = vld [vmem:[%s1005 + $0x20] sm:$0xff]
        %v1011 = vld [vmem:[%s1005 + $0x28] sm:$0xff]
        %v1012 = vld [vmem:[%s1005 + $0x30] sm:$0xff]
        %v1013 = vld [vmem:[%s1005 + $0x38] sm:$0xff]
        %v1014 = vld [vmem:[%s1005 + $0x40] sm:$0xff]
        %v1015 = vld [vmem:[%s1005 + $0x48] sm:$0xff]
        %v1016 = vld [vmem:[%s1005 + $0x50] sm:$0xff]
        %v1017 = vld [vmem:[%s1005 + $0x58] sm:$0xff]
        %v1018 = vld [vmem:[%s1005 + $0x60] sm:$0xff]
        %v1019 = vld [vmem:[%s1005 + $0x68] sm:$0xff]
        %v1020 = vld [vmem:[%s1005 + $0x70] sm:$0xff]
        %v1021 = vld [vmem:[%s1005 + $0x78] sm:$0xff]
        %v1022 = vld [vmem:[%s1005 + $0x80] sm:$0xff]
        %v1023 = vld [vmem:[%s1005 + $0x88] sm:$0xff]
        %v1024 = vld [vmem:[%s1005 + $0x90] sm:$0xff]
        %v1025 = vld [vmem:[%s1005 + $0x98] sm:$0xff]
        %v1026 = vld [vmem:[%s1005 + $0xa0] sm:$0xff]
        %v1027 = vld [vmem:[%s1005 + $0xa8] sm:$0xff]
        %v1028 = vld [vmem:[%s1005 + $0xb0] sm:$0xff]
        %v1029 = vld [vmem:[%s1005 + $0xb8] sm:$0xff]
        %v1030 = vld [vmem:[%s1005 + $0xc0] sm:$0xff]
        %v1031 = vld [vmem:[%s1005 + $0xc8] sm:$0xff]
        %v1032 = vld [vmem:[%s1005 + $0xd0] sm:$0xff]
        %v1033 = vld [vmem:[%s1005 + $0xd8] sm:$0xff]
        %v1034 = vld [vmem:[%s1005 + $0xe0] sm:$0xff]
        %v1035 = vld [vmem:[%s1005 + $0xe8] sm:$0xff]
        %v1036 = vld [vmem:[%s1005 + $0xf0] sm:$0xff]
        %v1037 = vld [vmem:[%s1005 + $0xf8] sm:$0xff]
        %s1038 = scalar_lea.vmem %s327, 256
        %v1039 = vld [vmem:[%s1038] sm:$0xff]
        %v1040 = vld [vmem:[%s1038 + $0x8] sm:$0xff]
        %v1041 = vld [vmem:[%s1038 + $0x10] sm:$0xff]
        %v1042 = vld [vmem:[%s1038 + $0x18] sm:$0xff]
        %v1043 = vld [vmem:[%s1038 + $0x20] sm:$0xff]
        %v1044 = vld [vmem:[%s1038 + $0x28] sm:$0xff]
        %v1045 = vld [vmem:[%s1038 + $0x30] sm:$0xff]
        %v1046 = vld [vmem:[%s1038 + $0x38] sm:$0xff]
        %v1047 = vld [vmem:[%s1038 + $0x40] sm:$0xff]
        %v1048 = vld [vmem:[%s1038 + $0x48] sm:$0xff]
        %v1049 = vld [vmem:[%s1038 + $0x50] sm:$0xff]
        %v1050 = vld [vmem:[%s1038 + $0x58] sm:$0xff]
        %v1051 = vld [vmem:[%s1038 + $0x60] sm:$0xff]
        %v1052 = vld [vmem:[%s1038 + $0x68] sm:$0xff]
        %v1053 = vld [vmem:[%s1038 + $0x70] sm:$0xff]
        %v1054 = vld [vmem:[%s1038 + $0x78] sm:$0xff]
        %v1055 = vld [vmem:[%s1038 + $0x80] sm:$0xff]
        %v1056 = vld [vmem:[%s1038 + $0x88] sm:$0xff]
        %v1057 = vld [vmem:[%s1038 + $0x90] sm:$0xff]
        %v1058 = vld [vmem:[%s1038 + $0x98] sm:$0xff]
        %v1059 = vld [vmem:[%s1038 + $0xa0] sm:$0xff]
        %v1060 = vld [vmem:[%s1038 + $0xa8] sm:$0xff]
        %v1061 = vld [vmem:[%s1038 + $0xb0] sm:$0xff]
        %v1062 = vld [vmem:[%s1038 + $0xb8] sm:$0xff]
        %v1063 = vld [vmem:[%s1038 + $0xc0] sm:$0xff]
        %v1064 = vld [vmem:[%s1038 + $0xc8] sm:$0xff]
        %v1065 = vld [vmem:[%s1038 + $0xd0] sm:$0xff]
        %v1066 = vld [vmem:[%s1038 + $0xd8] sm:$0xff]
        %v1067 = vld [vmem:[%s1038 + $0xe0] sm:$0xff]
        %v1068 = vld [vmem:[%s1038 + $0xe8] sm:$0xff]
        %v1069 = vld [vmem:[%s1038 + $0xf0] sm:$0xff]
        %v1070 = vld [vmem:[%s1038 + $0xf8] sm:$0xff]
        %v1071 = vld [vmem:[%s260 + $0x1] sm:$0x1]
        %v1072 = vmul.f32 %v365, %v971
        %v1073 = vmul.f32 %v366, %v972
        %v1074 = vmul.f32 %v367, %v973
        %v1075 = vmul.f32 %v368, %v974
        %v1076 = vmul.f32 %v369, %v975
        %v1077 = vmul.f32 %v370, %v976
        %v1078 = vmul.f32 %v371, %v977
        %v1079 = vmul.f32 %v372, %v978
        %v1080 = vmul.f32 %v373, %v979
        %v1081 = vmul.f32 %v374, %v980
        %v1082 = vmul.f32 %v375, %v981
        %v1083 = vmul.f32 %v376, %v982
        %v1084 = vmul.f32 %v377, %v983
        %v1085 = vmul.f32 %v378, %v984
        %v1086 = vmul.f32 %v379, %v985
        %v1087 = vmul.f32 %v380, %v986
        %v1088 = vmul.f32 %v381, %v987
        %v1089 = vmul.f32 %v382, %v988
        %v1090 = vmul.f32 %v383, %v989
        %v1091 = vmul.f32 %v384, %v990
        %v1092 = vmul.f32 %v385, %v991
        %v1093 = vmul.f32 %v386, %v992
        %v1094 = vmul.f32 %v387, %v993
        %v1095 = vmul.f32 %v388, %v994
        %v1096 = vmul.f32 %v389, %v995
        %v1097 = vmul.f32 %v390, %v996
        %v1098 = vmul.f32 %v391, %v997
        %v1099 = vmul.f32 %v392, %v998
        %v1100 = vmul.f32 %v393, %v999
        %v1101 = vmul.f32 %v394, %v1000
        %v1102 = vmul.f32 %v395, %v1001
        %v1103 = vmul.f32 %v396, %v1002
        %v1105 = vperm.slane %v1004, 0
        %v1106 = vperm.slane %v1004, 1
        %1109 = vmatpush.msra.mxu0 %v1087
        %1110 = vmatpush.msra.mxu0 %v1086
        %1111 = vmatpush.msra.mxu0 %v1085
        %1112 = vmatpush.msra.mxu0 %v1084
        %1113 = vmatpush.msra.mxu0 %v1083
        %1114 = vmatpush.msra.mxu0 %v1082
        %1115 = vmatpush.msra.mxu0 %v1081
        %1116 = vmatpush.msra.mxu0 %v1080
        %1117 = vmatpush.msra.mxu0 %v1079
        %1118 = vmatpush.msra.mxu0 %v1078
        %1119 = vmatpush.msra.mxu0 %v1077
        %1120 = vmatpush.msra.mxu0 %v1076
        %1121 = vmatpush.msra.mxu0 %v1075
        %1122 = vmatpush.msra.mxu0 %v1074
        %1123 = vmatpush.msra.mxu0 %v1073
        %1124 = vmatpush.msra.mxu0 %v1072
        %1125 = vmatmul.f32.gmra.mxu0 %v1105
        %v1126 = vpop.f32.mrf.mxu0
        %v1127 = vadd.f32 0.0, %v1126
        %1128 = vdwg.mxu0
        %1129 = vmatpush.msra.mxu0 %v1103
        %1130 = vmatpush.msra.mxu0 %v1102
        %1131 = vmatpush.msra.mxu0 %v1101
        %1132 = vmatpush.msra.mxu0 %v1100
        %1133 = vmatpush.msra.mxu0 %v1099
        %1134 = vmatpush.msra.mxu0 %v1098
        %1135 = vmatpush.msra.mxu0 %v1097
        %1136 = vmatpush.msra.mxu0 %v1096
        %1137 = vmatpush.msra.mxu0 %v1095
        %1138 = vmatpush.msra.mxu0 %v1094
        %1139 = vmatpush.msra.mxu0 %v1093
        %1140 = vmatpush.msra.mxu0 %v1092
        %1141 = vmatpush.msra.mxu0 %v1091
        %1142 = vmatpush.msra.mxu0 %v1090
        %1143 = vmatpush.msra.mxu0 %v1089
        %1144 = vmatpush.msra.mxu0 %v1088
        %1145 = vmatmul.f32.gmra.mxu0 %v1106
        %v1146 = vpop.f32.mrf.mxu0
        %v1147 = vadd.f32 %v1127, %v1146
        %1148 = vdwg.mxu0
        %v1149 = vadd.f32 %v1071, %v1147
        %v1150 = vsel %vm573, %v1149, -inf
        %1151 = vmax.xlane.f32.xlu0 %v1150
        %v1152 = vpop.xlane.xlu0 %1151
        %v1153 = vsub.f32 %v1149, %v1152
        %v1154 = vmul.f32 %v1153, 1.442695
        %v1155 = vpow.pop %v1154
        %v1156 = vsel %vm573, %v1155, 0.0
        %1157 = vadd.xlane.f32.xlu0 %v1156
        %v1158 = vpop.xlane.xlu0 %1157
        %v1159 = vrcp.pop %v1158
        %v1160 = vmul.f32 %v1155, %v1159
        %1162 = vset.pattern.permute.xlu0 0
        %1163 = vperm.xlu0 %1162, %v1006
        %v1164 = vpop.permute.xlu0 %1163
        %1167 = vset.pattern.permute.xlu0 0
        %1168 = vperm.xlu0 %1167, %v1007
        %v1169 = vpop.permute.xlu0 %1168
        %1172 = vset.pattern.permute.xlu0 0
        %1173 = vperm.xlu0 %1172, %v1008
        %v1174 = vpop.permute.xlu0 %1173
        %1177 = vset.pattern.permute.xlu0 0
        %1178 = vperm.xlu0 %1177, %v1009
        %v1179 = vpop.permute.xlu0 %1178
        %1182 = vset.pattern.permute.xlu0 0
        %1183 = vperm.xlu0 %1182, %v1010
        %v1184 = vpop.permute.xlu0 %1183
        %1187 = vset.pattern.permute.xlu0 0
        %1188 = vperm.xlu0 %1187, %v1011
        %v1189 = vpop.permute.xlu0 %1188
        %1192 = vset.pattern.permute.xlu0 0
        %1193 = vperm.xlu0 %1192, %v1012
        %v1194 = vpop.permute.xlu0 %1193
        %1197 = vset.pattern.permute.xlu0 0
        %1198 = vperm.xlu0 %1197, %v1013
        %v1199 = vpop.permute.xlu0 %1198
        %1202 = vset.pattern.permute.xlu0 0
        %1203 = vperm.xlu0 %1202, %v1014
        %v1204 = vpop.permute.xlu0 %1203
        %1207 = vset.pattern.permute.xlu0 0
        %1208 = vperm.xlu0 %1207, %v1015
        %v1209 = vpop.permute.xlu0 %1208
        %1212 = vset.pattern.permute.xlu0 0
        %1213 = vperm.xlu0 %1212, %v1016
        %v1214 = vpop.permute.xlu0 %1213
        %1217 = vset.pattern.permute.xlu0 0
        %1218 = vperm.xlu0 %1217, %v1017
        %v1219 = vpop.permute.xlu0 %1218
        %1222 = vset.pattern.permute.xlu0 0
        %1223 = vperm.xlu0 %1222, %v1018
        %v1224 = vpop.permute.xlu0 %1223
        %1227 = vset.pattern.permute.xlu0 0
        %1228 = vperm.xlu0 %1227, %v1019
        %v1229 = vpop.permute.xlu0 %1228
        %1232 = vset.pattern.permute.xlu0 0
        %1233 = vperm.xlu0 %1232, %v1020
        %v1234 = vpop.permute.xlu0 %1233
        %1237 = vset.pattern.permute.xlu0 0
        %1238 = vperm.xlu0 %1237, %v1021
        %v1239 = vpop.permute.xlu0 %1238
        %1242 = vset.pattern.permute.xlu0 0
        %1243 = vperm.xlu0 %1242, %v1022
        %v1244 = vpop.permute.xlu0 %1243
        %1247 = vset.pattern.permute.xlu0 0
        %1248 = vperm.xlu0 %1247, %v1023
        %v1249 = vpop.permute.xlu0 %1248
        %1252 = vset.pattern.permute.xlu0 0
        %1253 = vperm.xlu0 %1252, %v1024
        %v1254 = vpop.permute.xlu0 %1253
        %1257 = vset.pattern.permute.xlu0 0
        %1258 = vperm.xlu0 %1257, %v1025
        %v1259 = vpop.permute.xlu0 %1258
        %1262 = vset.pattern.permute.xlu0 0
        %1263 = vperm.xlu0 %1262, %v1026
        %v1264 = vpop.permute.xlu0 %1263
        %1267 = vset.pattern.permute.xlu0 0
        %1268 = vperm.xlu0 %1267, %v1027
        %v1269 = vpop.permute.xlu0 %1268
        %1272 = vset.pattern.permute.xlu0 0
        %1273 = vperm.xlu0 %1272, %v1028
        %v1274 = vpop.permute.xlu0 %1273
        %1277 = vset.pattern.permute.xlu0 0
        %1278 = vperm.xlu0 %1277, %v1029
        %v1279 = vpop.permute.xlu0 %1278
        %1282 = vset.pattern.permute.xlu0 0
        %1283 = vperm.xlu0 %1282, %v1030
        %v1284 = vpop.permute.xlu0 %1283
        %1287 = vset.pattern.permute.xlu0 0
        %1288 = vperm.xlu0 %1287, %v1031
        %v1289 = vpop.permute.xlu0 %1288
        %1292 = vset.pattern.permute.xlu0 0
        %1293 = vperm.xlu0 %1292, %v1032
        %v1294 = vpop.permute.xlu0 %1293
        %1297 = vset.pattern.permute.xlu0 0
        %1298 = vperm.xlu0 %1297, %v1033
        %v1299 = vpop.permute.xlu0 %1298
        %1302 = vset.pattern.permute.xlu0 0
        %1303 = vperm.xlu0 %1302, %v1034
        %v1304 = vpop.permute.xlu0 %1303
        %1307 = vset.pattern.permute.xlu0 0
        %1308 = vperm.xlu0 %1307, %v1035
        %v1309 = vpop.permute.xlu0 %1308
        %1312 = vset.pattern.permute.xlu0 0
        %1313 = vperm.xlu0 %1312, %v1036
        %v1314 = vpop.permute.xlu0 %1313
        %1317 = vset.pattern.permute.xlu0 0
        %1318 = vperm.xlu0 %1317, %v1037
        %v1319 = vpop.permute.xlu0 %1318
        %v1321 = vperm.slane %v1160, 0
        %v1322 = vmul.f32 %v1164, %v1321
        %v1323 = vmul.f32 %v1169, %v1321
        %v1324 = vmul.f32 %v1174, %v1321
        %v1325 = vmul.f32 %v1179, %v1321
        %v1326 = vmul.f32 %v1184, %v1321
        %v1327 = vmul.f32 %v1189, %v1321
        %v1328 = vmul.f32 %v1194, %v1321
        %v1329 = vmul.f32 %v1199, %v1321
        %v1330 = vmul.f32 %v1204, %v1321
        %v1331 = vmul.f32 %v1209, %v1321
        %v1332 = vmul.f32 %v1214, %v1321
        %v1333 = vmul.f32 %v1219, %v1321
        %v1334 = vmul.f32 %v1224, %v1321
        %v1335 = vmul.f32 %v1229, %v1321
        %v1336 = vmul.f32 %v1234, %v1321
        %v1337 = vmul.f32 %v1239, %v1321
        %v1338 = vmul.f32 %v1244, %v1321
        %v1339 = vmul.f32 %v1249, %v1321
        %v1340 = vmul.f32 %v1254, %v1321
        %v1341 = vmul.f32 %v1259, %v1321
        %v1342 = vmul.f32 %v1264, %v1321
        %v1343 = vmul.f32 %v1269, %v1321
        %v1344 = vmul.f32 %v1274, %v1321
        %v1345 = vmul.f32 %v1279, %v1321
        %v1346 = vmul.f32 %v1284, %v1321
        %v1347 = vmul.f32 %v1289, %v1321
        %v1348 = vmul.f32 %v1294, %v1321
        %v1349 = vmul.f32 %v1299, %v1321
        %v1350 = vmul.f32 %v1304, %v1321
        %v1351 = vmul.f32 %v1309, %v1321
        %v1352 = vmul.f32 %v1314, %v1321
        %v1353 = vmul.f32 %v1319, %v1321
        %v1354 = vsub.f32 %v1322, %v971
        %v1355 = vsub.f32 %v1323, %v972
        %v1356 = vsub.f32 %v1324, %v973
        %v1357 = vsub.f32 %v1325, %v974
        %v1358 = vsub.f32 %v1326, %v975
        %v1359 = vsub.f32 %v1327, %v976
        %v1360 = vsub.f32 %v1328, %v977
        %v1361 = vsub.f32 %v1329, %v978
        %v1362 = vsub.f32 %v1330, %v979
        %v1363 = vsub.f32 %v1331, %v980
        %v1364 = vsub.f32 %v1332, %v981
        %v1365 = vsub.f32 %v1333, %v982
        %v1366 = vsub.f32 %v1334, %v983
        %v1367 = vsub.f32 %v1335, %v984
        %v1368 = vsub.f32 %v1336, %v985
        %v1369 = vsub.f32 %v1337, %v986
        %v1370 = vsub.f32 %v1338, %v987
        %v1371 = vsub.f32 %v1339, %v988
        %v1372 = vsub.f32 %v1340, %v989
        %v1373 = vsub.f32 %v1341, %v990
        %v1374 = vsub.f32 %v1342, %v991
        %v1375 = vsub.f32 %v1343, %v992
        %v1376 = vsub.f32 %v1344, %v993
        %v1377 = vsub.f32 %v1345, %v994
        %v1378 = vsub.f32 %v1346, %v995
        %v1379 = vsub.f32 %v1347, %v996
        %v1380 = vsub.f32 %v1348, %v997
        %v1381 = vsub.f32 %v1349, %v998
        %v1382 = vsub.f32 %v1350, %v999
        %v1383 = vsub.f32 %v1351, %v1000
        %v1384 = vsub.f32 %v1352, %v1001
        %v1385 = vsub.f32 %v1353, %v1002
        %v1386 = vmul.f32 %v1039, %v1354
        %v1387 = vmul.f32 %v1040, %v1355
        %v1388 = vmul.f32 %v1041, %v1356
        %v1389 = vmul.f32 %v1042, %v1357
        %v1390 = vmul.f32 %v1043, %v1358
        %v1391 = vmul.f32 %v1044, %v1359
        %v1392 = vmul.f32 %v1045, %v1360
        %v1393 = vmul.f32 %v1046, %v1361
        %v1394 = vmul.f32 %v1047, %v1362
        %v1395 = vmul.f32 %v1048, %v1363
        %v1396 = vmul.f32 %v1049, %v1364
        %v1397 = vmul.f32 %v1050, %v1365
        %v1398 = vmul.f32 %v1051, %v1366
        %v1399 = vmul.f32 %v1052, %v1367
        %v1400 = vmul.f32 %v1053, %v1368
        %v1401 = vmul.f32 %v1054, %v1369
        %v1402 = vmul.f32 %v1055, %v1370
        %v1403 = vmul.f32 %v1056, %v1371
        %v1404 = vmul.f32 %v1057, %v1372
        %v1405 = vmul.f32 %v1058, %v1373
        %v1406 = vmul.f32 %v1059, %v1374
        %v1407 = vmul.f32 %v1060, %v1375
        %v1408 = vmul.f32 %v1061, %v1376
        %v1409 = vmul.f32 %v1062, %v1377
        %v1410 = vmul.f32 %v1063, %v1378
        %v1411 = vmul.f32 %v1064, %v1379
        %v1412 = vmul.f32 %v1065, %v1380
        %v1413 = vmul.f32 %v1066, %v1381
        %v1414 = vmul.f32 %v1067, %v1382
        %v1415 = vmul.f32 %v1068, %v1383
        %v1416 = vmul.f32 %v1069, %v1384
        %v1417 = vmul.f32 %v1070, %v1385
        %v1418 = vadd.f32 %v971, %v1386
        %v1419 = vadd.f32 %v972, %v1387
        %v1420 = vadd.f32 %v973, %v1388
        %v1421 = vadd.f32 %v974, %v1389
        %v1422 = vadd.f32 %v975, %v1390
        %v1423 = vadd.f32 %v976, %v1391
        %v1424 = vadd.f32 %v977, %v1392
        %v1425 = vadd.f32 %v978, %v1393
        %v1426 = vadd.f32 %v979, %v1394
        %v1427 = vadd.f32 %v980, %v1395
        %v1428 = vadd.f32 %v981, %v1396
        %v1429 = vadd.f32 %v982, %v1397
        %v1430 = vadd.f32 %v983, %v1398
        %v1431 = vadd.f32 %v984, %v1399
        %v1432 = vadd.f32 %v985, %v1400
        %v1433 = vadd.f32 %v986, %v1401
        %v1434 = vadd.f32 %v987, %v1402
        %v1435 = vadd.f32 %v988, %v1403
        %v1436 = vadd.f32 %v989, %v1404
        %v1437 = vadd.f32 %v990, %v1405
        %v1438 = vadd.f32 %v991, %v1406
        %v1439 = vadd.f32 %v992, %v1407
        %v1440 = vadd.f32 %v993, %v1408
        %v1441 = vadd.f32 %v994, %v1409
        %v1442 = vadd.f32 %v995, %v1410
        %v1443 = vadd.f32 %v996, %v1411
        %v1444 = vadd.f32 %v997, %v1412
        %v1445 = vadd.f32 %v998, %v1413
        %v1446 = vadd.f32 %v999, %v1414
        %v1447 = vadd.f32 %v1000, %v1415
        %v1448 = vadd.f32 %v1001, %v1416
        %v1449 = vadd.f32 %v1002, %v1417
        %v1450 = vmax.f32 %v1418, -1.0
        %v1451 = vmax.f32 %v1419, -1.0
        %v1452 = vmax.f32 %v1420, -1.0
        %v1453 = vmax.f32 %v1421, -1.0
        %v1454 = vmax.f32 %v1422, -1.0
        %v1455 = vmax.f32 %v1423, -1.0
        %v1456 = vmax.f32 %v1424, -1.0
        %v1457 = vmax.f32 %v1425, -1.0
        %v1458 = vmax.f32 %v1426, -1.0
        %v1459 = vmax.f32 %v1427, -1.0
        %v1460 = vmax.f32 %v1428, -1.0
        %v1461 = vmax.f32 %v1429, -1.0
        %v1462 = vmax.f32 %v1430, -1.0
        %v1463 = vmax.f32 %v1431, -1.0
        %v1464 = vmax.f32 %v1432, -1.0
        %v1465 = vmax.f32 %v1433, -1.0
        %v1466 = vmax.f32 %v1434, -1.0
        %v1467 = vmax.f32 %v1435, -1.0
        %v1468 = vmax.f32 %v1436, -1.0
        %v1469 = vmax.f32 %v1437, -1.0
        %v1470 = vmax.f32 %v1438, -1.0
        %v1471 = vmax.f32 %v1439, -1.0
        %v1472 = vmax.f32 %v1440, -1.0
        %v1473 = vmax.f32 %v1441, -1.0
        %v1474 = vmax.f32 %v1442, -1.0
        %v1475 = vmax.f32 %v1443, -1.0
        %v1476 = vmax.f32 %v1444, -1.0
        %v1477 = vmax.f32 %v1445, -1.0
        %v1478 = vmax.f32 %v1446, -1.0
        %v1479 = vmax.f32 %v1447, -1.0
        %v1480 = vmax.f32 %v1448, -1.0
        %v1481 = vmax.f32 %v1449, -1.0
        %v1482 = vmin.f32 %v1450, 1.0
        %v1483 = vmin.f32 %v1451, 1.0
        %v1484 = vmin.f32 %v1452, 1.0
        %v1485 = vmin.f32 %v1453, 1.0
        %v1486 = vmin.f32 %v1454, 1.0
        %v1487 = vmin.f32 %v1455, 1.0
        %v1488 = vmin.f32 %v1456, 1.0
        %v1489 = vmin.f32 %v1457, 1.0
        %v1490 = vmin.f32 %v1458, 1.0
        %v1491 = vmin.f32 %v1459, 1.0
        %v1492 = vmin.f32 %v1460, 1.0
        %v1493 = vmin.f32 %v1461, 1.0
        %v1494 = vmin.f32 %v1462, 1.0
        %v1495 = vmin.f32 %v1463, 1.0
        %v1496 = vmin.f32 %v1464, 1.0
        %v1497 = vmin.f32 %v1465, 1.0
        %v1498 = vmin.f32 %v1466, 1.0
        %v1499 = vmin.f32 %v1467, 1.0
        %v1500 = vmin.f32 %v1468, 1.0
        %v1501 = vmin.f32 %v1469, 1.0
        %v1502 = vmin.f32 %v1470, 1.0
        %v1503 = vmin.f32 %v1471, 1.0
        %v1504 = vmin.f32 %v1472, 1.0
        %v1505 = vmin.f32 %v1473, 1.0
        %v1506 = vmin.f32 %v1474, 1.0
        %v1507 = vmin.f32 %v1475, 1.0
        %v1508 = vmin.f32 %v1476, 1.0
        %v1509 = vmin.f32 %v1477, 1.0
        %v1510 = vmin.f32 %v1478, 1.0
        %v1511 = vmin.f32 %v1479, 1.0
        %v1512 = vmin.f32 %v1480, 1.0
        %v1513 = vmin.f32 %v1481, 1.0
        %1514 = vst [vmem:[#allocation2] sm:$0xff] %v1482
        %1515 = vst [vmem:[#allocation2 + $0x8] sm:$0xff] %v1483
        %1516 = vst [vmem:[#allocation2 + $0x10] sm:$0xff] %v1484
        %1517 = vst [vmem:[#allocation2 + $0x18] sm:$0xff] %v1485
        %1518 = vst [vmem:[#allocation2 + $0x20] sm:$0xff] %v1486
        %1519 = vst [vmem:[#allocation2 + $0x28] sm:$0xff] %v1487
        %1520 = vst [vmem:[#allocation2 + $0x30] sm:$0xff] %v1488
        %1521 = vst [vmem:[#allocation2 + $0x38] sm:$0xff] %v1489
        %1522 = vst [vmem:[#allocation2 + $0x40] sm:$0xff] %v1490
        %1523 = vst [vmem:[#allocation2 + $0x48] sm:$0xff] %v1491
        %1524 = vst [vmem:[#allocation2 + $0x50] sm:$0xff] %v1492
        %1525 = vst [vmem:[#allocation2 + $0x58] sm:$0xff] %v1493
        %1526 = vst [vmem:[#allocation2 + $0x60] sm:$0xff] %v1494
        %1527 = vst [vmem:[#allocation2 + $0x68] sm:$0xff] %v1495
        %1528 = vst [vmem:[#allocation2 + $0x70] sm:$0xff] %v1496
        %1529 = vst [vmem:[#allocation2 + $0x78] sm:$0xff] %v1497
        %1530 = vst [vmem:[#allocation2 + $0x80] sm:$0xff] %v1498
        %1531 = vst [vmem:[#allocation2 + $0x88] sm:$0xff] %v1499
        %1532 = vst [vmem:[#allocation2 + $0x90] sm:$0xff] %v1500
        %1533 = vst [vmem:[#allocation2 + $0x98] sm:$0xff] %v1501
        %1534 = vst [vmem:[#allocation2 + $0xa0] sm:$0xff] %v1502
        %1535 = vst [vmem:[#allocation2 + $0xa8] sm:$0xff] %v1503
        %1536 = vst [vmem:[#allocation2 + $0xb0] sm:$0xff] %v1504
        %1537 = vst [vmem:[#allocation2 + $0xb8] sm:$0xff] %v1505
        %1538 = vst [vmem:[#allocation2 + $0xc0] sm:$0xff] %v1506
        %1539 = vst [vmem:[#allocation2 + $0xc8] sm:$0xff] %v1507
        %1540 = vst [vmem:[#allocation2 + $0xd0] sm:$0xff] %v1508
        %1541 = vst [vmem:[#allocation2 + $0xd8] sm:$0xff] %v1509
        %1542 = vst [vmem:[#allocation2 + $0xe0] sm:$0xff] %v1510
        %1543 = vst [vmem:[#allocation2 + $0xe8] sm:$0xff] %v1511
        %1544 = vst [vmem:[#allocation2 + $0xf0] sm:$0xff] %v1512
        %1545 = vst [vmem:[#allocation2 + $0xf8] sm:$0xff] %v1513
        %1546 = vst [vmem:[%s309 + $0x1] sm:$0x1] %v1160
        %v1547 = vld [vmem:[#allocation2] sm:$0xff]
        %v1548 = vld [vmem:[#allocation2 + $0x8] sm:$0xff]
        %v1549 = vld [vmem:[#allocation2 + $0x10] sm:$0xff]
        %v1550 = vld [vmem:[#allocation2 + $0x18] sm:$0xff]
        %v1551 = vld [vmem:[#allocation2 + $0x20] sm:$0xff]
        %v1552 = vld [vmem:[#allocation2 + $0x28] sm:$0xff]
        %v1553 = vld [vmem:[#allocation2 + $0x30] sm:$0xff]
        %v1554 = vld [vmem:[#allocation2 + $0x38] sm:$0xff]
        %v1555 = vld [vmem:[#allocation2 + $0x40] sm:$0xff]
        %v1556 = vld [vmem:[#allocation2 + $0x48] sm:$0xff]
        %v1557 = vld [vmem:[#allocation2 + $0x50] sm:$0xff]
        %v1558 = vld [vmem:[#allocation2 + $0x58] sm:$0xff]
        %v1559 = vld [vmem:[#allocation2 + $0x60] sm:$0xff]
        %v1560 = vld [vmem:[#allocation2 + $0x68] sm:$0xff]
        %v1561 = vld [vmem:[#allocation2 + $0x70] sm:$0xff]
        %v1562 = vld [vmem:[#allocation2 + $0x78] sm:$0xff]
        %v1563 = vld [vmem:[#allocation2 + $0x80] sm:$0xff]
        %v1564 = vld [vmem:[#allocation2 + $0x88] sm:$0xff]
        %v1565 = vld [vmem:[#allocation2 + $0x90] sm:$0xff]
        %v1566 = vld [vmem:[#allocation2 + $0x98] sm:$0xff]
        %v1567 = vld [vmem:[#allocation2 + $0xa0] sm:$0xff]
        %v1568 = vld [vmem:[#allocation2 + $0xa8] sm:$0xff]
        %v1569 = vld [vmem:[#allocation2 + $0xb0] sm:$0xff]
        %v1570 = vld [vmem:[#allocation2 + $0xb8] sm:$0xff]
        %v1571 = vld [vmem:[#allocation2 + $0xc0] sm:$0xff]
        %v1572 = vld [vmem:[#allocation2 + $0xc8] sm:$0xff]
        %v1573 = vld [vmem:[#allocation2 + $0xd0] sm:$0xff]
        %v1574 = vld [vmem:[#allocation2 + $0xd8] sm:$0xff]
        %v1575 = vld [vmem:[#allocation2 + $0xe0] sm:$0xff]
        %v1576 = vld [vmem:[#allocation2 + $0xe8] sm:$0xff]
        %v1577 = vld [vmem:[#allocation2 + $0xf0] sm:$0xff]
        %v1578 = vld [vmem:[#allocation2 + $0xf8] sm:$0xff]
        %s1579 = scalar_lea.vmem %s314, 2
        %v1580 = vld [vmem:[%s1579] ss:$8 sm:$0x3]
        %s1581 = scalar_lea.vmem %s320, 512
        %v1582 = vld [vmem:[%s1581] sm:$0xff]
        %v1583 = vld [vmem:[%s1581 + $0x8] sm:$0xff]
        %v1584 = vld [vmem:[%s1581 + $0x10] sm:$0xff]
        %v1585 = vld [vmem:[%s1581 + $0x18] sm:$0xff]
        %v1586 = vld [vmem:[%s1581 + $0x20] sm:$0xff]
        %v1587 = vld [vmem:[%s1581 + $0x28] sm:$0xff]
        %v1588 = vld [vmem:[%s1581 + $0x30] sm:$0xff]
        %v1589 = vld [vmem:[%s1581 + $0x38] sm:$0xff]
        %v1590 = vld [vmem:[%s1581 + $0x40] sm:$0xff]
        %v1591 = vld [vmem:[%s1581 + $0x48] sm:$0xff]
        %v1592 = vld [vmem:[%s1581 + $0x50] sm:$0xff]
        %v1593 = vld [vmem:[%s1581 + $0x58] sm:$0xff]
        %v1594 = vld [vmem:[%s1581 + $0x60] sm:$0xff]
        %v1595 = vld [vmem:[%s1581 + $0x68] sm:$0xff]
        %v1596 = vld [vmem:[%s1581 + $0x70] sm:$0xff]
        %v1597 = vld [vmem:[%s1581 + $0x78] sm:$0xff]
        %v1598 = vld [vmem:[%s1581 + $0x80] sm:$0xff]
        %v1599 = vld [vmem:[%s1581 + $0x88] sm:$0xff]
        %v1600 = vld [vmem:[%s1581 + $0x90] sm:$0xff]
        %v1601 = vld [vmem:[%s1581 + $0x98] sm:$0xff]
        %v1602 = vld [vmem:[%s1581 + $0xa0] sm:$0xff]
        %v1603 = vld [vmem:[%s1581 + $0xa8] sm:$0xff]
        %v1604 = vld [vmem:[%s1581 + $0xb0] sm:$0xff]
        %v1605 = vld [vmem:[%s1581 + $0xb8] sm:$0xff]
        %v1606 = vld [vmem:[%s1581 + $0xc0] sm:$0xff]
        %v1607 = vld [vmem:[%s1581 + $0xc8] sm:$0xff]
        %v1608 = vld [vmem:[%s1581 + $0xd0] sm:$0xff]
        %v1609 = vld [vmem:[%s1581 + $0xd8] sm:$0xff]
        %v1610 = vld [vmem:[%s1581 + $0xe0] sm:$0xff]
        %v1611 = vld [vmem:[%s1581 + $0xe8] sm:$0xff]
        %v1612 = vld [vmem:[%s1581 + $0xf0] sm:$0xff]
        %v1613 = vld [vmem:[%s1581 + $0xf8] sm:$0xff]
        %s1614 = scalar_lea.vmem %s327, 512
        %v1615 = vld [vmem:[%s1614] sm:$0xff]
        %v1616 = vld [vmem:[%s1614 + $0x8] sm:$0xff]
        %v1617 = vld [vmem:[%s1614 + $0x10] sm:$0xff]
        %v1618 = vld [vmem:[%s1614 + $0x18] sm:$0xff]
        %v1619 = vld [vmem:[%s1614 + $0x20] sm:$0xff]
        %v1620 = vld [vmem:[%s1614 + $0x28] sm:$0xff]
        %v1621 = vld [vmem:[%s1614 + $0x30] sm:$0xff]
        %v1622 = vld [vmem:[%s1614 + $0x38] sm:$0xff]
        %v1623 = vld [vmem:[%s1614 + $0x40] sm:$0xff]
        %v1624 = vld [vmem:[%s1614 + $0x48] sm:$0xff]
        %v1625 = vld [vmem:[%s1614 + $0x50] sm:$0xff]
        %v1626 = vld [vmem:[%s1614 + $0x58] sm:$0xff]
        %v1627 = vld [vmem:[%s1614 + $0x60] sm:$0xff]
        %v1628 = vld [vmem:[%s1614 + $0x68] sm:$0xff]
        %v1629 = vld [vmem:[%s1614 + $0x70] sm:$0xff]
        %v1630 = vld [vmem:[%s1614 + $0x78] sm:$0xff]
        %v1631 = vld [vmem:[%s1614 + $0x80] sm:$0xff]
        %v1632 = vld [vmem:[%s1614 + $0x88] sm:$0xff]
        %v1633 = vld [vmem:[%s1614 + $0x90] sm:$0xff]
        %v1634 = vld [vmem:[%s1614 + $0x98] sm:$0xff]
        %v1635 = vld [vmem:[%s1614 + $0xa0] sm:$0xff]
        %v1636 = vld [vmem:[%s1614 + $0xa8] sm:$0xff]
        %v1637 = vld [vmem:[%s1614 + $0xb0] sm:$0xff]
        %v1638 = vld [vmem:[%s1614 + $0xb8] sm:$0xff]
        %v1639 = vld [vmem:[%s1614 + $0xc0] sm:$0xff]
        %v1640 = vld [vmem:[%s1614 + $0xc8] sm:$0xff]
        %v1641 = vld [vmem:[%s1614 + $0xd0] sm:$0xff]
        %v1642 = vld [vmem:[%s1614 + $0xd8] sm:$0xff]
        %v1643 = vld [vmem:[%s1614 + $0xe0] sm:$0xff]
        %v1644 = vld [vmem:[%s1614 + $0xe8] sm:$0xff]
        %v1645 = vld [vmem:[%s1614 + $0xf0] sm:$0xff]
        %v1646 = vld [vmem:[%s1614 + $0xf8] sm:$0xff]
        %v1647 = vld [vmem:[%s260 + $0x2] sm:$0x1]
        %v1648 = vmul.f32 %v365, %v1547
        %v1649 = vmul.f32 %v366, %v1548
        %v1650 = vmul.f32 %v367, %v1549
        %v1651 = vmul.f32 %v368, %v1550
        %v1652 = vmul.f32 %v369, %v1551
        %v1653 = vmul.f32 %v370, %v1552
        %v1654 = vmul.f32 %v371, %v1553
        %v1655 = vmul.f32 %v372, %v1554
        %v1656 = vmul.f32 %v373, %v1555
        %v1657 = vmul.f32 %v374, %v1556
        %v1658 = vmul.f32 %v375, %v1557
        %v1659 = vmul.f32 %v376, %v1558
        %v1660 = vmul.f32 %v377, %v1559
        %v1661 = vmul.f32 %v378, %v1560
        %v1662 = vmul.f32 %v379, %v1561
        %v1663 = vmul.f32 %v380, %v1562
        %v1664 = vmul.f32 %v381, %v1563
        %v1665 = vmul.f32 %v382, %v1564
        %v1666 = vmul.f32 %v383, %v1565
        %v1667 = vmul.f32 %v384, %v1566
        %v1668 = vmul.f32 %v385, %v1567
        %v1669 = vmul.f32 %v386, %v1568
        %v1670 = vmul.f32 %v387, %v1569
        %v1671 = vmul.f32 %v388, %v1570
        %v1672 = vmul.f32 %v389, %v1571
        %v1673 = vmul.f32 %v390, %v1572
        %v1674 = vmul.f32 %v391, %v1573
        %v1675 = vmul.f32 %v392, %v1574
        %v1676 = vmul.f32 %v393, %v1575
        %v1677 = vmul.f32 %v394, %v1576
        %v1678 = vmul.f32 %v395, %v1577
        %v1679 = vmul.f32 %v396, %v1578
        %v1681 = vperm.slane %v1580, 0
        %v1682 = vperm.slane %v1580, 1
        %1685 = vmatpush.msra.mxu0 %v1663
        %1686 = vmatpush.msra.mxu0 %v1662
        %1687 = vmatpush.msra.mxu0 %v1661
        %1688 = vmatpush.msra.mxu0 %v1660
        %1689 = vmatpush.msra.mxu0 %v1659
        %1690 = vmatpush.msra.mxu0 %v1658
        %1691 = vmatpush.msra.mxu0 %v1657
        %1692 = vmatpush.msra.mxu0 %v1656
        %1693 = vmatpush.msra.mxu0 %v1655
        %1694 = vmatpush.msra.mxu0 %v1654
        %1695 = vmatpush.msra.mxu0 %v1653
        %1696 = vmatpush.msra.mxu0 %v1652
        %1697 = vmatpush.msra.mxu0 %v1651
        %1698 = vmatpush.msra.mxu0 %v1650
        %1699 = vmatpush.msra.mxu0 %v1649
        %1700 = vmatpush.msra.mxu0 %v1648
        %1701 = vmatmul.f32.gmra.mxu0 %v1681
        %v1702 = vpop.f32.mrf.mxu0
        %v1703 = vadd.f32 0.0, %v1702
        %1704 = vdwg.mxu0
        %1705 = vmatpush.msra.mxu0 %v1679
        %1706 = vmatpush.msra.mxu0 %v1678
        %1707 = vmatpush.msra.mxu0 %v1677
        %1708 = vmatpush.msra.mxu0 %v1676
        %1709 = vmatpush.msra.mxu0 %v1675
        %1710 = vmatpush.msra.mxu0 %v1674
        %1711 = vmatpush.msra.mxu0 %v1673
        %1712 = vmatpush.msra.mxu0 %v1672
        %1713 = vmatpush.msra.mxu0 %v1671
        %1714 = vmatpush.msra.mxu0 %v1670
        %1715 = vmatpush.msra.mxu0 %v1669
        %1716 = vmatpush.msra.mxu0 %v1668
        %1717 = vmatpush.msra.mxu0 %v1667
        %1718 = vmatpush.msra.mxu0 %v1666
        %1719 = vmatpush.msra.mxu0 %v1665
        %1720 = vmatpush.msra.mxu0 %v1664
        %1721 = vmatmul.f32.gmra.mxu0 %v1682
        %v1722 = vpop.f32.mrf.mxu0
        %v1723 = vadd.f32 %v1703, %v1722
        %1724 = vdwg.mxu0
        %v1725 = vadd.f32 %v1647, %v1723
        %v1726 = vsel %vm573, %v1725, -inf
        %1727 = vmax.xlane.f32.xlu0 %v1726
        %v1728 = vpop.xlane.xlu0 %1727
        %v1729 = vsub.f32 %v1725, %v1728
        %v1730 = vmul.f32 %v1729, 1.442695
        %v1731 = vpow.pop %v1730
        %v1732 = vsel %vm573, %v1731, 0.0
        %1733 = vadd.xlane.f32.xlu0 %v1732
        %v1734 = vpop.xlane.xlu0 %1733
        %v1735 = vrcp.pop %v1734
        %v1736 = vmul.f32 %v1731, %v1735
        %1738 = vset.pattern.permute.xlu0 0
        %1739 = vperm.xlu0 %1738, %v1582
        %v1740 = vpop.permute.xlu0 %1739
        %1743 = vset.pattern.permute.xlu0 0
        %1744 = vperm.xlu0 %1743, %v1583
        %v1745 = vpop.permute.xlu0 %1744
        %1748 = vset.pattern.permute.xlu0 0
        %1749 = vperm.xlu0 %1748, %v1584
        %v1750 = vpop.permute.xlu0 %1749
        %1753 = vset.pattern.permute.xlu0 0
        %1754 = vperm.xlu0 %1753, %v1585
        %v1755 = vpop.permute.xlu0 %1754
        %1758 = vset.pattern.permute.xlu0 0
        %1759 = vperm.xlu0 %1758, %v1586
        %v1760 = vpop.permute.xlu0 %1759
        %1763 = vset.pattern.permute.xlu0 0
        %1764 = vperm.xlu0 %1763, %v1587
        %v1765 = vpop.permute.xlu0 %1764
        %1768 = vset.pattern.permute.xlu0 0
        %1769 = vperm.xlu0 %1768, %v1588
        %v1770 = vpop.permute.xlu0 %1769
        %1773 = vset.pattern.permute.xlu0 0
        %1774 = vperm.xlu0 %1773, %v1589
        %v1775 = vpop.permute.xlu0 %1774
        %1778 = vset.pattern.permute.xlu0 0
        %1779 = vperm.xlu0 %1778, %v1590
        %v1780 = vpop.permute.xlu0 %1779
        %1783 = vset.pattern.permute.xlu0 0
        %1784 = vperm.xlu0 %1783, %v1591
        %v1785 = vpop.permute.xlu0 %1784
        %1788 = vset.pattern.permute.xlu0 0
        %1789 = vperm.xlu0 %1788, %v1592
        %v1790 = vpop.permute.xlu0 %1789
        %1793 = vset.pattern.permute.xlu0 0
        %1794 = vperm.xlu0 %1793, %v1593
        %v1795 = vpop.permute.xlu0 %1794
        %1798 = vset.pattern.permute.xlu0 0
        %1799 = vperm.xlu0 %1798, %v1594
        %v1800 = vpop.permute.xlu0 %1799
        %1803 = vset.pattern.permute.xlu0 0
        %1804 = vperm.xlu0 %1803, %v1595
        %v1805 = vpop.permute.xlu0 %1804
        %1808 = vset.pattern.permute.xlu0 0
        %1809 = vperm.xlu0 %1808, %v1596
        %v1810 = vpop.permute.xlu0 %1809
        %1813 = vset.pattern.permute.xlu0 0
        %1814 = vperm.xlu0 %1813, %v1597
        %v1815 = vpop.permute.xlu0 %1814
        %1818 = vset.pattern.permute.xlu0 0
        %1819 = vperm.xlu0 %1818, %v1598
        %v1820 = vpop.permute.xlu0 %1819
        %1823 = vset.pattern.permute.xlu0 0
        %1824 = vperm.xlu0 %1823, %v1599
        %v1825 = vpop.permute.xlu0 %1824
        %1828 = vset.pattern.permute.xlu0 0
        %1829 = vperm.xlu0 %1828, %v1600
        %v1830 = vpop.permute.xlu0 %1829
        %1833 = vset.pattern.permute.xlu0 0
        %1834 = vperm.xlu0 %1833, %v1601
        %v1835 = vpop.permute.xlu0 %1834
        %1838 = vset.pattern.permute.xlu0 0
        %1839 = vperm.xlu0 %1838, %v1602
        %v1840 = vpop.permute.xlu0 %1839
        %1843 = vset.pattern.permute.xlu0 0
        %1844 = vperm.xlu0 %1843, %v1603
        %v1845 = vpop.permute.xlu0 %1844
        %1848 = vset.pattern.permute.xlu0 0
        %1849 = vperm.xlu0 %1848, %v1604
        %v1850 = vpop.permute.xlu0 %1849
        %1853 = vset.pattern.permute.xlu0 0
        %1854 = vperm.xlu0 %1853, %v1605
        %v1855 = vpop.permute.xlu0 %1854
        %1858 = vset.pattern.permute.xlu0 0
        %1859 = vperm.xlu0 %1858, %v1606
        %v1860 = vpop.permute.xlu0 %1859
        %1863 = vset.pattern.permute.xlu0 0
        %1864 = vperm.xlu0 %1863, %v1607
        %v1865 = vpop.permute.xlu0 %1864
        %1868 = vset.pattern.permute.xlu0 0
        %1869 = vperm.xlu0 %1868, %v1608
        %v1870 = vpop.permute.xlu0 %1869
        %1873 = vset.pattern.permute.xlu0 0
        %1874 = vperm.xlu0 %1873, %v1609
        %v1875 = vpop.permute.xlu0 %1874
        %1878 = vset.pattern.permute.xlu0 0
        %1879 = vperm.xlu0 %1878, %v1610
        %v1880 = vpop.permute.xlu0 %1879
        %1883 = vset.pattern.permute.xlu0 0
        %1884 = vperm.xlu0 %1883, %v1611
        %v1885 = vpop.permute.xlu0 %1884
        %1888 = vset.pattern.permute.xlu0 0
        %1889 = vperm.xlu0 %1888, %v1612
        %v1890 = vpop.permute.xlu0 %1889
        %1893 = vset.pattern.permute.xlu0 0
        %1894 = vperm.xlu0 %1893, %v1613
        %v1895 = vpop.permute.xlu0 %1894
        %v1897 = vperm.slane %v1736, 0
        %v1898 = vmul.f32 %v1740, %v1897
        %v1899 = vmul.f32 %v1745, %v1897
        %v1900 = vmul.f32 %v1750, %v1897
        %v1901 = vmul.f32 %v1755, %v1897
        %v1902 = vmul.f32 %v1760, %v1897
        %v1903 = vmul.f32 %v1765, %v1897
        %v1904 = vmul.f32 %v1770, %v1897
        %v1905 = vmul.f32 %v1775, %v1897
        %v1906 = vmul.f32 %v1780, %v1897
        %v1907 = vmul.f32 %v1785, %v1897
        %v1908 = vmul.f32 %v1790, %v1897
        %v1909 = vmul.f32 %v1795, %v1897
        %v1910 = vmul.f32 %v1800, %v1897
        %v1911 = vmul.f32 %v1805, %v1897
        %v1912 = vmul.f32 %v1810, %v1897
        %v1913 = vmul.f32 %v1815, %v1897
        %v1914 = vmul.f32 %v1820, %v1897
        %v1915 = vmul.f32 %v1825, %v1897
        %v1916 = vmul.f32 %v1830, %v1897
        %v1917 = vmul.f32 %v1835, %v1897
        %v1918 = vmul.f32 %v1840, %v1897
        %v1919 = vmul.f32 %v1845, %v1897
        %v1920 = vmul.f32 %v1850, %v1897
        %v1921 = vmul.f32 %v1855, %v1897
        %v1922 = vmul.f32 %v1860, %v1897
        %v1923 = vmul.f32 %v1865, %v1897
        %v1924 = vmul.f32 %v1870, %v1897
        %v1925 = vmul.f32 %v1875, %v1897
        %v1926 = vmul.f32 %v1880, %v1897
        %v1927 = vmul.f32 %v1885, %v1897
        %v1928 = vmul.f32 %v1890, %v1897
        %v1929 = vmul.f32 %v1895, %v1897
        %v1930 = vsub.f32 %v1898, %v1547
        %v1931 = vsub.f32 %v1899, %v1548
        %v1932 = vsub.f32 %v1900, %v1549
        %v1933 = vsub.f32 %v1901, %v1550
        %v1934 = vsub.f32 %v1902, %v1551
        %v1935 = vsub.f32 %v1903, %v1552
        %v1936 = vsub.f32 %v1904, %v1553
        %v1937 = vsub.f32 %v1905, %v1554
        %v1938 = vsub.f32 %v1906, %v1555
        %v1939 = vsub.f32 %v1907, %v1556
        %v1940 = vsub.f32 %v1908, %v1557
        %v1941 = vsub.f32 %v1909, %v1558
        %v1942 = vsub.f32 %v1910, %v1559
        %v1943 = vsub.f32 %v1911, %v1560
        %v1944 = vsub.f32 %v1912, %v1561
        %v1945 = vsub.f32 %v1913, %v1562
        %v1946 = vsub.f32 %v1914, %v1563
        %v1947 = vsub.f32 %v1915, %v1564
        %v1948 = vsub.f32 %v1916, %v1565
        %v1949 = vsub.f32 %v1917, %v1566
        %v1950 = vsub.f32 %v1918, %v1567
        %v1951 = vsub.f32 %v1919, %v1568
        %v1952 = vsub.f32 %v1920, %v1569
        %v1953 = vsub.f32 %v1921, %v1570
        %v1954 = vsub.f32 %v1922, %v1571
        %v1955 = vsub.f32 %v1923, %v1572
        %v1956 = vsub.f32 %v1924, %v1573
        %v1957 = vsub.f32 %v1925, %v1574
        %v1958 = vsub.f32 %v1926, %v1575
        %v1959 = vsub.f32 %v1927, %v1576
        %v1960 = vsub.f32 %v1928, %v1577
        %v1961 = vsub.f32 %v1929, %v1578
        %v1962 = vmul.f32 %v1615, %v1930
        %v1963 = vmul.f32 %v1616, %v1931
        %v1964 = vmul.f32 %v1617, %v1932
        %v1965 = vmul.f32 %v1618, %v1933
        %v1966 = vmul.f32 %v1619, %v1934
        %v1967 = vmul.f32 %v1620, %v1935
        %v1968 = vmul.f32 %v1621, %v1936
        %v1969 = vmul.f32 %v1622, %v1937
        %v1970 = vmul.f32 %v1623, %v1938
        %v1971 = vmul.f32 %v1624, %v1939
        %v1972 = vmul.f32 %v1625, %v1940
        %v1973 = vmul.f32 %v1626, %v1941
        %v1974 = vmul.f32 %v1627, %v1942
        %v1975 = vmul.f32 %v1628, %v1943
        %v1976 = vmul.f32 %v1629, %v1944
        %v1977 = vmul.f32 %v1630, %v1945
        %v1978 = vmul.f32 %v1631, %v1946
        %v1979 = vmul.f32 %v1632, %v1947
        %v1980 = vmul.f32 %v1633, %v1948
        %v1981 = vmul.f32 %v1634, %v1949
        %v1982 = vmul.f32 %v1635, %v1950
        %v1983 = vmul.f32 %v1636, %v1951
        %v1984 = vmul.f32 %v1637, %v1952
        %v1985 = vmul.f32 %v1638, %v1953
        %v1986 = vmul.f32 %v1639, %v1954
        %v1987 = vmul.f32 %v1640, %v1955
        %v1988 = vmul.f32 %v1641, %v1956
        %v1989 = vmul.f32 %v1642, %v1957
        %v1990 = vmul.f32 %v1643, %v1958
        %v1991 = vmul.f32 %v1644, %v1959
        %v1992 = vmul.f32 %v1645, %v1960
        %v1993 = vmul.f32 %v1646, %v1961
        %v1994 = vadd.f32 %v1547, %v1962
        %v1995 = vadd.f32 %v1548, %v1963
        %v1996 = vadd.f32 %v1549, %v1964
        %v1997 = vadd.f32 %v1550, %v1965
        %v1998 = vadd.f32 %v1551, %v1966
        %v1999 = vadd.f32 %v1552, %v1967
        %v2000 = vadd.f32 %v1553, %v1968
        %v2001 = vadd.f32 %v1554, %v1969
        %v2002 = vadd.f32 %v1555, %v1970
        %v2003 = vadd.f32 %v1556, %v1971
        %v2004 = vadd.f32 %v1557, %v1972
        %v2005 = vadd.f32 %v1558, %v1973
        %v2006 = vadd.f32 %v1559, %v1974
        %v2007 = vadd.f32 %v1560, %v1975
        %v2008 = vadd.f32 %v1561, %v1976
        %v2009 = vadd.f32 %v1562, %v1977
        %v2010 = vadd.f32 %v1563, %v1978
        %v2011 = vadd.f32 %v1564, %v1979
        %v2012 = vadd.f32 %v1565, %v1980
        %v2013 = vadd.f32 %v1566, %v1981
        %v2014 = vadd.f32 %v1567, %v1982
        %v2015 = vadd.f32 %v1568, %v1983
        %v2016 = vadd.f32 %v1569, %v1984
        %v2017 = vadd.f32 %v1570, %v1985
        %v2018 = vadd.f32 %v1571, %v1986
        %v2019 = vadd.f32 %v1572, %v1987
        %v2020 = vadd.f32 %v1573, %v1988
        %v2021 = vadd.f32 %v1574, %v1989
        %v2022 = vadd.f32 %v1575, %v1990
        %v2023 = vadd.f32 %v1576, %v1991
        %v2024 = vadd.f32 %v1577, %v1992
        %v2025 = vadd.f32 %v1578, %v1993
        %v2026 = vmax.f32 %v1994, -1.0
        %v2027 = vmax.f32 %v1995, -1.0
        %v2028 = vmax.f32 %v1996, -1.0
        %v2029 = vmax.f32 %v1997, -1.0
        %v2030 = vmax.f32 %v1998, -1.0
        %v2031 = vmax.f32 %v1999, -1.0
        %v2032 = vmax.f32 %v2000, -1.0
        %v2033 = vmax.f32 %v2001, -1.0
        %v2034 = vmax.f32 %v2002, -1.0
        %v2035 = vmax.f32 %v2003, -1.0
        %v2036 = vmax.f32 %v2004, -1.0
        %v2037 = vmax.f32 %v2005, -1.0
        %v2038 = vmax.f32 %v2006, -1.0
        %v2039 = vmax.f32 %v2007, -1.0
        %v2040 = vmax.f32 %v2008, -1.0
        %v2041 = vmax.f32 %v2009, -1.0
        %v2042 = vmax.f32 %v2010, -1.0
        %v2043 = vmax.f32 %v2011, -1.0
        %v2044 = vmax.f32 %v2012, -1.0
        %v2045 = vmax.f32 %v2013, -1.0
        %v2046 = vmax.f32 %v2014, -1.0
        %v2047 = vmax.f32 %v2015, -1.0
        %v2048 = vmax.f32 %v2016, -1.0
        %v2049 = vmax.f32 %v2017, -1.0
        %v2050 = vmax.f32 %v2018, -1.0
        %v2051 = vmax.f32 %v2019, -1.0
        %v2052 = vmax.f32 %v2020, -1.0
        %v2053 = vmax.f32 %v2021, -1.0
        %v2054 = vmax.f32 %v2022, -1.0
        %v2055 = vmax.f32 %v2023, -1.0
        %v2056 = vmax.f32 %v2024, -1.0
        %v2057 = vmax.f32 %v2025, -1.0
        %v2058 = vmin.f32 %v2026, 1.0
        %v2059 = vmin.f32 %v2027, 1.0
        %v2060 = vmin.f32 %v2028, 1.0
        %v2061 = vmin.f32 %v2029, 1.0
        %v2062 = vmin.f32 %v2030, 1.0
        %v2063 = vmin.f32 %v2031, 1.0
        %v2064 = vmin.f32 %v2032, 1.0
        %v2065 = vmin.f32 %v2033, 1.0
        %v2066 = vmin.f32 %v2034, 1.0
        %v2067 = vmin.f32 %v2035, 1.0
        %v2068 = vmin.f32 %v2036, 1.0
        %v2069 = vmin.f32 %v2037, 1.0
        %v2070 = vmin.f32 %v2038, 1.0
        %v2071 = vmin.f32 %v2039, 1.0
        %v2072 = vmin.f32 %v2040, 1.0
        %v2073 = vmin.f32 %v2041, 1.0
        %v2074 = vmin.f32 %v2042, 1.0
        %v2075 = vmin.f32 %v2043, 1.0
        %v2076 = vmin.f32 %v2044, 1.0
        %v2077 = vmin.f32 %v2045, 1.0
        %v2078 = vmin.f32 %v2046, 1.0
        %v2079 = vmin.f32 %v2047, 1.0
        %v2080 = vmin.f32 %v2048, 1.0
        %v2081 = vmin.f32 %v2049, 1.0
        %v2082 = vmin.f32 %v2050, 1.0
        %v2083 = vmin.f32 %v2051, 1.0
        %v2084 = vmin.f32 %v2052, 1.0
        %v2085 = vmin.f32 %v2053, 1.0
        %v2086 = vmin.f32 %v2054, 1.0
        %v2087 = vmin.f32 %v2055, 1.0
        %v2088 = vmin.f32 %v2056, 1.0
        %v2089 = vmin.f32 %v2057, 1.0
        %2090 = vst [vmem:[#allocation2] sm:$0xff] %v2058
        %2091 = vst [vmem:[#allocation2 + $0x8] sm:$0xff] %v2059
        %2092 = vst [vmem:[#allocation2 + $0x10] sm:$0xff] %v2060
        %2093 = vst [vmem:[#allocation2 + $0x18] sm:$0xff] %v2061
        %2094 = vst [vmem:[#allocation2 + $0x20] sm:$0xff] %v2062
        %2095 = vst [vmem:[#allocation2 + $0x28] sm:$0xff] %v2063
        %2096 = vst [vmem:[#allocation2 + $0x30] sm:$0xff] %v2064
        %2097 = vst [vmem:[#allocation2 + $0x38] sm:$0xff] %v2065
        %2098 = vst [vmem:[#allocation2 + $0x40] sm:$0xff] %v2066
        %2099 = vst [vmem:[#allocation2 + $0x48] sm:$0xff] %v2067
        %2100 = vst [vmem:[#allocation2 + $0x50] sm:$0xff] %v2068
        %2101 = vst [vmem:[#allocation2 + $0x58] sm:$0xff] %v2069
        %2102 = vst [vmem:[#allocation2 + $0x60] sm:$0xff] %v2070
        %2103 = vst [vmem:[#allocation2 + $0x68] sm:$0xff] %v2071
        %2104 = vst [vmem:[#allocation2 + $0x70] sm:$0xff] %v2072
        %2105 = vst [vmem:[#allocation2 + $0x78] sm:$0xff] %v2073
        %2106 = vst [vmem:[#allocation2 + $0x80] sm:$0xff] %v2074
        %2107 = vst [vmem:[#allocation2 + $0x88] sm:$0xff] %v2075
        %2108 = vst [vmem:[#allocation2 + $0x90] sm:$0xff] %v2076
        %2109 = vst [vmem:[#allocation2 + $0x98] sm:$0xff] %v2077
        %2110 = vst [vmem:[#allocation2 + $0xa0] sm:$0xff] %v2078
        %2111 = vst [vmem:[#allocation2 + $0xa8] sm:$0xff] %v2079
        %2112 = vst [vmem:[#allocation2 + $0xb0] sm:$0xff] %v2080
        %2113 = vst [vmem:[#allocation2 + $0xb8] sm:$0xff] %v2081
        %2114 = vst [vmem:[#allocation2 + $0xc0] sm:$0xff] %v2082
        %2115 = vst [vmem:[#allocation2 + $0xc8] sm:$0xff] %v2083
        %2116 = vst [vmem:[#allocation2 + $0xd0] sm:$0xff] %v2084
        %2117 = vst [vmem:[#allocation2 + $0xd8] sm:$0xff] %v2085
        %2118 = vst [vmem:[#allocation2 + $0xe0] sm:$0xff] %v2086
        %2119 = vst [vmem:[#allocation2 + $0xe8] sm:$0xff] %v2087
        %2120 = vst [vmem:[#allocation2 + $0xf0] sm:$0xff] %v2088
        %2121 = vst [vmem:[#allocation2 + $0xf8] sm:$0xff] %v2089
        %2122 = vst [vmem:[%s309 + $0x2] sm:$0x1] %v1736
        %v2123 = vld [vmem:[#allocation2] sm:$0xff]
        %v2124 = vld [vmem:[#allocation2 + $0x8] sm:$0xff]
        %v2125 = vld [vmem:[#allocation2 + $0x10] sm:$0xff]
        %v2126 = vld [vmem:[#allocation2 + $0x18] sm:$0xff]
        %v2127 = vld [vmem:[#allocation2 + $0x20] sm:$0xff]
        %v2128 = vld [vmem:[#allocation2 + $0x28] sm:$0xff]
        %v2129 = vld [vmem:[#allocation2 + $0x30] sm:$0xff]
        %v2130 = vld [vmem:[#allocation2 + $0x38] sm:$0xff]
        %v2131 = vld [vmem:[#allocation2 + $0x40] sm:$0xff]
        %v2132 = vld [vmem:[#allocation2 + $0x48] sm:$0xff]
        %v2133 = vld [vmem:[#allocation2 + $0x50] sm:$0xff]
        %v2134 = vld [vmem:[#allocation2 + $0x58] sm:$0xff]
        %v2135 = vld [vmem:[#allocation2 + $0x60] sm:$0xff]
        %v2136 = vld [vmem:[#allocation2 + $0x68] sm:$0xff]
        %v2137 = vld [vmem:[#allocation2 + $0x70] sm:$0xff]
        %v2138 = vld [vmem:[#allocation2 + $0x78] sm:$0xff]
        %v2139 = vld [vmem:[#allocation2 + $0x80] sm:$0xff]
        %v2140 = vld [vmem:[#allocation2 + $0x88] sm:$0xff]
        %v2141 = vld [vmem:[#allocation2 + $0x90] sm:$0xff]
        %v2142 = vld [vmem:[#allocation2 + $0x98] sm:$0xff]
        %v2143 = vld [vmem:[#allocation2 + $0xa0] sm:$0xff]
        %v2144 = vld [vmem:[#allocation2 + $0xa8] sm:$0xff]
        %v2145 = vld [vmem:[#allocation2 + $0xb0] sm:$0xff]
        %v2146 = vld [vmem:[#allocation2 + $0xb8] sm:$0xff]
        %v2147 = vld [vmem:[#allocation2 + $0xc0] sm:$0xff]
        %v2148 = vld [vmem:[#allocation2 + $0xc8] sm:$0xff]
        %v2149 = vld [vmem:[#allocation2 + $0xd0] sm:$0xff]
        %v2150 = vld [vmem:[#allocation2 + $0xd8] sm:$0xff]
        %v2151 = vld [vmem:[#allocation2 + $0xe0] sm:$0xff]
        %v2152 = vld [vmem:[#allocation2 + $0xe8] sm:$0xff]
        %v2153 = vld [vmem:[#allocation2 + $0xf0] sm:$0xff]
        %v2154 = vld [vmem:[#allocation2 + $0xf8] sm:$0xff]
        %s2155 = scalar_lea.vmem %s314, 3
        %v2156 = vld [vmem:[%s2155] ss:$8 sm:$0x3]
        %s2157 = scalar_lea.vmem %s320, 768
        %v2158 = vld [vmem:[%s2157] sm:$0xff]
        %v2159 = vld [vmem:[%s2157 + $0x8] sm:$0xff]
        %v2160 = vld [vmem:[%s2157 + $0x10] sm:$0xff]
        %v2161 = vld [vmem:[%s2157 + $0x18] sm:$0xff]
        %v2162 = vld [vmem:[%s2157 + $0x20] sm:$0xff]
        %v2163 = vld [vmem:[%s2157 + $0x28] sm:$0xff]
        %v2164 = vld [vmem:[%s2157 + $0x30] sm:$0xff]
        %v2165 = vld [vmem:[%s2157 + $0x38] sm:$0xff]
        %v2166 = vld [vmem:[%s2157 + $0x40] sm:$0xff]
        %v2167 = vld [vmem:[%s2157 + $0x48] sm:$0xff]
        %v2168 = vld [vmem:[%s2157 + $0x50] sm:$0xff]
        %v2169 = vld [vmem:[%s2157 + $0x58] sm:$0xff]
        %v2170 = vld [vmem:[%s2157 + $0x60] sm:$0xff]
        %v2171 = vld [vmem:[%s2157 + $0x68] sm:$0xff]
        %v2172 = vld [vmem:[%s2157 + $0x70] sm:$0xff]
        %v2173 = vld [vmem:[%s2157 + $0x78] sm:$0xff]
        %v2174 = vld [vmem:[%s2157 + $0x80] sm:$0xff]
        %v2175 = vld [vmem:[%s2157 + $0x88] sm:$0xff]
        %v2176 = vld [vmem:[%s2157 + $0x90] sm:$0xff]
        %v2177 = vld [vmem:[%s2157 + $0x98] sm:$0xff]
        %v2178 = vld [vmem:[%s2157 + $0xa0] sm:$0xff]
        %v2179 = vld [vmem:[%s2157 + $0xa8] sm:$0xff]
        %v2180 = vld [vmem:[%s2157 + $0xb0] sm:$0xff]
        %v2181 = vld [vmem:[%s2157 + $0xb8] sm:$0xff]
        %v2182 = vld [vmem:[%s2157 + $0xc0] sm:$0xff]
        %v2183 = vld [vmem:[%s2157 + $0xc8] sm:$0xff]
        %v2184 = vld [vmem:[%s2157 + $0xd0] sm:$0xff]
        %v2185 = vld [vmem:[%s2157 + $0xd8] sm:$0xff]
        %v2186 = vld [vmem:[%s2157 + $0xe0] sm:$0xff]
        %v2187 = vld [vmem:[%s2157 + $0xe8] sm:$0xff]
        %v2188 = vld [vmem:[%s2157 + $0xf0] sm:$0xff]
        %v2189 = vld [vmem:[%s2157 + $0xf8] sm:$0xff]
        %s2190 = scalar_lea.vmem %s327, 768
        %v2191 = vld [vmem:[%s2190] sm:$0xff]
        %v2192 = vld [vmem:[%s2190 + $0x8] sm:$0xff]
        %v2193 = vld [vmem:[%s2190 + $0x10] sm:$0xff]
        %v2194 = vld [vmem:[%s2190 + $0x18] sm:$0xff]
        %v2195 = vld [vmem:[%s2190 + $0x20] sm:$0xff]
        %v2196 = vld [vmem:[%s2190 + $0x28] sm:$0xff]
        %v2197 = vld [vmem:[%s2190 + $0x30] sm:$0xff]
        %v2198 = vld [vmem:[%s2190 + $0x38] sm:$0xff]
        %v2199 = vld [vmem:[%s2190 + $0x40] sm:$0xff]
        %v2200 = vld [vmem:[%s2190 + $0x48] sm:$0xff]
        %v2201 = vld [vmem:[%s2190 + $0x50] sm:$0xff]
        %v2202 = vld [vmem:[%s2190 + $0x58] sm:$0xff]
        %v2203 = vld [vmem:[%s2190 + $0x60] sm:$0xff]
        %v2204 = vld [vmem:[%s2190 + $0x68] sm:$0xff]
        %v2205 = vld [vmem:[%s2190 + $0x70] sm:$0xff]
        %v2206 = vld [vmem:[%s2190 + $0x78] sm:$0xff]
        %v2207 = vld [vmem:[%s2190 + $0x80] sm:$0xff]
        %v2208 = vld [vmem:[%s2190 + $0x88] sm:$0xff]
        %v2209 = vld [vmem:[%s2190 + $0x90] sm:$0xff]
        %v2210 = vld [vmem:[%s2190 + $0x98] sm:$0xff]
        %v2211 = vld [vmem:[%s2190 + $0xa0] sm:$0xff]
        %v2212 = vld [vmem:[%s2190 + $0xa8] sm:$0xff]
        %v2213 = vld [vmem:[%s2190 + $0xb0] sm:$0xff]
        %v2214 = vld [vmem:[%s2190 + $0xb8] sm:$0xff]
        %v2215 = vld [vmem:[%s2190 + $0xc0] sm:$0xff]
        %v2216 = vld [vmem:[%s2190 + $0xc8] sm:$0xff]
        %v2217 = vld [vmem:[%s2190 + $0xd0] sm:$0xff]
        %v2218 = vld [vmem:[%s2190 + $0xd8] sm:$0xff]
        %v2219 = vld [vmem:[%s2190 + $0xe0] sm:$0xff]
        %v2220 = vld [vmem:[%s2190 + $0xe8] sm:$0xff]
        %v2221 = vld [vmem:[%s2190 + $0xf0] sm:$0xff]
        %v2222 = vld [vmem:[%s2190 + $0xf8] sm:$0xff]
        %v2223 = vld [vmem:[%s260 + $0x3] sm:$0x1]
        %v2224 = vmul.f32 %v365, %v2123
        %v2225 = vmul.f32 %v366, %v2124
        %v2226 = vmul.f32 %v367, %v2125
        %v2227 = vmul.f32 %v368, %v2126
        %v2228 = vmul.f32 %v369, %v2127
        %v2229 = vmul.f32 %v370, %v2128
        %v2230 = vmul.f32 %v371, %v2129
        %v2231 = vmul.f32 %v372, %v2130
        %v2232 = vmul.f32 %v373, %v2131
        %v2233 = vmul.f32 %v374, %v2132
        %v2234 = vmul.f32 %v375, %v2133
        %v2235 = vmul.f32 %v376, %v2134
        %v2236 = vmul.f32 %v377, %v2135
        %v2237 = vmul.f32 %v378, %v2136
        %v2238 = vmul.f32 %v379, %v2137
        %v2239 = vmul.f32 %v380, %v2138
        %v2240 = vmul.f32 %v381, %v2139
        %v2241 = vmul.f32 %v382, %v2140
        %v2242 = vmul.f32 %v383, %v2141
        %v2243 = vmul.f32 %v384, %v2142
        %v2244 = vmul.f32 %v385, %v2143
        %v2245 = vmul.f32 %v386, %v2144
        %v2246 = vmul.f32 %v387, %v2145
        %v2247 = vmul.f32 %v388, %v2146
        %v2248 = vmul.f32 %v389, %v2147
        %v2249 = vmul.f32 %v390, %v2148
        %v2250 = vmul.f32 %v391, %v2149
        %v2251 = vmul.f32 %v392, %v2150
        %v2252 = vmul.f32 %v393, %v2151
        %v2253 = vmul.f32 %v394, %v2152
        %v2254 = vmul.f32 %v395, %v2153
        %v2255 = vmul.f32 %v396, %v2154
        %v2257 = vperm.slane %v2156, 0
        %v2258 = vperm.slane %v2156, 1
        %2261 = vmatpush.msra.mxu0 %v2239
        %2262 = vmatpush.msra.mxu0 %v2238
        %2263 = vmatpush.msra.mxu0 %v2237
        %2264 = vmatpush.msra.mxu0 %v2236
        %2265 = vmatpush.msra.mxu0 %v2235
        %2266 = vmatpush.msra.mxu0 %v2234
        %2267 = vmatpush.msra.mxu0 %v2233
        %2268 = vmatpush.msra.mxu0 %v2232
        %2269 = vmatpush.msra.mxu0 %v2231
        %2270 = vmatpush.msra.mxu0 %v2230
        %2271 = vmatpush.msra.mxu0 %v2229
        %2272 = vmatpush.msra.mxu0 %v2228
        %2273 = vmatpush.msra.mxu0 %v2227
        %2274 = vmatpush.msra.mxu0 %v2226
        %2275 = vmatpush.msra.mxu0 %v2225
        %2276 = vmatpush.msra.mxu0 %v2224
        %2277 = vmatmul.f32.gmra.mxu0 %v2257
        %v2278 = vpop.f32.mrf.mxu0
        %v2279 = vadd.f32 0.0, %v2278
        %2280 = vdwg.mxu0
        %2281 = vmatpush.msra.mxu0 %v2255
        %2282 = vmatpush.msra.mxu0 %v2254
        %2283 = vmatpush.msra.mxu0 %v2253
        %2284 = vmatpush.msra.mxu0 %v2252
        %2285 = vmatpush.msra.mxu0 %v2251
        %2286 = vmatpush.msra.mxu0 %v2250
        %2287 = vmatpush.msra.mxu0 %v2249
        %2288 = vmatpush.msra.mxu0 %v2248
        %2289 = vmatpush.msra.mxu0 %v2247
        %2290 = vmatpush.msra.mxu0 %v2246
        %2291 = vmatpush.msra.mxu0 %v2245
        %2292 = vmatpush.msra.mxu0 %v2244
        %2293 = vmatpush.msra.mxu0 %v2243
        %2294 = vmatpush.msra.mxu0 %v2242
        %2295 = vmatpush.msra.mxu0 %v2241
        %2296 = vmatpush.msra.mxu0 %v2240
        %2297 = vmatmul.f32.gmra.mxu0 %v2258
        %v2298 = vpop.f32.mrf.mxu0
        %v2299 = vadd.f32 %v2279, %v2298
        %2300 = vdwg.mxu0
        %v2301 = vadd.f32 %v2223, %v2299
        %v2302 = vsel %vm573, %v2301, -inf
        %2303 = vmax.xlane.f32.xlu0 %v2302
        %v2304 = vpop.xlane.xlu0 %2303
        %v2305 = vsub.f32 %v2301, %v2304
        %v2306 = vmul.f32 %v2305, 1.442695
        %v2307 = vpow.pop %v2306
        %v2308 = vsel %vm573, %v2307, 0.0
        %2309 = vadd.xlane.f32.xlu0 %v2308
        %v2310 = vpop.xlane.xlu0 %2309
        %v2311 = vrcp.pop %v2310
        %v2312 = vmul.f32 %v2307, %v2311
        %2314 = vset.pattern.permute.xlu0 0
        %2315 = vperm.xlu0 %2314, %v2158
        %v2316 = vpop.permute.xlu0 %2315
        %2319 = vset.pattern.permute.xlu0 0
        %2320 = vperm.xlu0 %2319, %v2159
        %v2321 = vpop.permute.xlu0 %2320
        %2324 = vset.pattern.permute.xlu0 0
        %2325 = vperm.xlu0 %2324, %v2160
        %v2326 = vpop.permute.xlu0 %2325
        %2329 = vset.pattern.permute.xlu0 0
        %2330 = vperm.xlu0 %2329, %v2161
        %v2331 = vpop.permute.xlu0 %2330
        %2334 = vset.pattern.permute.xlu0 0
        %2335 = vperm.xlu0 %2334, %v2162
        %v2336 = vpop.permute.xlu0 %2335
        %2339 = vset.pattern.permute.xlu0 0
        %2340 = vperm.xlu0 %2339, %v2163
        %v2341 = vpop.permute.xlu0 %2340
        %2344 = vset.pattern.permute.xlu0 0
        %2345 = vperm.xlu0 %2344, %v2164
        %v2346 = vpop.permute.xlu0 %2345
        %2349 = vset.pattern.permute.xlu0 0
        %2350 = vperm.xlu0 %2349, %v2165
        %v2351 = vpop.permute.xlu0 %2350
        %2354 = vset.pattern.permute.xlu0 0
        %2355 = vperm.xlu0 %2354, %v2166
        %v2356 = vpop.permute.xlu0 %2355
        %2359 = vset.pattern.permute.xlu0 0
        %2360 = vperm.xlu0 %2359, %v2167
        %v2361 = vpop.permute.xlu0 %2360
        %2364 = vset.pattern.permute.xlu0 0
        %2365 = vperm.xlu0 %2364, %v2168
        %v2366 = vpop.permute.xlu0 %2365
        %2369 = vset.pattern.permute.xlu0 0
        %2370 = vperm.xlu0 %2369, %v2169
        %v2371 = vpop.permute.xlu0 %2370
        %2374 = vset.pattern.permute.xlu0 0
        %2375 = vperm.xlu0 %2374, %v2170
        %v2376 = vpop.permute.xlu0 %2375
        %2379 = vset.pattern.permute.xlu0 0
        %2380 = vperm.xlu0 %2379, %v2171
        %v2381 = vpop.permute.xlu0 %2380
        %2384 = vset.pattern.permute.xlu0 0
        %2385 = vperm.xlu0 %2384, %v2172
        %v2386 = vpop.permute.xlu0 %2385
        %2389 = vset.pattern.permute.xlu0 0
        %2390 = vperm.xlu0 %2389, %v2173
        %v2391 = vpop.permute.xlu0 %2390
        %2394 = vset.pattern.permute.xlu0 0
        %2395 = vperm.xlu0 %2394, %v2174
        %v2396 = vpop.permute.xlu0 %2395
        %2399 = vset.pattern.permute.xlu0 0
        %2400 = vperm.xlu0 %2399, %v2175
        %v2401 = vpop.permute.xlu0 %2400
        %2404 = vset.pattern.permute.xlu0 0
        %2405 = vperm.xlu0 %2404, %v2176
        %v2406 = vpop.permute.xlu0 %2405
        %2409 = vset.pattern.permute.xlu0 0
        %2410 = vperm.xlu0 %2409, %v2177
        %v2411 = vpop.permute.xlu0 %2410
        %2414 = vset.pattern.permute.xlu0 0
        %2415 = vperm.xlu0 %2414, %v2178
        %v2416 = vpop.permute.xlu0 %2415
        %2419 = vset.pattern.permute.xlu0 0
        %2420 = vperm.xlu0 %2419, %v2179
        %v2421 = vpop.permute.xlu0 %2420
        %2424 = vset.pattern.permute.xlu0 0
        %2425 = vperm.xlu0 %2424, %v2180
        %v2426 = vpop.permute.xlu0 %2425
        %2429 = vset.pattern.permute.xlu0 0
        %2430 = vperm.xlu0 %2429, %v2181
        %v2431 = vpop.permute.xlu0 %2430
        %2434 = vset.pattern.permute.xlu0 0
        %2435 = vperm.xlu0 %2434, %v2182
        %v2436 = vpop.permute.xlu0 %2435
        %2439 = vset.pattern.permute.xlu0 0
        %2440 = vperm.xlu0 %2439, %v2183
        %v2441 = vpop.permute.xlu0 %2440
        %2444 = vset.pattern.permute.xlu0 0
        %2445 = vperm.xlu0 %2444, %v2184
        %v2446 = vpop.permute.xlu0 %2445
        %2449 = vset.pattern.permute.xlu0 0
        %2450 = vperm.xlu0 %2449, %v2185
        %v2451 = vpop.permute.xlu0 %2450
        %2454 = vset.pattern.permute.xlu0 0
        %2455 = vperm.xlu0 %2454, %v2186
        %v2456 = vpop.permute.xlu0 %2455
        %2459 = vset.pattern.permute.xlu0 0
        %2460 = vperm.xlu0 %2459, %v2187
        %v2461 = vpop.permute.xlu0 %2460
        %2464 = vset.pattern.permute.xlu0 0
        %2465 = vperm.xlu0 %2464, %v2188
        %v2466 = vpop.permute.xlu0 %2465
        %2469 = vset.pattern.permute.xlu0 0
        %2470 = vperm.xlu0 %2469, %v2189
        %v2471 = vpop.permute.xlu0 %2470
        %v2473 = vperm.slane %v2312, 0
        %v2474 = vmul.f32 %v2316, %v2473
        %v2475 = vmul.f32 %v2321, %v2473
        %v2476 = vmul.f32 %v2326, %v2473
        %v2477 = vmul.f32 %v2331, %v2473
        %v2478 = vmul.f32 %v2336, %v2473
        %v2479 = vmul.f32 %v2341, %v2473
        %v2480 = vmul.f32 %v2346, %v2473
        %v2481 = vmul.f32 %v2351, %v2473
        %v2482 = vmul.f32 %v2356, %v2473
        %v2483 = vmul.f32 %v2361, %v2473
        %v2484 = vmul.f32 %v2366, %v2473
        %v2485 = vmul.f32 %v2371, %v2473
        %v2486 = vmul.f32 %v2376, %v2473
        %v2487 = vmul.f32 %v2381, %v2473
        %v2488 = vmul.f32 %v2386, %v2473
        %v2489 = vmul.f32 %v2391, %v2473
        %v2490 = vmul.f32 %v2396, %v2473
        %v2491 = vmul.f32 %v2401, %v2473
        %v2492 = vmul.f32 %v2406, %v2473
        %v2493 = vmul.f32 %v2411, %v2473
        %v2494 = vmul.f32 %v2416, %v2473
        %v2495 = vmul.f32 %v2421, %v2473
        %v2496 = vmul.f32 %v2426, %v2473
        %v2497 = vmul.f32 %v2431, %v2473
        %v2498 = vmul.f32 %v2436, %v2473
        %v2499 = vmul.f32 %v2441, %v2473
        %v2500 = vmul.f32 %v2446, %v2473
        %v2501 = vmul.f32 %v2451, %v2473
        %v2502 = vmul.f32 %v2456, %v2473
        %v2503 = vmul.f32 %v2461, %v2473
        %v2504 = vmul.f32 %v2466, %v2473
        %v2505 = vmul.f32 %v2471, %v2473
        %v2506 = vsub.f32 %v2474, %v2123
        %v2507 = vsub.f32 %v2475, %v2124
        %v2508 = vsub.f32 %v2476, %v2125
        %v2509 = vsub.f32 %v2477, %v2126
        %v2510 = vsub.f32 %v2478, %v2127
        %v2511 = vsub.f32 %v2479, %v2128
        %v2512 = vsub.f32 %v2480, %v2129
        %v2513 = vsub.f32 %v2481, %v2130
        %v2514 = vsub.f32 %v2482, %v2131
        %v2515 = vsub.f32 %v2483, %v2132
        %v2516 = vsub.f32 %v2484, %v2133
        %v2517 = vsub.f32 %v2485, %v2134
        %v2518 = vsub.f32 %v2486, %v2135
        %v2519 = vsub.f32 %v2487, %v2136
        %v2520 = vsub.f32 %v2488, %v2137
        %v2521 = vsub.f32 %v2489, %v2138
        %v2522 = vsub.f32 %v2490, %v2139
        %v2523 = vsub.f32 %v2491, %v2140
        %v2524 = vsub.f32 %v2492, %v2141
        %v2525 = vsub.f32 %v2493, %v2142
        %v2526 = vsub.f32 %v2494, %v2143
        %v2527 = vsub.f32 %v2495, %v2144
        %v2528 = vsub.f32 %v2496, %v2145
        %v2529 = vsub.f32 %v2497, %v2146
        %v2530 = vsub.f32 %v2498, %v2147
        %v2531 = vsub.f32 %v2499, %v2148
        %v2532 = vsub.f32 %v2500, %v2149
        %v2533 = vsub.f32 %v2501, %v2150
        %v2534 = vsub.f32 %v2502, %v2151
        %v2535 = vsub.f32 %v2503, %v2152
        %v2536 = vsub.f32 %v2504, %v2153
        %v2537 = vsub.f32 %v2505, %v2154
        %v2538 = vmul.f32 %v2191, %v2506
        %v2539 = vmul.f32 %v2192, %v2507
        %v2540 = vmul.f32 %v2193, %v2508
        %v2541 = vmul.f32 %v2194, %v2509
        %v2542 = vmul.f32 %v2195, %v2510
        %v2543 = vmul.f32 %v2196, %v2511
        %v2544 = vmul.f32 %v2197, %v2512
        %v2545 = vmul.f32 %v2198, %v2513
        %v2546 = vmul.f32 %v2199, %v2514
        %v2547 = vmul.f32 %v2200, %v2515
        %v2548 = vmul.f32 %v2201, %v2516
        %v2549 = vmul.f32 %v2202, %v2517
        %v2550 = vmul.f32 %v2203, %v2518
        %v2551 = vmul.f32 %v2204, %v2519
        %v2552 = vmul.f32 %v2205, %v2520
        %v2553 = vmul.f32 %v2206, %v2521
        %v2554 = vmul.f32 %v2207, %v2522
        %v2555 = vmul.f32 %v2208, %v2523
        %v2556 = vmul.f32 %v2209, %v2524
        %v2557 = vmul.f32 %v2210, %v2525
        %v2558 = vmul.f32 %v2211, %v2526
        %v2559 = vmul.f32 %v2212, %v2527
        %v2560 = vmul.f32 %v2213, %v2528
        %v2561 = vmul.f32 %v2214, %v2529
        %v2562 = vmul.f32 %v2215, %v2530
        %v2563 = vmul.f32 %v2216, %v2531
        %v2564 = vmul.f32 %v2217, %v2532
        %v2565 = vmul.f32 %v2218, %v2533
        %v2566 = vmul.f32 %v2219, %v2534
        %v2567 = vmul.f32 %v2220, %v2535
        %v2568 = vmul.f32 %v2221, %v2536
        %v2569 = vmul.f32 %v2222, %v2537
        %v2570 = vadd.f32 %v2123, %v2538
        %v2571 = vadd.f32 %v2124, %v2539
        %v2572 = vadd.f32 %v2125, %v2540
        %v2573 = vadd.f32 %v2126, %v2541
        %v2574 = vadd.f32 %v2127, %v2542
        %v2575 = vadd.f32 %v2128, %v2543
        %v2576 = vadd.f32 %v2129, %v2544
        %v2577 = vadd.f32 %v2130, %v2545
        %v2578 = vadd.f32 %v2131, %v2546
        %v2579 = vadd.f32 %v2132, %v2547
        %v2580 = vadd.f32 %v2133, %v2548
        %v2581 = vadd.f32 %v2134, %v2549
        %v2582 = vadd.f32 %v2135, %v2550
        %v2583 = vadd.f32 %v2136, %v2551
        %v2584 = vadd.f32 %v2137, %v2552
        %v2585 = vadd.f32 %v2138, %v2553
        %v2586 = vadd.f32 %v2139, %v2554
        %v2587 = vadd.f32 %v2140, %v2555
        %v2588 = vadd.f32 %v2141, %v2556
        %v2589 = vadd.f32 %v2142, %v2557
        %v2590 = vadd.f32 %v2143, %v2558
        %v2591 = vadd.f32 %v2144, %v2559
        %v2592 = vadd.f32 %v2145, %v2560
        %v2593 = vadd.f32 %v2146, %v2561
        %v2594 = vadd.f32 %v2147, %v2562
        %v2595 = vadd.f32 %v2148, %v2563
        %v2596 = vadd.f32 %v2149, %v2564
        %v2597 = vadd.f32 %v2150, %v2565
        %v2598 = vadd.f32 %v2151, %v2566
        %v2599 = vadd.f32 %v2152, %v2567
        %v2600 = vadd.f32 %v2153, %v2568
        %v2601 = vadd.f32 %v2154, %v2569
        %v2602 = vmax.f32 %v2570, -1.0
        %v2603 = vmax.f32 %v2571, -1.0
        %v2604 = vmax.f32 %v2572, -1.0
        %v2605 = vmax.f32 %v2573, -1.0
        %v2606 = vmax.f32 %v2574, -1.0
        %v2607 = vmax.f32 %v2575, -1.0
        %v2608 = vmax.f32 %v2576, -1.0
        %v2609 = vmax.f32 %v2577, -1.0
        %v2610 = vmax.f32 %v2578, -1.0
        %v2611 = vmax.f32 %v2579, -1.0
        %v2612 = vmax.f32 %v2580, -1.0
        %v2613 = vmax.f32 %v2581, -1.0
        %v2614 = vmax.f32 %v2582, -1.0
        %v2615 = vmax.f32 %v2583, -1.0
        %v2616 = vmax.f32 %v2584, -1.0
        %v2617 = vmax.f32 %v2585, -1.0
        %v2618 = vmax.f32 %v2586, -1.0
        %v2619 = vmax.f32 %v2587, -1.0
        %v2620 = vmax.f32 %v2588, -1.0
        %v2621 = vmax.f32 %v2589, -1.0
        %v2622 = vmax.f32 %v2590, -1.0
        %v2623 = vmax.f32 %v2591, -1.0
        %v2624 = vmax.f32 %v2592, -1.0
        %v2625 = vmax.f32 %v2593, -1.0
        %v2626 = vmax.f32 %v2594, -1.0
        %v2627 = vmax.f32 %v2595, -1.0
        %v2628 = vmax.f32 %v2596, -1.0
        %v2629 = vmax.f32 %v2597, -1.0
        %v2630 = vmax.f32 %v2598, -1.0
        %v2631 = vmax.f32 %v2599, -1.0
        %v2632 = vmax.f32 %v2600, -1.0
        %v2633 = vmax.f32 %v2601, -1.0
        %v2634 = vmin.f32 %v2602, 1.0
        %v2635 = vmin.f32 %v2603, 1.0
        %v2636 = vmin.f32 %v2604, 1.0
        %v2637 = vmin.f32 %v2605, 1.0
        %v2638 = vmin.f32 %v2606, 1.0
        %v2639 = vmin.f32 %v2607, 1.0
        %v2640 = vmin.f32 %v2608, 1.0
        %v2641 = vmin.f32 %v2609, 1.0
        %v2642 = vmin.f32 %v2610, 1.0
        %v2643 = vmin.f32 %v2611, 1.0
        %v2644 = vmin.f32 %v2612, 1.0
        %v2645 = vmin.f32 %v2613, 1.0
        %v2646 = vmin.f32 %v2614, 1.0
        %v2647 = vmin.f32 %v2615, 1.0
        %v2648 = vmin.f32 %v2616, 1.0
        %v2649 = vmin.f32 %v2617, 1.0
        %v2650 = vmin.f32 %v2618, 1.0
        %v2651 = vmin.f32 %v2619, 1.0
        %v2652 = vmin.f32 %v2620, 1.0
        %v2653 = vmin.f32 %v2621, 1.0
        %v2654 = vmin.f32 %v2622, 1.0
        %v2655 = vmin.f32 %v2623, 1.0
        %v2656 = vmin.f32 %v2624, 1.0
        %v2657 = vmin.f32 %v2625, 1.0
        %v2658 = vmin.f32 %v2626, 1.0
        %v2659 = vmin.f32 %v2627, 1.0
        %v2660 = vmin.f32 %v2628, 1.0
        %v2661 = vmin.f32 %v2629, 1.0
        %v2662 = vmin.f32 %v2630, 1.0
        %v2663 = vmin.f32 %v2631, 1.0
        %v2664 = vmin.f32 %v2632, 1.0
        %v2665 = vmin.f32 %v2633, 1.0
        %2666 = vst [vmem:[#allocation2] sm:$0xff] %v2634
        %2667 = vst [vmem:[#allocation2 + $0x8] sm:$0xff] %v2635
        %2668 = vst [vmem:[#allocation2 + $0x10] sm:$0xff] %v2636
        %2669 = vst [vmem:[#allocation2 + $0x18] sm:$0xff] %v2637
        %2670 = vst [vmem:[#allocation2 + $0x20] sm:$0xff] %v2638
        %2671 = vst [vmem:[#allocation2 + $0x28] sm:$0xff] %v2639
        %2672 = vst [vmem:[#allocation2 + $0x30] sm:$0xff] %v2640
        %2673 = vst [vmem:[#allocation2 + $0x38] sm:$0xff] %v2641
        %2674 = vst [vmem:[#allocation2 + $0x40] sm:$0xff] %v2642
        %2675 = vst [vmem:[#allocation2 + $0x48] sm:$0xff] %v2643
        %2676 = vst [vmem:[#allocation2 + $0x50] sm:$0xff] %v2644
        %2677 = vst [vmem:[#allocation2 + $0x58] sm:$0xff] %v2645
        %2678 = vst [vmem:[#allocation2 + $0x60] sm:$0xff] %v2646
        %2679 = vst [vmem:[#allocation2 + $0x68] sm:$0xff] %v2647
        %2680 = vst [vmem:[#allocation2 + $0x70] sm:$0xff] %v2648
        %2681 = vst [vmem:[#allocation2 + $0x78] sm:$0xff] %v2649
        %2682 = vst [vmem:[#allocation2 + $0x80] sm:$0xff] %v2650
        %2683 = vst [vmem:[#allocation2 + $0x88] sm:$0xff] %v2651
        %2684 = vst [vmem:[#allocation2 + $0x90] sm:$0xff] %v2652
        %2685 = vst [vmem:[#allocation2 + $0x98] sm:$0xff] %v2653
        %2686 = vst [vmem:[#allocation2 + $0xa0] sm:$0xff] %v2654
        %2687 = vst [vmem:[#allocation2 + $0xa8] sm:$0xff] %v2655
        %2688 = vst [vmem:[#allocation2 + $0xb0] sm:$0xff] %v2656
        %2689 = vst [vmem:[#allocation2 + $0xb8] sm:$0xff] %v2657
        %2690 = vst [vmem:[#allocation2 + $0xc0] sm:$0xff] %v2658
        %2691 = vst [vmem:[#allocation2 + $0xc8] sm:$0xff] %v2659
        %2692 = vst [vmem:[#allocation2 + $0xd0] sm:$0xff] %v2660
        %2693 = vst [vmem:[#allocation2 + $0xd8] sm:$0xff] %v2661
        %2694 = vst [vmem:[#allocation2 + $0xe0] sm:$0xff] %v2662
        %2695 = vst [vmem:[#allocation2 + $0xe8] sm:$0xff] %v2663
        %2696 = vst [vmem:[#allocation2 + $0xf0] sm:$0xff] %v2664
        %2697 = vst [vmem:[#allocation2 + $0xf8] sm:$0xff] %v2665
        %2698 = vst [vmem:[%s309 + $0x3] sm:$0x1] %v2312
        %v2699 = vld [vmem:[#allocation2] sm:$0xff]
        %v2700 = vld [vmem:[#allocation2 + $0x8] sm:$0xff]
        %v2701 = vld [vmem:[#allocation2 + $0x10] sm:$0xff]
        %v2702 = vld [vmem:[#allocation2 + $0x18] sm:$0xff]
        %v2703 = vld [vmem:[#allocation2 + $0x20] sm:$0xff]
        %v2704 = vld [vmem:[#allocation2 + $0x28] sm:$0xff]
        %v2705 = vld [vmem:[#allocation2 + $0x30] sm:$0xff]
        %v2706 = vld [vmem:[#allocation2 + $0x38] sm:$0xff]
        %v2707 = vld [vmem:[#allocation2 + $0x40] sm:$0xff]
        %v2708 = vld [vmem:[#allocation2 + $0x48] sm:$0xff]
        %v2709 = vld [vmem:[#allocation2 + $0x50] sm:$0xff]
        %v2710 = vld [vmem:[#allocation2 + $0x58] sm:$0xff]
        %v2711 = vld [vmem:[#allocation2 + $0x60] sm:$0xff]
        %v2712 = vld [vmem:[#allocation2 + $0x68] sm:$0xff]
        %v2713 = vld [vmem:[#allocation2 + $0x70] sm:$0xff]
        %v2714 = vld [vmem:[#allocation2 + $0x78] sm:$0xff]
        %v2715 = vld [vmem:[#allocation2 + $0x80] sm:$0xff]
        %v2716 = vld [vmem:[#allocation2 + $0x88] sm:$0xff]
        %v2717 = vld [vmem:[#allocation2 + $0x90] sm:$0xff]
        %v2718 = vld [vmem:[#allocation2 + $0x98] sm:$0xff]
        %v2719 = vld [vmem:[#allocation2 + $0xa0] sm:$0xff]
        %v2720 = vld [vmem:[#allocation2 + $0xa8] sm:$0xff]
        %v2721 = vld [vmem:[#allocation2 + $0xb0] sm:$0xff]
        %v2722 = vld [vmem:[#allocation2 + $0xb8] sm:$0xff]
        %v2723 = vld [vmem:[#allocation2 + $0xc0] sm:$0xff]
        %v2724 = vld [vmem:[#allocation2 + $0xc8] sm:$0xff]
        %v2725 = vld [vmem:[#allocation2 + $0xd0] sm:$0xff]
        %v2726 = vld [vmem:[#allocation2 + $0xd8] sm:$0xff]
        %v2727 = vld [vmem:[#allocation2 + $0xe0] sm:$0xff]
        %v2728 = vld [vmem:[#allocation2 + $0xe8] sm:$0xff]
        %v2729 = vld [vmem:[#allocation2 + $0xf0] sm:$0xff]
        %v2730 = vld [vmem:[#allocation2 + $0xf8] sm:$0xff]
        %s2731 = scalar_lea.vmem %s314, 4
        %v2732 = vld [vmem:[%s2731] ss:$8 sm:$0x3]
        %s2733 = scalar_lea.vmem %s320, 1024
        %v2734 = vld [vmem:[%s2733] sm:$0xff]
        %v2735 = vld [vmem:[%s2733 + $0x8] sm:$0xff]
        %v2736 = vld [vmem:[%s2733 + $0x10] sm:$0xff]
        %v2737 = vld [vmem:[%s2733 + $0x18] sm:$0xff]
        %v2738 = vld [vmem:[%s2733 + $0x20] sm:$0xff]
        %v2739 = vld [vmem:[%s2733 + $0x28] sm:$0xff]
        %v2740 = vld [vmem:[%s2733 + $0x30] sm:$0xff]
        %v2741 = vld [vmem:[%s2733 + $0x38] sm:$0xff]
        %v2742 = vld [vmem:[%s2733 + $0x40] sm:$0xff]
        %v2743 = vld [vmem:[%s2733 + $0x48] sm:$0xff]
        %v2744 = vld [vmem:[%s2733 + $0x50] sm:$0xff]
        %v2745 = vld [vmem:[%s2733 + $0x58] sm:$0xff]
        %v2746 = vld [vmem:[%s2733 + $0x60] sm:$0xff]
        %v2747 = vld [vmem:[%s2733 + $0x68] sm:$0xff]
        %v2748 = vld [vmem:[%s2733 + $0x70] sm:$0xff]
        %v2749 = vld [vmem:[%s2733 + $0x78] sm:$0xff]
        %v2750 = vld [vmem:[%s2733 + $0x80] sm:$0xff]
        %v2751 = vld [vmem:[%s2733 + $0x88] sm:$0xff]
        %v2752 = vld [vmem:[%s2733 + $0x90] sm:$0xff]
        %v2753 = vld [vmem:[%s2733 + $0x98] sm:$0xff]
        %v2754 = vld [vmem:[%s2733 + $0xa0] sm:$0xff]
        %v2755 = vld [vmem:[%s2733 + $0xa8] sm:$0xff]
        %v2756 = vld [vmem:[%s2733 + $0xb0] sm:$0xff]
        %v2757 = vld [vmem:[%s2733 + $0xb8] sm:$0xff]
        %v2758 = vld [vmem:[%s2733 + $0xc0] sm:$0xff]
        %v2759 = vld [vmem:[%s2733 + $0xc8] sm:$0xff]
        %v2760 = vld [vmem:[%s2733 + $0xd0] sm:$0xff]
        %v2761 = vld [vmem:[%s2733 + $0xd8] sm:$0xff]
        %v2762 = vld [vmem:[%s2733 + $0xe0] sm:$0xff]
        %v2763 = vld [vmem:[%s2733 + $0xe8] sm:$0xff]
        %v2764 = vld [vmem:[%s2733 + $0xf0] sm:$0xff]
        %v2765 = vld [vmem:[%s2733 + $0xf8] sm:$0xff]
        %s2766 = scalar_lea.vmem %s327, 1024
        %v2767 = vld [vmem:[%s2766] sm:$0xff]
        %v2768 = vld [vmem:[%s2766 + $0x8] sm:$0xff]
        %v2769 = vld [vmem:[%s2766 + $0x10] sm:$0xff]
        %v2770 = vld [vmem:[%s2766 + $0x18] sm:$0xff]
        %v2771 = vld [vmem:[%s2766 + $0x20] sm:$0xff]
        %v2772 = vld [vmem:[%s2766 + $0x28] sm:$0xff]
        %v2773 = vld [vmem:[%s2766 + $0x30] sm:$0xff]
        %v2774 = vld [vmem:[%s2766 + $0x38] sm:$0xff]
        %v2775 = vld [vmem:[%s2766 + $0x40] sm:$0xff]
        %v2776 = vld [vmem:[%s2766 + $0x48] sm:$0xff]
        %v2777 = vld [vmem:[%s2766 + $0x50] sm:$0xff]
        %v2778 = vld [vmem:[%s2766 + $0x58] sm:$0xff]
        %v2779 = vld [vmem:[%s2766 + $0x60] sm:$0xff]
        %v2780 = vld [vmem:[%s2766 + $0x68] sm:$0xff]
        %v2781 = vld [vmem:[%s2766 + $0x70] sm:$0xff]
        %v2782 = vld [vmem:[%s2766 + $0x78] sm:$0xff]
        %v2783 = vld [vmem:[%s2766 + $0x80] sm:$0xff]
        %v2784 = vld [vmem:[%s2766 + $0x88] sm:$0xff]
        %v2785 = vld [vmem:[%s2766 + $0x90] sm:$0xff]
        %v2786 = vld [vmem:[%s2766 + $0x98] sm:$0xff]
        %v2787 = vld [vmem:[%s2766 + $0xa0] sm:$0xff]
        %v2788 = vld [vmem:[%s2766 + $0xa8] sm:$0xff]
        %v2789 = vld [vmem:[%s2766 + $0xb0] sm:$0xff]
        %v2790 = vld [vmem:[%s2766 + $0xb8] sm:$0xff]
        %v2791 = vld [vmem:[%s2766 + $0xc0] sm:$0xff]
        %v2792 = vld [vmem:[%s2766 + $0xc8] sm:$0xff]
        %v2793 = vld [vmem:[%s2766 + $0xd0] sm:$0xff]
        %v2794 = vld [vmem:[%s2766 + $0xd8] sm:$0xff]
        %v2795 = vld [vmem:[%s2766 + $0xe0] sm:$0xff]
        %v2796 = vld [vmem:[%s2766 + $0xe8] sm:$0xff]
        %v2797 = vld [vmem:[%s2766 + $0xf0] sm:$0xff]
        %v2798 = vld [vmem:[%s2766 + $0xf8] sm:$0xff]
        %v2799 = vld [vmem:[%s260 + $0x4] sm:$0x1]
        %v2800 = vmul.f32 %v365, %v2699
        %v2801 = vmul.f32 %v366, %v2700
        %v2802 = vmul.f32 %v367, %v2701
        %v2803 = vmul.f32 %v368, %v2702
        %v2804 = vmul.f32 %v369, %v2703
        %v2805 = vmul.f32 %v370, %v2704
        %v2806 = vmul.f32 %v371, %v2705
        %v2807 = vmul.f32 %v372, %v2706
        %v2808 = vmul.f32 %v373, %v2707
        %v2809 = vmul.f32 %v374, %v2708
        %v2810 = vmul.f32 %v375, %v2709
        %v2811 = vmul.f32 %v376, %v2710
        %v2812 = vmul.f32 %v377, %v2711
        %v2813 = vmul.f32 %v378, %v2712
        %v2814 = vmul.f32 %v379, %v2713
        %v2815 = vmul.f32 %v380, %v2714
        %v2816 = vmul.f32 %v381, %v2715
        %v2817 = vmul.f32 %v382, %v2716
        %v2818 = vmul.f32 %v383, %v2717
        %v2819 = vmul.f32 %v384, %v2718
        %v2820 = vmul.f32 %v385, %v2719
        %v2821 = vmul.f32 %v386, %v2720
        %v2822 = vmul.f32 %v387, %v2721
        %v2823 = vmul.f32 %v388, %v2722
        %v2824 = vmul.f32 %v389, %v2723
        %v2825 = vmul.f32 %v390, %v2724
        %v2826 = vmul.f32 %v391, %v2725
        %v2827 = vmul.f32 %v392, %v2726
        %v2828 = vmul.f32 %v393, %v2727
        %v2829 = vmul.f32 %v394, %v2728
        %v2830 = vmul.f32 %v395, %v2729
        %v2831 = vmul.f32 %v396, %v2730
        %v2833 = vperm.slane %v2732, 0
        %v2834 = vperm.slane %v2732, 1
        %2837 = vmatpush.msra.mxu0 %v2815
        %2838 = vmatpush.msra.mxu0 %v2814
        %2839 = vmatpush.msra.mxu0 %v2813
        %2840 = vmatpush.msra.mxu0 %v2812
        %2841 = vmatpush.msra.mxu0 %v2811
        %2842 = vmatpush.msra.mxu0 %v2810
        %2843 = vmatpush.msra.mxu0 %v2809
        %2844 = vmatpush.msra.mxu0 %v2808
        %2845 = vmatpush.msra.mxu0 %v2807
        %2846 = vmatpush.msra.mxu0 %v2806
        %2847 = vmatpush.msra.mxu0 %v2805
        %2848 = vmatpush.msra.mxu0 %v2804
        %2849 = vmatpush.msra.mxu0 %v2803
        %2850 = vmatpush.msra.mxu0 %v2802
        %2851 = vmatpush.msra.mxu0 %v2801
        %2852 = vmatpush.msra.mxu0 %v2800
        %2853 = vmatmul.f32.gmra.mxu0 %v2833
        %v2854 = vpop.f32.mrf.mxu0
        %v2855 = vadd.f32 0.0, %v2854
        %2856 = vdwg.mxu0
        %2857 = vmatpush.msra.mxu0 %v2831
        %2858 = vmatpush.msra.mxu0 %v2830
        %2859 = vmatpush.msra.mxu0 %v2829
        %2860 = vmatpush.msra.mxu0 %v2828
        %2861 = vmatpush.msra.mxu0 %v2827
        %2862 = vmatpush.msra.mxu0 %v2826
        %2863 = vmatpush.msra.mxu0 %v2825
        %2864 = vmatpush.msra.mxu0 %v2824
        %2865 = vmatpush.msra.mxu0 %v2823
        %2866 = vmatpush.msra.mxu0 %v2822
        %2867 = vmatpush.msra.mxu0 %v2821
        %2868 = vmatpush.msra.mxu0 %v2820
        %2869 = vmatpush.msra.mxu0 %v2819
        %2870 = vmatpush.msra.mxu0 %v2818
        %2871 = vmatpush.msra.mxu0 %v2817
        %2872 = vmatpush.msra.mxu0 %v2816
        %2873 = vmatmul.f32.gmra.mxu0 %v2834
        %v2874 = vpop.f32.mrf.mxu0
        %v2875 = vadd.f32 %v2855, %v2874
        %2876 = vdwg.mxu0
        %v2877 = vadd.f32 %v2799, %v2875
        %v2878 = vsel %vm573, %v2877, -inf
        %2879 = vmax.xlane.f32.xlu0 %v2878
        %v2880 = vpop.xlane.xlu0 %2879
        %v2881 = vsub.f32 %v2877, %v2880
        %v2882 = vmul.f32 %v2881, 1.442695
        %v2883 = vpow.pop %v2882
        %v2884 = vsel %vm573, %v2883, 0.0
        %2885 = vadd.xlane.f32.xlu0 %v2884
        %v2886 = vpop.xlane.xlu0 %2885
        %v2887 = vrcp.pop %v2886
        %v2888 = vmul.f32 %v2883, %v2887
        %2890 = vset.pattern.permute.xlu0 0
        %2891 = vperm.xlu0 %2890, %v2734
        %v2892 = vpop.permute.xlu0 %2891
        %2895 = vset.pattern.permute.xlu0 0
        %2896 = vperm.xlu0 %2895, %v2735
        %v2897 = vpop.permute.xlu0 %2896
        %2900 = vset.pattern.permute.xlu0 0
        %2901 = vperm.xlu0 %2900, %v2736
        %v2902 = vpop.permute.xlu0 %2901
        %2905 = vset.pattern.permute.xlu0 0
        %2906 = vperm.xlu0 %2905, %v2737
        %v2907 = vpop.permute.xlu0 %2906
        %2910 = vset.pattern.permute.xlu0 0
        %2911 = vperm.xlu0 %2910, %v2738
        %v2912 = vpop.permute.xlu0 %2911
        %2915 = vset.pattern.permute.xlu0 0
        %2916 = vperm.xlu0 %2915, %v2739
        %v2917 = vpop.permute.xlu0 %2916
        %2920 = vset.pattern.permute.xlu0 0
        %2921 = vperm.xlu0 %2920, %v2740
        %v2922 = vpop.permute.xlu0 %2921
        %2925 = vset.pattern.permute.xlu0 0
        %2926 = vperm.xlu0 %2925, %v2741
        %v2927 = vpop.permute.xlu0 %2926
        %2930 = vset.pattern.permute.xlu0 0
        %2931 = vperm.xlu0 %2930, %v2742
        %v2932 = vpop.permute.xlu0 %2931
        %2935 = vset.pattern.permute.xlu0 0
        %2936 = vperm.xlu0 %2935, %v2743
        %v2937 = vpop.permute.xlu0 %2936
        %2940 = vset.pattern.permute.xlu0 0
        %2941 = vperm.xlu0 %2940, %v2744
        %v2942 = vpop.permute.xlu0 %2941
        %2945 = vset.pattern.permute.xlu0 0
        %2946 = vperm.xlu0 %2945, %v2745
        %v2947 = vpop.permute.xlu0 %2946
        %2950 = vset.pattern.permute.xlu0 0
        %2951 = vperm.xlu0 %2950, %v2746
        %v2952 = vpop.permute.xlu0 %2951
        %2955 = vset.pattern.permute.xlu0 0
        %2956 = vperm.xlu0 %2955, %v2747
        %v2957 = vpop.permute.xlu0 %2956
        %2960 = vset.pattern.permute.xlu0 0
        %2961 = vperm.xlu0 %2960, %v2748
        %v2962 = vpop.permute.xlu0 %2961
        %2965 = vset.pattern.permute.xlu0 0
        %2966 = vperm.xlu0 %2965, %v2749
        %v2967 = vpop.permute.xlu0 %2966
        %2970 = vset.pattern.permute.xlu0 0
        %2971 = vperm.xlu0 %2970, %v2750
        %v2972 = vpop.permute.xlu0 %2971
        %2975 = vset.pattern.permute.xlu0 0
        %2976 = vperm.xlu0 %2975, %v2751
        %v2977 = vpop.permute.xlu0 %2976
        %2980 = vset.pattern.permute.xlu0 0
        %2981 = vperm.xlu0 %2980, %v2752
        %v2982 = vpop.permute.xlu0 %2981
        %2985 = vset.pattern.permute.xlu0 0
        %2986 = vperm.xlu0 %2985, %v2753
        %v2987 = vpop.permute.xlu0 %2986
        %2990 = vset.pattern.permute.xlu0 0
        %2991 = vperm.xlu0 %2990, %v2754
        %v2992 = vpop.permute.xlu0 %2991
        %2995 = vset.pattern.permute.xlu0 0
        %2996 = vperm.xlu0 %2995, %v2755
        %v2997 = vpop.permute.xlu0 %2996
        %3000 = vset.pattern.permute.xlu0 0
        %3001 = vperm.xlu0 %3000, %v2756
        %v3002 = vpop.permute.xlu0 %3001
        %3005 = vset.pattern.permute.xlu0 0
        %3006 = vperm.xlu0 %3005, %v2757
        %v3007 = vpop.permute.xlu0 %3006
        %3010 = vset.pattern.permute.xlu0 0
        %3011 = vperm.xlu0 %3010, %v2758
        %v3012 = vpop.permute.xlu0 %3011
        %3015 = vset.pattern.permute.xlu0 0
        %3016 = vperm.xlu0 %3015, %v2759
        %v3017 = vpop.permute.xlu0 %3016
        %3020 = vset.pattern.permute.xlu0 0
        %3021 = vperm.xlu0 %3020, %v2760
        %v3022 = vpop.permute.xlu0 %3021
        %3025 = vset.pattern.permute.xlu0 0
        %3026 = vperm.xlu0 %3025, %v2761
        %v3027 = vpop.permute.xlu0 %3026
        %3030 = vset.pattern.permute.xlu0 0
        %3031 = vperm.xlu0 %3030, %v2762
        %v3032 = vpop.permute.xlu0 %3031
        %3035 = vset.pattern.permute.xlu0 0
        %3036 = vperm.xlu0 %3035, %v2763
        %v3037 = vpop.permute.xlu0 %3036
        %3040 = vset.pattern.permute.xlu0 0
        %3041 = vperm.xlu0 %3040, %v2764
        %v3042 = vpop.permute.xlu0 %3041
        %3045 = vset.pattern.permute.xlu0 0
        %3046 = vperm.xlu0 %3045, %v2765
        %v3047 = vpop.permute.xlu0 %3046
        %v3049 = vperm.slane %v2888, 0
        %v3050 = vmul.f32 %v2892, %v3049
        %v3051 = vmul.f32 %v2897, %v3049
        %v3052 = vmul.f32 %v2902, %v3049
        %v3053 = vmul.f32 %v2907, %v3049
        %v3054 = vmul.f32 %v2912, %v3049
        %v3055 = vmul.f32 %v2917, %v3049
        %v3056 = vmul.f32 %v2922, %v3049
        %v3057 = vmul.f32 %v2927, %v3049
        %v3058 = vmul.f32 %v2932, %v3049
        %v3059 = vmul.f32 %v2937, %v3049
        %v3060 = vmul.f32 %v2942, %v3049
        %v3061 = vmul.f32 %v2947, %v3049
        %v3062 = vmul.f32 %v2952, %v3049
        %v3063 = vmul.f32 %v2957, %v3049
        %v3064 = vmul.f32 %v2962, %v3049
        %v3065 = vmul.f32 %v2967, %v3049
        %v3066 = vmul.f32 %v2972, %v3049
        %v3067 = vmul.f32 %v2977, %v3049
        %v3068 = vmul.f32 %v2982, %v3049
        %v3069 = vmul.f32 %v2987, %v3049
        %v3070 = vmul.f32 %v2992, %v3049
        %v3071 = vmul.f32 %v2997, %v3049
        %v3072 = vmul.f32 %v3002, %v3049
        %v3073 = vmul.f32 %v3007, %v3049
        %v3074 = vmul.f32 %v3012, %v3049
        %v3075 = vmul.f32 %v3017, %v3049
        %v3076 = vmul.f32 %v3022, %v3049
        %v3077 = vmul.f32 %v3027, %v3049
        %v3078 = vmul.f32 %v3032, %v3049
        %v3079 = vmul.f32 %v3037, %v3049
        %v3080 = vmul.f32 %v3042, %v3049
        %v3081 = vmul.f32 %v3047, %v3049
        %v3082 = vsub.f32 %v3050, %v2699
        %v3083 = vsub.f32 %v3051, %v2700
        %v3084 = vsub.f32 %v3052, %v2701
        %v3085 = vsub.f32 %v3053, %v2702
        %v3086 = vsub.f32 %v3054, %v2703
        %v3087 = vsub.f32 %v3055, %v2704
        %v3088 = vsub.f32 %v3056, %v2705
        %v3089 = vsub.f32 %v3057, %v2706
        %v3090 = vsub.f32 %v3058, %v2707
        %v3091 = vsub.f32 %v3059, %v2708
        %v3092 = vsub.f32 %v3060, %v2709
        %v3093 = vsub.f32 %v3061, %v2710
        %v3094 = vsub.f32 %v3062, %v2711
        %v3095 = vsub.f32 %v3063, %v2712
        %v3096 = vsub.f32 %v3064, %v2713
        %v3097 = vsub.f32 %v3065, %v2714
        %v3098 = vsub.f32 %v3066, %v2715
        %v3099 = vsub.f32 %v3067, %v2716
        %v3100 = vsub.f32 %v3068, %v2717
        %v3101 = vsub.f32 %v3069, %v2718
        %v3102 = vsub.f32 %v3070, %v2719
        %v3103 = vsub.f32 %v3071, %v2720
        %v3104 = vsub.f32 %v3072, %v2721
        %v3105 = vsub.f32 %v3073, %v2722
        %v3106 = vsub.f32 %v3074, %v2723
        %v3107 = vsub.f32 %v3075, %v2724
        %v3108 = vsub.f32 %v3076, %v2725
        %v3109 = vsub.f32 %v3077, %v2726
        %v3110 = vsub.f32 %v3078, %v2727
        %v3111 = vsub.f32 %v3079, %v2728
        %v3112 = vsub.f32 %v3080, %v2729
        %v3113 = vsub.f32 %v3081, %v2730
        %v3114 = vmul.f32 %v2767, %v3082
        %v3115 = vmul.f32 %v2768, %v3083
        %v3116 = vmul.f32 %v2769, %v3084
        %v3117 = vmul.f32 %v2770, %v3085
        %v3118 = vmul.f32 %v2771, %v3086
        %v3119 = vmul.f32 %v2772, %v3087
        %v3120 = vmul.f32 %v2773, %v3088
        %v3121 = vmul.f32 %v2774, %v3089
        %v3122 = vmul.f32 %v2775, %v3090
        %v3123 = vmul.f32 %v2776, %v3091
        %v3124 = vmul.f32 %v2777, %v3092
        %v3125 = vmul.f32 %v2778, %v3093
        %v3126 = vmul.f32 %v2779, %v3094
        %v3127 = vmul.f32 %v2780, %v3095
        %v3128 = vmul.f32 %v2781, %v3096
        %v3129 = vmul.f32 %v2782, %v3097
        %v3130 = vmul.f32 %v2783, %v3098
        %v3131 = vmul.f32 %v2784, %v3099
        %v3132 = vmul.f32 %v2785, %v3100
        %v3133 = vmul.f32 %v2786, %v3101
        %v3134 = vmul.f32 %v2787, %v3102
        %v3135 = vmul.f32 %v2788, %v3103
        %v3136 = vmul.f32 %v2789, %v3104
        %v3137 = vmul.f32 %v2790, %v3105
        %v3138 = vmul.f32 %v2791, %v3106
        %v3139 = vmul.f32 %v2792, %v3107
        %v3140 = vmul.f32 %v2793, %v3108
        %v3141 = vmul.f32 %v2794, %v3109
        %v3142 = vmul.f32 %v2795, %v3110
        %v3143 = vmul.f32 %v2796, %v3111
        %v3144 = vmul.f32 %v2797, %v3112
        %v3145 = vmul.f32 %v2798, %v3113
        %v3146 = vadd.f32 %v2699, %v3114
        %v3147 = vadd.f32 %v2700, %v3115
        %v3148 = vadd.f32 %v2701, %v3116
        %v3149 = vadd.f32 %v2702, %v3117
        %v3150 = vadd.f32 %v2703, %v3118
        %v3151 = vadd.f32 %v2704, %v3119
        %v3152 = vadd.f32 %v2705, %v3120
        %v3153 = vadd.f32 %v2706, %v3121
        %v3154 = vadd.f32 %v2707, %v3122
        %v3155 = vadd.f32 %v2708, %v3123
        %v3156 = vadd.f32 %v2709, %v3124
        %v3157 = vadd.f32 %v2710, %v3125
        %v3158 = vadd.f32 %v2711, %v3126
        %v3159 = vadd.f32 %v2712, %v3127
        %v3160 = vadd.f32 %v2713, %v3128
        %v3161 = vadd.f32 %v2714, %v3129
        %v3162 = vadd.f32 %v2715, %v3130
        %v3163 = vadd.f32 %v2716, %v3131
        %v3164 = vadd.f32 %v2717, %v3132
        %v3165 = vadd.f32 %v2718, %v3133
        %v3166 = vadd.f32 %v2719, %v3134
        %v3167 = vadd.f32 %v2720, %v3135
        %v3168 = vadd.f32 %v2721, %v3136
        %v3169 = vadd.f32 %v2722, %v3137
        %v3170 = vadd.f32 %v2723, %v3138
        %v3171 = vadd.f32 %v2724, %v3139
        %v3172 = vadd.f32 %v2725, %v3140
        %v3173 = vadd.f32 %v2726, %v3141
        %v3174 = vadd.f32 %v2727, %v3142
        %v3175 = vadd.f32 %v2728, %v3143
        %v3176 = vadd.f32 %v2729, %v3144
        %v3177 = vadd.f32 %v2730, %v3145
        %v3178 = vmax.f32 %v3146, -1.0
        %v3179 = vmax.f32 %v3147, -1.0
        %v3180 = vmax.f32 %v3148, -1.0
        %v3181 = vmax.f32 %v3149, -1.0
        %v3182 = vmax.f32 %v3150, -1.0
        %v3183 = vmax.f32 %v3151, -1.0
        %v3184 = vmax.f32 %v3152, -1.0
        %v3185 = vmax.f32 %v3153, -1.0
        %v3186 = vmax.f32 %v3154, -1.0
        %v3187 = vmax.f32 %v3155, -1.0
        %v3188 = vmax.f32 %v3156, -1.0
        %v3189 = vmax.f32 %v3157, -1.0
        %v3190 = vmax.f32 %v3158, -1.0
        %v3191 = vmax.f32 %v3159, -1.0
        %v3192 = vmax.f32 %v3160, -1.0
        %v3193 = vmax.f32 %v3161, -1.0
        %v3194 = vmax.f32 %v3162, -1.0
        %v3195 = vmax.f32 %v3163, -1.0
        %v3196 = vmax.f32 %v3164, -1.0
        %v3197 = vmax.f32 %v3165, -1.0
        %v3198 = vmax.f32 %v3166, -1.0
        %v3199 = vmax.f32 %v3167, -1.0
        %v3200 = vmax.f32 %v3168, -1.0
        %v3201 = vmax.f32 %v3169, -1.0
        %v3202 = vmax.f32 %v3170, -1.0
        %v3203 = vmax.f32 %v3171, -1.0
        %v3204 = vmax.f32 %v3172, -1.0
        %v3205 = vmax.f32 %v3173, -1.0
        %v3206 = vmax.f32 %v3174, -1.0
        %v3207 = vmax.f32 %v3175, -1.0
        %v3208 = vmax.f32 %v3176, -1.0
        %v3209 = vmax.f32 %v3177, -1.0
        %v3210 = vmin.f32 %v3178, 1.0
        %v3211 = vmin.f32 %v3179, 1.0
        %v3212 = vmin.f32 %v3180, 1.0
        %v3213 = vmin.f32 %v3181, 1.0
        %v3214 = vmin.f32 %v3182, 1.0
        %v3215 = vmin.f32 %v3183, 1.0
        %v3216 = vmin.f32 %v3184, 1.0
        %v3217 = vmin.f32 %v3185, 1.0
        %v3218 = vmin.f32 %v3186, 1.0
        %v3219 = vmin.f32 %v3187, 1.0
        %v3220 = vmin.f32 %v3188, 1.0
        %v3221 = vmin.f32 %v3189, 1.0
        %v3222 = vmin.f32 %v3190, 1.0
        %v3223 = vmin.f32 %v3191, 1.0
        %v3224 = vmin.f32 %v3192, 1.0
        %v3225 = vmin.f32 %v3193, 1.0
        %v3226 = vmin.f32 %v3194, 1.0
        %v3227 = vmin.f32 %v3195, 1.0
        %v3228 = vmin.f32 %v3196, 1.0
        %v3229 = vmin.f32 %v3197, 1.0
        %v3230 = vmin.f32 %v3198, 1.0
        %v3231 = vmin.f32 %v3199, 1.0
        %v3232 = vmin.f32 %v3200, 1.0
        %v3233 = vmin.f32 %v3201, 1.0
        %v3234 = vmin.f32 %v3202, 1.0
        %v3235 = vmin.f32 %v3203, 1.0
        %v3236 = vmin.f32 %v3204, 1.0
        %v3237 = vmin.f32 %v3205, 1.0
        %v3238 = vmin.f32 %v3206, 1.0
        %v3239 = vmin.f32 %v3207, 1.0
        %v3240 = vmin.f32 %v3208, 1.0
        %v3241 = vmin.f32 %v3209, 1.0
        %3242 = vst [vmem:[#allocation2] sm:$0xff] %v3210
        %3243 = vst [vmem:[#allocation2 + $0x8] sm:$0xff] %v3211
        %3244 = vst [vmem:[#allocation2 + $0x10] sm:$0xff] %v3212
        %3245 = vst [vmem:[#allocation2 + $0x18] sm:$0xff] %v3213
        %3246 = vst [vmem:[#allocation2 + $0x20] sm:$0xff] %v3214
        %3247 = vst [vmem:[#allocation2 + $0x28] sm:$0xff] %v3215
        %3248 = vst [vmem:[#allocation2 + $0x30] sm:$0xff] %v3216
        %3249 = vst [vmem:[#allocation2 + $0x38] sm:$0xff] %v3217
        %3250 = vst [vmem:[#allocation2 + $0x40] sm:$0xff] %v3218
        %3251 = vst [vmem:[#allocation2 + $0x48] sm:$0xff] %v3219
        %3252 = vst [vmem:[#allocation2 + $0x50] sm:$0xff] %v3220
        %3253 = vst [vmem:[#allocation2 + $0x58] sm:$0xff] %v3221
        %3254 = vst [vmem:[#allocation2 + $0x60] sm:$0xff] %v3222
        %3255 = vst [vmem:[#allocation2 + $0x68] sm:$0xff] %v3223
        %3256 = vst [vmem:[#allocation2 + $0x70] sm:$0xff] %v3224
        %3257 = vst [vmem:[#allocation2 + $0x78] sm:$0xff] %v3225
        %3258 = vst [vmem:[#allocation2 + $0x80] sm:$0xff] %v3226
        %3259 = vst [vmem:[#allocation2 + $0x88] sm:$0xff] %v3227
        %3260 = vst [vmem:[#allocation2 + $0x90] sm:$0xff] %v3228
        %3261 = vst [vmem:[#allocation2 + $0x98] sm:$0xff] %v3229
        %3262 = vst [vmem:[#allocation2 + $0xa0] sm:$0xff] %v3230
        %3263 = vst [vmem:[#allocation2 + $0xa8] sm:$0xff] %v3231
        %3264 = vst [vmem:[#allocation2 + $0xb0] sm:$0xff] %v3232
        %3265 = vst [vmem:[#allocation2 + $0xb8] sm:$0xff] %v3233
        %3266 = vst [vmem:[#allocation2 + $0xc0] sm:$0xff] %v3234
        %3267 = vst [vmem:[#allocation2 + $0xc8] sm:$0xff] %v3235
        %3268 = vst [vmem:[#allocation2 + $0xd0] sm:$0xff] %v3236
        %3269 = vst [vmem:[#allocation2 + $0xd8] sm:$0xff] %v3237
        %3270 = vst [vmem:[#allocation2 + $0xe0] sm:$0xff] %v3238
        %3271 = vst [vmem:[#allocation2 + $0xe8] sm:$0xff] %v3239
        %3272 = vst [vmem:[#allocation2 + $0xf0] sm:$0xff] %v3240
        %3273 = vst [vmem:[#allocation2 + $0xf8] sm:$0xff] %v3241
        %3274 = vst [vmem:[%s309 + $0x4] sm:$0x1] %v2888
        %v3275 = vld [vmem:[#allocation2] sm:$0xff]
        %v3276 = vld [vmem:[#allocation2 + $0x8] sm:$0xff]
        %v3277 = vld [vmem:[#allocation2 + $0x10] sm:$0xff]
        %v3278 = vld [vmem:[#allocation2 + $0x18] sm:$0xff]
        %v3279 = vld [vmem:[#allocation2 + $0x20] sm:$0xff]
        %v3280 = vld [vmem:[#allocation2 + $0x28] sm:$0xff]
        %v3281 = vld [vmem:[#allocation2 + $0x30] sm:$0xff]
        %v3282 = vld [vmem:[#allocation2 + $0x38] sm:$0xff]
        %v3283 = vld [vmem:[#allocation2 + $0x40] sm:$0xff]
        %v3284 = vld [vmem:[#allocation2 + $0x48] sm:$0xff]
        %v3285 = vld [vmem:[#allocation2 + $0x50] sm:$0xff]
        %v3286 = vld [vmem:[#allocation2 + $0x58] sm:$0xff]
        %v3287 = vld [vmem:[#allocation2 + $0x60] sm:$0xff]
        %v3288 = vld [vmem:[#allocation2 + $0x68] sm:$0xff]
        %v3289 = vld [vmem:[#allocation2 + $0x70] sm:$0xff]
        %v3290 = vld [vmem:[#allocation2 + $0x78] sm:$0xff]
        %v3291 = vld [vmem:[#allocation2 + $0x80] sm:$0xff]
        %v3292 = vld [vmem:[#allocation2 + $0x88] sm:$0xff]
        %v3293 = vld [vmem:[#allocation2 + $0x90] sm:$0xff]
        %v3294 = vld [vmem:[#allocation2 + $0x98] sm:$0xff]
        %v3295 = vld [vmem:[#allocation2 + $0xa0] sm:$0xff]
        %v3296 = vld [vmem:[#allocation2 + $0xa8] sm:$0xff]
        %v3297 = vld [vmem:[#allocation2 + $0xb0] sm:$0xff]
        %v3298 = vld [vmem:[#allocation2 + $0xb8] sm:$0xff]
        %v3299 = vld [vmem:[#allocation2 + $0xc0] sm:$0xff]
        %v3300 = vld [vmem:[#allocation2 + $0xc8] sm:$0xff]
        %v3301 = vld [vmem:[#allocation2 + $0xd0] sm:$0xff]
        %v3302 = vld [vmem:[#allocation2 + $0xd8] sm:$0xff]
        %v3303 = vld [vmem:[#allocation2 + $0xe0] sm:$0xff]
        %v3304 = vld [vmem:[#allocation2 + $0xe8] sm:$0xff]
        %v3305 = vld [vmem:[#allocation2 + $0xf0] sm:$0xff]
        %v3306 = vld [vmem:[#allocation2 + $0xf8] sm:$0xff]
        %s3307 = scalar_lea.vmem %s314, 5
        %v3308 = vld [vmem:[%s3307] ss:$8 sm:$0x3]
        %s3309 = scalar_lea.vmem %s320, 1280
        %v3310 = vld [vmem:[%s3309] sm:$0xff]
        %v3311 = vld [vmem:[%s3309 + $0x8] sm:$0xff]
        %v3312 = vld [vmem:[%s3309 + $0x10] sm:$0xff]
        %v3313 = vld [vmem:[%s3309 + $0x18] sm:$0xff]
        %v3314 = vld [vmem:[%s3309 + $0x20] sm:$0xff]
        %v3315 = vld [vmem:[%s3309 + $0x28] sm:$0xff]
        %v3316 = vld [vmem:[%s3309 + $0x30] sm:$0xff]
        %v3317 = vld [vmem:[%s3309 + $0x38] sm:$0xff]
        %v3318 = vld [vmem:[%s3309 + $0x40] sm:$0xff]
        %v3319 = vld [vmem:[%s3309 + $0x48] sm:$0xff]
        %v3320 = vld [vmem:[%s3309 + $0x50] sm:$0xff]
        %v3321 = vld [vmem:[%s3309 + $0x58] sm:$0xff]
        %v3322 = vld [vmem:[%s3309 + $0x60] sm:$0xff]
        %v3323 = vld [vmem:[%s3309 + $0x68] sm:$0xff]
        %v3324 = vld [vmem:[%s3309 + $0x70] sm:$0xff]
        %v3325 = vld [vmem:[%s3309 + $0x78] sm:$0xff]
        %v3326 = vld [vmem:[%s3309 + $0x80] sm:$0xff]
        %v3327 = vld [vmem:[%s3309 + $0x88] sm:$0xff]
        %v3328 = vld [vmem:[%s3309 + $0x90] sm:$0xff]
        %v3329 = vld [vmem:[%s3309 + $0x98] sm:$0xff]
        %v3330 = vld [vmem:[%s3309 + $0xa0] sm:$0xff]
        %v3331 = vld [vmem:[%s3309 + $0xa8] sm:$0xff]
        %v3332 = vld [vmem:[%s3309 + $0xb0] sm:$0xff]
        %v3333 = vld [vmem:[%s3309 + $0xb8] sm:$0xff]
        %v3334 = vld [vmem:[%s3309 + $0xc0] sm:$0xff]
        %v3335 = vld [vmem:[%s3309 + $0xc8] sm:$0xff]
        %v3336 = vld [vmem:[%s3309 + $0xd0] sm:$0xff]
        %v3337 = vld [vmem:[%s3309 + $0xd8] sm:$0xff]
        %v3338 = vld [vmem:[%s3309 + $0xe0] sm:$0xff]
        %v3339 = vld [vmem:[%s3309 + $0xe8] sm:$0xff]
        %v3340 = vld [vmem:[%s3309 + $0xf0] sm:$0xff]
        %v3341 = vld [vmem:[%s3309 + $0xf8] sm:$0xff]
        %s3342 = scalar_lea.vmem %s327, 1280
        %v3343 = vld [vmem:[%s3342] sm:$0xff]
        %v3344 = vld [vmem:[%s3342 + $0x8] sm:$0xff]
        %v3345 = vld [vmem:[%s3342 + $0x10] sm:$0xff]
        %v3346 = vld [vmem:[%s3342 + $0x18] sm:$0xff]
        %v3347 = vld [vmem:[%s3342 + $0x20] sm:$0xff]
        %v3348 = vld [vmem:[%s3342 + $0x28] sm:$0xff]
        %v3349 = vld [vmem:[%s3342 + $0x30] sm:$0xff]
        %v3350 = vld [vmem:[%s3342 + $0x38] sm:$0xff]
        %v3351 = vld [vmem:[%s3342 + $0x40] sm:$0xff]
        %v3352 = vld [vmem:[%s3342 + $0x48] sm:$0xff]
        %v3353 = vld [vmem:[%s3342 + $0x50] sm:$0xff]
        %v3354 = vld [vmem:[%s3342 + $0x58] sm:$0xff]
        %v3355 = vld [vmem:[%s3342 + $0x60] sm:$0xff]
        %v3356 = vld [vmem:[%s3342 + $0x68] sm:$0xff]
        %v3357 = vld [vmem:[%s3342 + $0x70] sm:$0xff]
        %v3358 = vld [vmem:[%s3342 + $0x78] sm:$0xff]
        %v3359 = vld [vmem:[%s3342 + $0x80] sm:$0xff]
        %v3360 = vld [vmem:[%s3342 + $0x88] sm:$0xff]
        %v3361 = vld [vmem:[%s3342 + $0x90] sm:$0xff]
        %v3362 = vld [vmem:[%s3342 + $0x98] sm:$0xff]
        %v3363 = vld [vmem:[%s3342 + $0xa0] sm:$0xff]
        %v3364 = vld [vmem:[%s3342 + $0xa8] sm:$0xff]
        %v3365 = vld [vmem:[%s3342 + $0xb0] sm:$0xff]
        %v3366 = vld [vmem:[%s3342 + $0xb8] sm:$0xff]
        %v3367 = vld [vmem:[%s3342 + $0xc0] sm:$0xff]
        %v3368 = vld [vmem:[%s3342 + $0xc8] sm:$0xff]
        %v3369 = vld [vmem:[%s3342 + $0xd0] sm:$0xff]
        %v3370 = vld [vmem:[%s3342 + $0xd8] sm:$0xff]
        %v3371 = vld [vmem:[%s3342 + $0xe0] sm:$0xff]
        %v3372 = vld [vmem:[%s3342 + $0xe8] sm:$0xff]
        %v3373 = vld [vmem:[%s3342 + $0xf0] sm:$0xff]
        %v3374 = vld [vmem:[%s3342 + $0xf8] sm:$0xff]
        %v3375 = vld [vmem:[%s260 + $0x5] sm:$0x1]
        %v3376 = vmul.f32 %v365, %v3275
        %v3377 = vmul.f32 %v366, %v3276
        %v3378 = vmul.f32 %v367, %v3277
        %v3379 = vmul.f32 %v368, %v3278
        %v3380 = vmul.f32 %v369, %v3279
        %v3381 = vmul.f32 %v370, %v3280
        %v3382 = vmul.f32 %v371, %v3281
        %v3383 = vmul.f32 %v372, %v3282
        %v3384 = vmul.f32 %v373, %v3283
        %v3385 = vmul.f32 %v374, %v3284
        %v3386 = vmul.f32 %v375, %v3285
        %v3387 = vmul.f32 %v376, %v3286
        %v3388 = vmul.f32 %v377, %v3287
        %v3389 = vmul.f32 %v378, %v3288
        %v3390 = vmul.f32 %v379, %v3289
        %v3391 = vmul.f32 %v380, %v3290
        %v3392 = vmul.f32 %v381, %v3291
        %v3393 = vmul.f32 %v382, %v3292
        %v3394 = vmul.f32 %v383, %v3293
        %v3395 = vmul.f32 %v384, %v3294
        %v3396 = vmul.f32 %v385, %v3295
        %v3397 = vmul.f32 %v386, %v3296
        %v3398 = vmul.f32 %v387, %v3297
        %v3399 = vmul.f32 %v388, %v3298
        %v3400 = vmul.f32 %v389, %v3299
        %v3401 = vmul.f32 %v390, %v3300
        %v3402 = vmul.f32 %v391, %v3301
        %v3403 = vmul.f32 %v392, %v3302
        %v3404 = vmul.f32 %v393, %v3303
        %v3405 = vmul.f32 %v394, %v3304
        %v3406 = vmul.f32 %v395, %v3305
        %v3407 = vmul.f32 %v396, %v3306
        %v3409 = vperm.slane %v3308, 0
        %v3410 = vperm.slane %v3308, 1
        %3413 = vmatpush.msra.mxu0 %v3391
        %3414 = vmatpush.msra.mxu0 %v3390
        %3415 = vmatpush.msra.mxu0 %v3389
        %3416 = vmatpush.msra.mxu0 %v3388
        %3417 = vmatpush.msra.mxu0 %v3387
        %3418 = vmatpush.msra.mxu0 %v3386
        %3419 = vmatpush.msra.mxu0 %v3385
        %3420 = vmatpush.msra.mxu0 %v3384
        %3421 = vmatpush.msra.mxu0 %v3383
        %3422 = vmatpush.msra.mxu0 %v3382
        %3423 = vmatpush.msra.mxu0 %v3381
        %3424 = vmatpush.msra.mxu0 %v3380
        %3425 = vmatpush.msra.mxu0 %v3379
        %3426 = vmatpush.msra.mxu0 %v3378
        %3427 = vmatpush.msra.mxu0 %v3377
        %3428 = vmatpush.msra.mxu0 %v3376
        %3429 = vmatmul.f32.gmra.mxu0 %v3409
        %v3430 = vpop.f32.mrf.mxu0
        %v3431 = vadd.f32 0.0, %v3430
        %3432 = vdwg.mxu0
        %3433 = vmatpush.msra.mxu0 %v3407
        %3434 = vmatpush.msra.mxu0 %v3406
        %3435 = vmatpush.msra.mxu0 %v3405
        %3436 = vmatpush.msra.mxu0 %v3404
        %3437 = vmatpush.msra.mxu0 %v3403
        %3438 = vmatpush.msra.mxu0 %v3402
        %3439 = vmatpush.msra.mxu0 %v3401
        %3440 = vmatpush.msra.mxu0 %v3400
        %3441 = vmatpush.msra.mxu0 %v3399
        %3442 = vmatpush.msra.mxu0 %v3398
        %3443 = vmatpush.msra.mxu0 %v3397
        %3444 = vmatpush.msra.mxu0 %v3396
        %3445 = vmatpush.msra.mxu0 %v3395
        %3446 = vmatpush.msra.mxu0 %v3394
        %3447 = vmatpush.msra.mxu0 %v3393
        %3448 = vmatpush.msra.mxu0 %v3392
        %3449 = vmatmul.f32.gmra.mxu0 %v3410
        %v3450 = vpop.f32.mrf.mxu0
        %v3451 = vadd.f32 %v3431, %v3450
        %3452 = vdwg.mxu0
        %v3453 = vadd.f32 %v3375, %v3451
        %v3454 = vsel %vm573, %v3453, -inf
        %3455 = vmax.xlane.f32.xlu0 %v3454
        %v3456 = vpop.xlane.xlu0 %3455
        %v3457 = vsub.f32 %v3453, %v3456
        %v3458 = vmul.f32 %v3457, 1.442695
        %v3459 = vpow.pop %v3458
        %v3460 = vsel %vm573, %v3459, 0.0
        %3461 = vadd.xlane.f32.xlu0 %v3460
        %v3462 = vpop.xlane.xlu0 %3461
        %v3463 = vrcp.pop %v3462
        %v3464 = vmul.f32 %v3459, %v3463
        %3466 = vset.pattern.permute.xlu0 0
        %3467 = vperm.xlu0 %3466, %v3310
        %v3468 = vpop.permute.xlu0 %3467
        %3471 = vset.pattern.permute.xlu0 0
        %3472 = vperm.xlu0 %3471, %v3311
        %v3473 = vpop.permute.xlu0 %3472
        %3476 = vset.pattern.permute.xlu0 0
        %3477 = vperm.xlu0 %3476, %v3312
        %v3478 = vpop.permute.xlu0 %3477
        %3481 = vset.pattern.permute.xlu0 0
        %3482 = vperm.xlu0 %3481, %v3313
        %v3483 = vpop.permute.xlu0 %3482
        %3486 = vset.pattern.permute.xlu0 0
        %3487 = vperm.xlu0 %3486, %v3314
        %v3488 = vpop.permute.xlu0 %3487
        %3491 = vset.pattern.permute.xlu0 0
        %3492 = vperm.xlu0 %3491, %v3315
        %v3493 = vpop.permute.xlu0 %3492
        %3496 = vset.pattern.permute.xlu0 0
        %3497 = vperm.xlu0 %3496, %v3316
        %v3498 = vpop.permute.xlu0 %3497
        %3501 = vset.pattern.permute.xlu0 0
        %3502 = vperm.xlu0 %3501, %v3317
        %v3503 = vpop.permute.xlu0 %3502
        %3506 = vset.pattern.permute.xlu0 0
        %3507 = vperm.xlu0 %3506, %v3318
        %v3508 = vpop.permute.xlu0 %3507
        %3511 = vset.pattern.permute.xlu0 0
        %3512 = vperm.xlu0 %3511, %v3319
        %v3513 = vpop.permute.xlu0 %3512
        %3516 = vset.pattern.permute.xlu0 0
        %3517 = vperm.xlu0 %3516, %v3320
        %v3518 = vpop.permute.xlu0 %3517
        %3521 = vset.pattern.permute.xlu0 0
        %3522 = vperm.xlu0 %3521, %v3321
        %v3523 = vpop.permute.xlu0 %3522
        %3526 = vset.pattern.permute.xlu0 0
        %3527 = vperm.xlu0 %3526, %v3322
        %v3528 = vpop.permute.xlu0 %3527
        %3531 = vset.pattern.permute.xlu0 0
        %3532 = vperm.xlu0 %3531, %v3323
        %v3533 = vpop.permute.xlu0 %3532
        %3536 = vset.pattern.permute.xlu0 0
        %3537 = vperm.xlu0 %3536, %v3324
        %v3538 = vpop.permute.xlu0 %3537
        %3541 = vset.pattern.permute.xlu0 0
        %3542 = vperm.xlu0 %3541, %v3325
        %v3543 = vpop.permute.xlu0 %3542
        %3546 = vset.pattern.permute.xlu0 0
        %3547 = vperm.xlu0 %3546, %v3326
        %v3548 = vpop.permute.xlu0 %3547
        %3551 = vset.pattern.permute.xlu0 0
        %3552 = vperm.xlu0 %3551, %v3327
        %v3553 = vpop.permute.xlu0 %3552
        %3556 = vset.pattern.permute.xlu0 0
        %3557 = vperm.xlu0 %3556, %v3328
        %v3558 = vpop.permute.xlu0 %3557
        %3561 = vset.pattern.permute.xlu0 0
        %3562 = vperm.xlu0 %3561, %v3329
        %v3563 = vpop.permute.xlu0 %3562
        %3566 = vset.pattern.permute.xlu0 0
        %3567 = vperm.xlu0 %3566, %v3330
        %v3568 = vpop.permute.xlu0 %3567
        %3571 = vset.pattern.permute.xlu0 0
        %3572 = vperm.xlu0 %3571, %v3331
        %v3573 = vpop.permute.xlu0 %3572
        %3576 = vset.pattern.permute.xlu0 0
        %3577 = vperm.xlu0 %3576, %v3332
        %v3578 = vpop.permute.xlu0 %3577
        %3581 = vset.pattern.permute.xlu0 0
        %3582 = vperm.xlu0 %3581, %v3333
        %v3583 = vpop.permute.xlu0 %3582
        %3586 = vset.pattern.permute.xlu0 0
        %3587 = vperm.xlu0 %3586, %v3334
        %v3588 = vpop.permute.xlu0 %3587
        %3591 = vset.pattern.permute.xlu0 0
        %3592 = vperm.xlu0 %3591, %v3335
        %v3593 = vpop.permute.xlu0 %3592
        %3596 = vset.pattern.permute.xlu0 0
        %3597 = vperm.xlu0 %3596, %v3336
        %v3598 = vpop.permute.xlu0 %3597
        %3601 = vset.pattern.permute.xlu0 0
        %3602 = vperm.xlu0 %3601, %v3337
        %v3603 = vpop.permute.xlu0 %3602
        %3606 = vset.pattern.permute.xlu0 0
        %3607 = vperm.xlu0 %3606, %v3338
        %v3608 = vpop.permute.xlu0 %3607
        %3611 = vset.pattern.permute.xlu0 0
        %3612 = vperm.xlu0 %3611, %v3339
        %v3613 = vpop.permute.xlu0 %3612
        %3616 = vset.pattern.permute.xlu0 0
        %3617 = vperm.xlu0 %3616, %v3340
        %v3618 = vpop.permute.xlu0 %3617
        %3621 = vset.pattern.permute.xlu0 0
        %3622 = vperm.xlu0 %3621, %v3341
        %v3623 = vpop.permute.xlu0 %3622
        %v3625 = vperm.slane %v3464, 0
        %v3626 = vmul.f32 %v3468, %v3625
        %v3627 = vmul.f32 %v3473, %v3625
        %v3628 = vmul.f32 %v3478, %v3625
        %v3629 = vmul.f32 %v3483, %v3625
        %v3630 = vmul.f32 %v3488, %v3625
        %v3631 = vmul.f32 %v3493, %v3625
        %v3632 = vmul.f32 %v3498, %v3625
        %v3633 = vmul.f32 %v3503, %v3625
        %v3634 = vmul.f32 %v3508, %v3625
        %v3635 = vmul.f32 %v3513, %v3625
        %v3636 = vmul.f32 %v3518, %v3625
        %v3637 = vmul.f32 %v3523, %v3625
        %v3638 = vmul.f32 %v3528, %v3625
        %v3639 = vmul.f32 %v3533, %v3625
        %v3640 = vmul.f32 %v3538, %v3625
        %v3641 = vmul.f32 %v3543, %v3625
        %v3642 = vmul.f32 %v3548, %v3625
        %v3643 = vmul.f32 %v3553, %v3625
        %v3644 = vmul.f32 %v3558, %v3625
        %v3645 = vmul.f32 %v3563, %v3625
        %v3646 = vmul.f32 %v3568, %v3625
        %v3647 = vmul.f32 %v3573, %v3625
        %v3648 = vmul.f32 %v3578, %v3625
        %v3649 = vmul.f32 %v3583, %v3625
        %v3650 = vmul.f32 %v3588, %v3625
        %v3651 = vmul.f32 %v3593, %v3625
        %v3652 = vmul.f32 %v3598, %v3625
        %v3653 = vmul.f32 %v3603, %v3625
        %v3654 = vmul.f32 %v3608, %v3625
        %v3655 = vmul.f32 %v3613, %v3625
        %v3656 = vmul.f32 %v3618, %v3625
        %v3657 = vmul.f32 %v3623, %v3625
        %v3658 = vsub.f32 %v3626, %v3275
        %v3659 = vsub.f32 %v3627, %v3276
        %v3660 = vsub.f32 %v3628, %v3277
        %v3661 = vsub.f32 %v3629, %v3278
        %v3662 = vsub.f32 %v3630, %v3279
        %v3663 = vsub.f32 %v3631, %v3280
        %v3664 = vsub.f32 %v3632, %v3281
        %v3665 = vsub.f32 %v3633, %v3282
        %v3666 = vsub.f32 %v3634, %v3283
        %v3667 = vsub.f32 %v3635, %v3284
        %v3668 = vsub.f32 %v3636, %v3285
        %v3669 = vsub.f32 %v3637, %v3286
        %v3670 = vsub.f32 %v3638, %v3287
        %v3671 = vsub.f32 %v3639, %v3288
        %v3672 = vsub.f32 %v3640, %v3289
        %v3673 = vsub.f32 %v3641, %v3290
        %v3674 = vsub.f32 %v3642, %v3291
        %v3675 = vsub.f32 %v3643, %v3292
        %v3676 = vsub.f32 %v3644, %v3293
        %v3677 = vsub.f32 %v3645, %v3294
        %v3678 = vsub.f32 %v3646, %v3295
        %v3679 = vsub.f32 %v3647, %v3296
        %v3680 = vsub.f32 %v3648, %v3297
        %v3681 = vsub.f32 %v3649, %v3298
        %v3682 = vsub.f32 %v3650, %v3299
        %v3683 = vsub.f32 %v3651, %v3300
        %v3684 = vsub.f32 %v3652, %v3301
        %v3685 = vsub.f32 %v3653, %v3302
        %v3686 = vsub.f32 %v3654, %v3303
        %v3687 = vsub.f32 %v3655, %v3304
        %v3688 = vsub.f32 %v3656, %v3305
        %v3689 = vsub.f32 %v3657, %v3306
        %v3690 = vmul.f32 %v3343, %v3658
        %v3691 = vmul.f32 %v3344, %v3659
        %v3692 = vmul.f32 %v3345, %v3660
        %v3693 = vmul.f32 %v3346, %v3661
        %v3694 = vmul.f32 %v3347, %v3662
        %v3695 = vmul.f32 %v3348, %v3663
        %v3696 = vmul.f32 %v3349, %v3664
        %v3697 = vmul.f32 %v3350, %v3665
        %v3698 = vmul.f32 %v3351, %v3666
        %v3699 = vmul.f32 %v3352, %v3667
        %v3700 = vmul.f32 %v3353, %v3668
        %v3701 = vmul.f32 %v3354, %v3669
        %v3702 = vmul.f32 %v3355, %v3670
        %v3703 = vmul.f32 %v3356, %v3671
        %v3704 = vmul.f32 %v3357, %v3672
        %v3705 = vmul.f32 %v3358, %v3673
        %v3706 = vmul.f32 %v3359, %v3674
        %v3707 = vmul.f32 %v3360, %v3675
        %v3708 = vmul.f32 %v3361, %v3676
        %v3709 = vmul.f32 %v3362, %v3677
        %v3710 = vmul.f32 %v3363, %v3678
        %v3711 = vmul.f32 %v3364, %v3679
        %v3712 = vmul.f32 %v3365, %v3680
        %v3713 = vmul.f32 %v3366, %v3681
        %v3714 = vmul.f32 %v3367, %v3682
        %v3715 = vmul.f32 %v3368, %v3683
        %v3716 = vmul.f32 %v3369, %v3684
        %v3717 = vmul.f32 %v3370, %v3685
        %v3718 = vmul.f32 %v3371, %v3686
        %v3719 = vmul.f32 %v3372, %v3687
        %v3720 = vmul.f32 %v3373, %v3688
        %v3721 = vmul.f32 %v3374, %v3689
        %v3722 = vadd.f32 %v3275, %v3690
        %v3723 = vadd.f32 %v3276, %v3691
        %v3724 = vadd.f32 %v3277, %v3692
        %v3725 = vadd.f32 %v3278, %v3693
        %v3726 = vadd.f32 %v3279, %v3694
        %v3727 = vadd.f32 %v3280, %v3695
        %v3728 = vadd.f32 %v3281, %v3696
        %v3729 = vadd.f32 %v3282, %v3697
        %v3730 = vadd.f32 %v3283, %v3698
        %v3731 = vadd.f32 %v3284, %v3699
        %v3732 = vadd.f32 %v3285, %v3700
        %v3733 = vadd.f32 %v3286, %v3701
        %v3734 = vadd.f32 %v3287, %v3702
        %v3735 = vadd.f32 %v3288, %v3703
        %v3736 = vadd.f32 %v3289, %v3704
        %v3737 = vadd.f32 %v3290, %v3705
        %v3738 = vadd.f32 %v3291, %v3706
        %v3739 = vadd.f32 %v3292, %v3707
        %v3740 = vadd.f32 %v3293, %v3708
        %v3741 = vadd.f32 %v3294, %v3709
        %v3742 = vadd.f32 %v3295, %v3710
        %v3743 = vadd.f32 %v3296, %v3711
        %v3744 = vadd.f32 %v3297, %v3712
        %v3745 = vadd.f32 %v3298, %v3713
        %v3746 = vadd.f32 %v3299, %v3714
        %v3747 = vadd.f32 %v3300, %v3715
        %v3748 = vadd.f32 %v3301, %v3716
        %v3749 = vadd.f32 %v3302, %v3717
        %v3750 = vadd.f32 %v3303, %v3718
        %v3751 = vadd.f32 %v3304, %v3719
        %v3752 = vadd.f32 %v3305, %v3720
        %v3753 = vadd.f32 %v3306, %v3721
        %v3754 = vmax.f32 %v3722, -1.0
        %v3755 = vmax.f32 %v3723, -1.0
        %v3756 = vmax.f32 %v3724, -1.0
        %v3757 = vmax.f32 %v3725, -1.0
        %v3758 = vmax.f32 %v3726, -1.0
        %v3759 = vmax.f32 %v3727, -1.0
        %v3760 = vmax.f32 %v3728, -1.0
        %v3761 = vmax.f32 %v3729, -1.0
        %v3762 = vmax.f32 %v3730, -1.0
        %v3763 = vmax.f32 %v3731, -1.0
        %v3764 = vmax.f32 %v3732, -1.0
        %v3765 = vmax.f32 %v3733, -1.0
        %v3766 = vmax.f32 %v3734, -1.0
        %v3767 = vmax.f32 %v3735, -1.0
        %v3768 = vmax.f32 %v3736, -1.0
        %v3769 = vmax.f32 %v3737, -1.0
        %v3770 = vmax.f32 %v3738, -1.0
        %v3771 = vmax.f32 %v3739, -1.0
        %v3772 = vmax.f32 %v3740, -1.0
        %v3773 = vmax.f32 %v3741, -1.0
        %v3774 = vmax.f32 %v3742, -1.0
        %v3775 = vmax.f32 %v3743, -1.0
        %v3776 = vmax.f32 %v3744, -1.0
        %v3777 = vmax.f32 %v3745, -1.0
        %v3778 = vmax.f32 %v3746, -1.0
        %v3779 = vmax.f32 %v3747, -1.0
        %v3780 = vmax.f32 %v3748, -1.0
        %v3781 = vmax.f32 %v3749, -1.0
        %v3782 = vmax.f32 %v3750, -1.0
        %v3783 = vmax.f32 %v3751, -1.0
        %v3784 = vmax.f32 %v3752, -1.0
        %v3785 = vmax.f32 %v3753, -1.0
        %v3786 = vmin.f32 %v3754, 1.0
        %v3787 = vmin.f32 %v3755, 1.0
        %v3788 = vmin.f32 %v3756, 1.0
        %v3789 = vmin.f32 %v3757, 1.0
        %v3790 = vmin.f32 %v3758, 1.0
        %v3791 = vmin.f32 %v3759, 1.0
        %v3792 = vmin.f32 %v3760, 1.0
        %v3793 = vmin.f32 %v3761, 1.0
        %v3794 = vmin.f32 %v3762, 1.0
        %v3795 = vmin.f32 %v3763, 1.0
        %v3796 = vmin.f32 %v3764, 1.0
        %v3797 = vmin.f32 %v3765, 1.0
        %v3798 = vmin.f32 %v3766, 1.0
        %v3799 = vmin.f32 %v3767, 1.0
        %v3800 = vmin.f32 %v3768, 1.0
        %v3801 = vmin.f32 %v3769, 1.0
        %v3802 = vmin.f32 %v3770, 1.0
        %v3803 = vmin.f32 %v3771, 1.0
        %v3804 = vmin.f32 %v3772, 1.0
        %v3805 = vmin.f32 %v3773, 1.0
        %v3806 = vmin.f32 %v3774, 1.0
        %v3807 = vmin.f32 %v3775, 1.0
        %v3808 = vmin.f32 %v3776, 1.0
        %v3809 = vmin.f32 %v3777, 1.0
        %v3810 = vmin.f32 %v3778, 1.0
        %v3811 = vmin.f32 %v3779, 1.0
        %v3812 = vmin.f32 %v3780, 1.0
        %v3813 = vmin.f32 %v3781, 1.0
        %v3814 = vmin.f32 %v3782, 1.0
        %v3815 = vmin.f32 %v3783, 1.0
        %v3816 = vmin.f32 %v3784, 1.0
        %v3817 = vmin.f32 %v3785, 1.0
        %3818 = vst [vmem:[#allocation2] sm:$0xff] %v3786
        %3819 = vst [vmem:[#allocation2 + $0x8] sm:$0xff] %v3787
        %3820 = vst [vmem:[#allocation2 + $0x10] sm:$0xff] %v3788
        %3821 = vst [vmem:[#allocation2 + $0x18] sm:$0xff] %v3789
        %3822 = vst [vmem:[#allocation2 + $0x20] sm:$0xff] %v3790
        %3823 = vst [vmem:[#allocation2 + $0x28] sm:$0xff] %v3791
        %3824 = vst [vmem:[#allocation2 + $0x30] sm:$0xff] %v3792
        %3825 = vst [vmem:[#allocation2 + $0x38] sm:$0xff] %v3793
        %3826 = vst [vmem:[#allocation2 + $0x40] sm:$0xff] %v3794
        %3827 = vst [vmem:[#allocation2 + $0x48] sm:$0xff] %v3795
        %3828 = vst [vmem:[#allocation2 + $0x50] sm:$0xff] %v3796
        %3829 = vst [vmem:[#allocation2 + $0x58] sm:$0xff] %v3797
        %3830 = vst [vmem:[#allocation2 + $0x60] sm:$0xff] %v3798
        %3831 = vst [vmem:[#allocation2 + $0x68] sm:$0xff] %v3799
        %3832 = vst [vmem:[#allocation2 + $0x70] sm:$0xff] %v3800
        %3833 = vst [vmem:[#allocation2 + $0x78] sm:$0xff] %v3801
        %3834 = vst [vmem:[#allocation2 + $0x80] sm:$0xff] %v3802
        %3835 = vst [vmem:[#allocation2 + $0x88] sm:$0xff] %v3803
        %3836 = vst [vmem:[#allocation2 + $0x90] sm:$0xff] %v3804
        %3837 = vst [vmem:[#allocation2 + $0x98] sm:$0xff] %v3805
        %3838 = vst [vmem:[#allocation2 + $0xa0] sm:$0xff] %v3806
        %3839 = vst [vmem:[#allocation2 + $0xa8] sm:$0xff] %v3807
        %3840 = vst [vmem:[#allocation2 + $0xb0] sm:$0xff] %v3808
        %3841 = vst [vmem:[#allocation2 + $0xb8] sm:$0xff] %v3809
        %3842 = vst [vmem:[#allocation2 + $0xc0] sm:$0xff] %v3810
        %3843 = vst [vmem:[#allocation2 + $0xc8] sm:$0xff] %v3811
        %3844 = vst [vmem:[#allocation2 + $0xd0] sm:$0xff] %v3812
        %3845 = vst [vmem:[#allocation2 + $0xd8] sm:$0xff] %v3813
        %3846 = vst [vmem:[#allocation2 + $0xe0] sm:$0xff] %v3814
        %3847 = vst [vmem:[#allocation2 + $0xe8] sm:$0xff] %v3815
        %3848 = vst [vmem:[#allocation2 + $0xf0] sm:$0xff] %v3816
        %3849 = vst [vmem:[#allocation2 + $0xf8] sm:$0xff] %v3817
        %3850 = vst [vmem:[%s309 + $0x5] sm:$0x1] %v3464
        %v3851 = vld [vmem:[#allocation2] sm:$0xff]
        %v3852 = vld [vmem:[#allocation2 + $0x8] sm:$0xff]
        %v3853 = vld [vmem:[#allocation2 + $0x10] sm:$0xff]
        %v3854 = vld [vmem:[#allocation2 + $0x18] sm:$0xff]
        %v3855 = vld [vmem:[#allocation2 + $0x20] sm:$0xff]
        %v3856 = vld [vmem:[#allocation2 + $0x28] sm:$0xff]
        %v3857 = vld [vmem:[#allocation2 + $0x30] sm:$0xff]
        %v3858 = vld [vmem:[#allocation2 + $0x38] sm:$0xff]
        %v3859 = vld [vmem:[#allocation2 + $0x40] sm:$0xff]
        %v3860 = vld [vmem:[#allocation2 + $0x48] sm:$0xff]
        %v3861 = vld [vmem:[#allocation2 + $0x50] sm:$0xff]
        %v3862 = vld [vmem:[#allocation2 + $0x58] sm:$0xff]
        %v3863 = vld [vmem:[#allocation2 + $0x60] sm:$0xff]
        %v3864 = vld [vmem:[#allocation2 + $0x68] sm:$0xff]
        %v3865 = vld [vmem:[#allocation2 + $0x70] sm:$0xff]
        %v3866 = vld [vmem:[#allocation2 + $0x78] sm:$0xff]
        %v3867 = vld [vmem:[#allocation2 + $0x80] sm:$0xff]
        %v3868 = vld [vmem:[#allocation2 + $0x88] sm:$0xff]
        %v3869 = vld [vmem:[#allocation2 + $0x90] sm:$0xff]
        %v3870 = vld [vmem:[#allocation2 + $0x98] sm:$0xff]
        %v3871 = vld [vmem:[#allocation2 + $0xa0] sm:$0xff]
        %v3872 = vld [vmem:[#allocation2 + $0xa8] sm:$0xff]
        %v3873 = vld [vmem:[#allocation2 + $0xb0] sm:$0xff]
        %v3874 = vld [vmem:[#allocation2 + $0xb8] sm:$0xff]
        %v3875 = vld [vmem:[#allocation2 + $0xc0] sm:$0xff]
        %v3876 = vld [vmem:[#allocation2 + $0xc8] sm:$0xff]
        %v3877 = vld [vmem:[#allocation2 + $0xd0] sm:$0xff]
        %v3878 = vld [vmem:[#allocation2 + $0xd8] sm:$0xff]
        %v3879 = vld [vmem:[#allocation2 + $0xe0] sm:$0xff]
        %v3880 = vld [vmem:[#allocation2 + $0xe8] sm:$0xff]
        %v3881 = vld [vmem:[#allocation2 + $0xf0] sm:$0xff]
        %v3882 = vld [vmem:[#allocation2 + $0xf8] sm:$0xff]
        %s3883 = scalar_lea.vmem %s314, 6
        %v3884 = vld [vmem:[%s3883] ss:$8 sm:$0x3]
        %s3885 = scalar_lea.vmem %s320, 1536
        %v3886 = vld [vmem:[%s3885] sm:$0xff]
        %v3887 = vld [vmem:[%s3885 + $0x8] sm:$0xff]
        %v3888 = vld [vmem:[%s3885 + $0x10] sm:$0xff]
        %v3889 = vld [vmem:[%s3885 + $0x18] sm:$0xff]
        %v3890 = vld [vmem:[%s3885 + $0x20] sm:$0xff]
        %v3891 = vld [vmem:[%s3885 + $0x28] sm:$0xff]
        %v3892 = vld [vmem:[%s3885 + $0x30] sm:$0xff]
        %v3893 = vld [vmem:[%s3885 + $0x38] sm:$0xff]
        %v3894 = vld [vmem:[%s3885 + $0x40] sm:$0xff]
        %v3895 = vld [vmem:[%s3885 + $0x48] sm:$0xff]
        %v3896 = vld [vmem:[%s3885 + $0x50] sm:$0xff]
        %v3897 = vld [vmem:[%s3885 + $0x58] sm:$0xff]
        %v3898 = vld [vmem:[%s3885 + $0x60] sm:$0xff]
        %v3899 = vld [vmem:[%s3885 + $0x68] sm:$0xff]
        %v3900 = vld [vmem:[%s3885 + $0x70] sm:$0xff]
        %v3901 = vld [vmem:[%s3885 + $0x78] sm:$0xff]
        %v3902 = vld [vmem:[%s3885 + $0x80] sm:$0xff]
        %v3903 = vld [vmem:[%s3885 + $0x88] sm:$0xff]
        %v3904 = vld [vmem:[%s3885 + $0x90] sm:$0xff]
        %v3905 = vld [vmem:[%s3885 + $0x98] sm:$0xff]
        %v3906 = vld [vmem:[%s3885 + $0xa0] sm:$0xff]
        %v3907 = vld [vmem:[%s3885 + $0xa8] sm:$0xff]
        %v3908 = vld [vmem:[%s3885 + $0xb0] sm:$0xff]
        %v3909 = vld [vmem:[%s3885 + $0xb8] sm:$0xff]
        %v3910 = vld [vmem:[%s3885 + $0xc0] sm:$0xff]
        %v3911 = vld [vmem:[%s3885 + $0xc8] sm:$0xff]
        %v3912 = vld [vmem:[%s3885 + $0xd0] sm:$0xff]
        %v3913 = vld [vmem:[%s3885 + $0xd8] sm:$0xff]
        %v3914 = vld [vmem:[%s3885 + $0xe0] sm:$0xff]
        %v3915 = vld [vmem:[%s3885 + $0xe8] sm:$0xff]
        %v3916 = vld [vmem:[%s3885 + $0xf0] sm:$0xff]
        %v3917 = vld [vmem:[%s3885 + $0xf8] sm:$0xff]
        %s3918 = scalar_lea.vmem %s327, 1536
        %v3919 = vld [vmem:[%s3918] sm:$0xff]
        %v3920 = vld [vmem:[%s3918 + $0x8] sm:$0xff]
        %v3921 = vld [vmem:[%s3918 + $0x10] sm:$0xff]
        %v3922 = vld [vmem:[%s3918 + $0x18] sm:$0xff]
        %v3923 = vld [vmem:[%s3918 + $0x20] sm:$0xff]
        %v3924 = vld [vmem:[%s3918 + $0x28] sm:$0xff]
        %v3925 = vld [vmem:[%s3918 + $0x30] sm:$0xff]
        %v3926 = vld [vmem:[%s3918 + $0x38] sm:$0xff]
        %v3927 = vld [vmem:[%s3918 + $0x40] sm:$0xff]
        %v3928 = vld [vmem:[%s3918 + $0x48] sm:$0xff]
        %v3929 = vld [vmem:[%s3918 + $0x50] sm:$0xff]
        %v3930 = vld [vmem:[%s3918 + $0x58] sm:$0xff]
        %v3931 = vld [vmem:[%s3918 + $0x60] sm:$0xff]
        %v3932 = vld [vmem:[%s3918 + $0x68] sm:$0xff]
        %v3933 = vld [vmem:[%s3918 + $0x70] sm:$0xff]
        %v3934 = vld [vmem:[%s3918 + $0x78] sm:$0xff]
        %v3935 = vld [vmem:[%s3918 + $0x80] sm:$0xff]
        %v3936 = vld [vmem:[%s3918 + $0x88] sm:$0xff]
        %v3937 = vld [vmem:[%s3918 + $0x90] sm:$0xff]
        %v3938 = vld [vmem:[%s3918 + $0x98] sm:$0xff]
        %v3939 = vld [vmem:[%s3918 + $0xa0] sm:$0xff]
        %v3940 = vld [vmem:[%s3918 + $0xa8] sm:$0xff]
        %v3941 = vld [vmem:[%s3918 + $0xb0] sm:$0xff]
        %v3942 = vld [vmem:[%s3918 + $0xb8] sm:$0xff]
        %v3943 = vld [vmem:[%s3918 + $0xc0] sm:$0xff]
        %v3944 = vld [vmem:[%s3918 + $0xc8] sm:$0xff]
        %v3945 = vld [vmem:[%s3918 + $0xd0] sm:$0xff]
        %v3946 = vld [vmem:[%s3918 + $0xd8] sm:$0xff]
        %v3947 = vld [vmem:[%s3918 + $0xe0] sm:$0xff]
        %v3948 = vld [vmem:[%s3918 + $0xe8] sm:$0xff]
        %v3949 = vld [vmem:[%s3918 + $0xf0] sm:$0xff]
        %v3950 = vld [vmem:[%s3918 + $0xf8] sm:$0xff]
        %v3951 = vld [vmem:[%s260 + $0x6] sm:$0x1]
        %v3952 = vmul.f32 %v365, %v3851
        %v3953 = vmul.f32 %v366, %v3852
        %v3954 = vmul.f32 %v367, %v3853
        %v3955 = vmul.f32 %v368, %v3854
        %v3956 = vmul.f32 %v369, %v3855
        %v3957 = vmul.f32 %v370, %v3856
        %v3958 = vmul.f32 %v371, %v3857
        %v3959 = vmul.f32 %v372, %v3858
        %v3960 = vmul.f32 %v373, %v3859
        %v3961 = vmul.f32 %v374, %v3860
        %v3962 = vmul.f32 %v375, %v3861
        %v3963 = vmul.f32 %v376, %v3862
        %v3964 = vmul.f32 %v377, %v3863
        %v3965 = vmul.f32 %v378, %v3864
        %v3966 = vmul.f32 %v379, %v3865
        %v3967 = vmul.f32 %v380, %v3866
        %v3968 = vmul.f32 %v381, %v3867
        %v3969 = vmul.f32 %v382, %v3868
        %v3970 = vmul.f32 %v383, %v3869
        %v3971 = vmul.f32 %v384, %v3870
        %v3972 = vmul.f32 %v385, %v3871
        %v3973 = vmul.f32 %v386, %v3872
        %v3974 = vmul.f32 %v387, %v3873
        %v3975 = vmul.f32 %v388, %v3874
        %v3976 = vmul.f32 %v389, %v3875
        %v3977 = vmul.f32 %v390, %v3876
        %v3978 = vmul.f32 %v391, %v3877
        %v3979 = vmul.f32 %v392, %v3878
        %v3980 = vmul.f32 %v393, %v3879
        %v3981 = vmul.f32 %v394, %v3880
        %v3982 = vmul.f32 %v395, %v3881
        %v3983 = vmul.f32 %v396, %v3882
        %v3985 = vperm.slane %v3884, 0
        %v3986 = vperm.slane %v3884, 1
        %3989 = vmatpush.msra.mxu0 %v3967
        %3990 = vmatpush.msra.mxu0 %v3966
        %3991 = vmatpush.msra.mxu0 %v3965
        %3992 = vmatpush.msra.mxu0 %v3964
        %3993 = vmatpush.msra.mxu0 %v3963
        %3994 = vmatpush.msra.mxu0 %v3962
        %3995 = vmatpush.msra.mxu0 %v3961
        %3996 = vmatpush.msra.mxu0 %v3960
        %3997 = vmatpush.msra.mxu0 %v3959
        %3998 = vmatpush.msra.mxu0 %v3958
        %3999 = vmatpush.msra.mxu0 %v3957
        %4000 = vmatpush.msra.mxu0 %v3956
        %4001 = vmatpush.msra.mxu0 %v3955
        %4002 = vmatpush.msra.mxu0 %v3954
        %4003 = vmatpush.msra.mxu0 %v3953
        %4004 = vmatpush.msra.mxu0 %v3952
        %4005 = vmatmul.f32.gmra.mxu0 %v3985
        %v4006 = vpop.f32.mrf.mxu0
        %v4007 = vadd.f32 0.0, %v4006
        %4008 = vdwg.mxu0
        %4009 = vmatpush.msra.mxu0 %v3983
        %4010 = vmatpush.msra.mxu0 %v3982
        %4011 = vmatpush.msra.mxu0 %v3981
        %4012 = vmatpush.msra.mxu0 %v3980
        %4013 = vmatpush.msra.mxu0 %v3979
        %4014 = vmatpush.msra.mxu0 %v3978
        %4015 = vmatpush.msra.mxu0 %v3977
        %4016 = vmatpush.msra.mxu0 %v3976
        %4017 = vmatpush.msra.mxu0 %v3975
        %4018 = vmatpush.msra.mxu0 %v3974
        %4019 = vmatpush.msra.mxu0 %v3973
        %4020 = vmatpush.msra.mxu0 %v3972
        %4021 = vmatpush.msra.mxu0 %v3971
        %4022 = vmatpush.msra.mxu0 %v3970
        %4023 = vmatpush.msra.mxu0 %v3969
        %4024 = vmatpush.msra.mxu0 %v3968
        %4025 = vmatmul.f32.gmra.mxu0 %v3986
        %v4026 = vpop.f32.mrf.mxu0
        %v4027 = vadd.f32 %v4007, %v4026
        %4028 = vdwg.mxu0
        %v4029 = vadd.f32 %v3951, %v4027
        %v4030 = vsel %vm573, %v4029, -inf
        %4031 = vmax.xlane.f32.xlu0 %v4030
        %v4032 = vpop.xlane.xlu0 %4031
        %v4033 = vsub.f32 %v4029, %v4032
        %v4034 = vmul.f32 %v4033, 1.442695
        %v4035 = vpow.pop %v4034
        %v4036 = vsel %vm573, %v4035, 0.0
        %4037 = vadd.xlane.f32.xlu0 %v4036
        %v4038 = vpop.xlane.xlu0 %4037
        %v4039 = vrcp.pop %v4038
        %v4040 = vmul.f32 %v4035, %v4039
        %4042 = vset.pattern.permute.xlu0 0
        %4043 = vperm.xlu0 %4042, %v3886
        %v4044 = vpop.permute.xlu0 %4043
        %4047 = vset.pattern.permute.xlu0 0
        %4048 = vperm.xlu0 %4047, %v3887
        %v4049 = vpop.permute.xlu0 %4048
        %4052 = vset.pattern.permute.xlu0 0
        %4053 = vperm.xlu0 %4052, %v3888
        %v4054 = vpop.permute.xlu0 %4053
        %4057 = vset.pattern.permute.xlu0 0
        %4058 = vperm.xlu0 %4057, %v3889
        %v4059 = vpop.permute.xlu0 %4058
        %4062 = vset.pattern.permute.xlu0 0
        %4063 = vperm.xlu0 %4062, %v3890
        %v4064 = vpop.permute.xlu0 %4063
        %4067 = vset.pattern.permute.xlu0 0
        %4068 = vperm.xlu0 %4067, %v3891
        %v4069 = vpop.permute.xlu0 %4068
        %4072 = vset.pattern.permute.xlu0 0
        %4073 = vperm.xlu0 %4072, %v3892
        %v4074 = vpop.permute.xlu0 %4073
        %4077 = vset.pattern.permute.xlu0 0
        %4078 = vperm.xlu0 %4077, %v3893
        %v4079 = vpop.permute.xlu0 %4078
        %4082 = vset.pattern.permute.xlu0 0
        %4083 = vperm.xlu0 %4082, %v3894
        %v4084 = vpop.permute.xlu0 %4083
        %4087 = vset.pattern.permute.xlu0 0
        %4088 = vperm.xlu0 %4087, %v3895
        %v4089 = vpop.permute.xlu0 %4088
        %4092 = vset.pattern.permute.xlu0 0
        %4093 = vperm.xlu0 %4092, %v3896
        %v4094 = vpop.permute.xlu0 %4093
        %4097 = vset.pattern.permute.xlu0 0
        %4098 = vperm.xlu0 %4097, %v3897
        %v4099 = vpop.permute.xlu0 %4098
        %4102 = vset.pattern.permute.xlu0 0
        %4103 = vperm.xlu0 %4102, %v3898
        %v4104 = vpop.permute.xlu0 %4103
        %4107 = vset.pattern.permute.xlu0 0
        %4108 = vperm.xlu0 %4107, %v3899
        %v4109 = vpop.permute.xlu0 %4108
        %4112 = vset.pattern.permute.xlu0 0
        %4113 = vperm.xlu0 %4112, %v3900
        %v4114 = vpop.permute.xlu0 %4113
        %4117 = vset.pattern.permute.xlu0 0
        %4118 = vperm.xlu0 %4117, %v3901
        %v4119 = vpop.permute.xlu0 %4118
        %4122 = vset.pattern.permute.xlu0 0
        %4123 = vperm.xlu0 %4122, %v3902
        %v4124 = vpop.permute.xlu0 %4123
        %4127 = vset.pattern.permute.xlu0 0
        %4128 = vperm.xlu0 %4127, %v3903
        %v4129 = vpop.permute.xlu0 %4128
        %4132 = vset.pattern.permute.xlu0 0
        %4133 = vperm.xlu0 %4132, %v3904
        %v4134 = vpop.permute.xlu0 %4133
        %4137 = vset.pattern.permute.xlu0 0
        %4138 = vperm.xlu0 %4137, %v3905
        %v4139 = vpop.permute.xlu0 %4138
        %4142 = vset.pattern.permute.xlu0 0
        %4143 = vperm.xlu0 %4142, %v3906
        %v4144 = vpop.permute.xlu0 %4143
        %4147 = vset.pattern.permute.xlu0 0
        %4148 = vperm.xlu0 %4147, %v3907
        %v4149 = vpop.permute.xlu0 %4148
        %4152 = vset.pattern.permute.xlu0 0
        %4153 = vperm.xlu0 %4152, %v3908
        %v4154 = vpop.permute.xlu0 %4153
        %4157 = vset.pattern.permute.xlu0 0
        %4158 = vperm.xlu0 %4157, %v3909
        %v4159 = vpop.permute.xlu0 %4158
        %4162 = vset.pattern.permute.xlu0 0
        %4163 = vperm.xlu0 %4162, %v3910
        %v4164 = vpop.permute.xlu0 %4163
        %4167 = vset.pattern.permute.xlu0 0
        %4168 = vperm.xlu0 %4167, %v3911
        %v4169 = vpop.permute.xlu0 %4168
        %4172 = vset.pattern.permute.xlu0 0
        %4173 = vperm.xlu0 %4172, %v3912
        %v4174 = vpop.permute.xlu0 %4173
        %4177 = vset.pattern.permute.xlu0 0
        %4178 = vperm.xlu0 %4177, %v3913
        %v4179 = vpop.permute.xlu0 %4178
        %4182 = vset.pattern.permute.xlu0 0
        %4183 = vperm.xlu0 %4182, %v3914
        %v4184 = vpop.permute.xlu0 %4183
        %4187 = vset.pattern.permute.xlu0 0
        %4188 = vperm.xlu0 %4187, %v3915
        %v4189 = vpop.permute.xlu0 %4188
        %4192 = vset.pattern.permute.xlu0 0
        %4193 = vperm.xlu0 %4192, %v3916
        %v4194 = vpop.permute.xlu0 %4193
        %4197 = vset.pattern.permute.xlu0 0
        %4198 = vperm.xlu0 %4197, %v3917
        %v4199 = vpop.permute.xlu0 %4198
        %v4201 = vperm.slane %v4040, 0
        %v4202 = vmul.f32 %v4044, %v4201
        %v4203 = vmul.f32 %v4049, %v4201
        %v4204 = vmul.f32 %v4054, %v4201
        %v4205 = vmul.f32 %v4059, %v4201
        %v4206 = vmul.f32 %v4064, %v4201
        %v4207 = vmul.f32 %v4069, %v4201
        %v4208 = vmul.f32 %v4074, %v4201
        %v4209 = vmul.f32 %v4079, %v4201
        %v4210 = vmul.f32 %v4084, %v4201
        %v4211 = vmul.f32 %v4089, %v4201
        %v4212 = vmul.f32 %v4094, %v4201
        %v4213 = vmul.f32 %v4099, %v4201
        %v4214 = vmul.f32 %v4104, %v4201
        %v4215 = vmul.f32 %v4109, %v4201
        %v4216 = vmul.f32 %v4114, %v4201
        %v4217 = vmul.f32 %v4119, %v4201
        %v4218 = vmul.f32 %v4124, %v4201
        %v4219 = vmul.f32 %v4129, %v4201
        %v4220 = vmul.f32 %v4134, %v4201
        %v4221 = vmul.f32 %v4139, %v4201
        %v4222 = vmul.f32 %v4144, %v4201
        %v4223 = vmul.f32 %v4149, %v4201
        %v4224 = vmul.f32 %v4154, %v4201
        %v4225 = vmul.f32 %v4159, %v4201
        %v4226 = vmul.f32 %v4164, %v4201
        %v4227 = vmul.f32 %v4169, %v4201
        %v4228 = vmul.f32 %v4174, %v4201
        %v4229 = vmul.f32 %v4179, %v4201
        %v4230 = vmul.f32 %v4184, %v4201
        %v4231 = vmul.f32 %v4189, %v4201
        %v4232 = vmul.f32 %v4194, %v4201
        %v4233 = vmul.f32 %v4199, %v4201
        %v4234 = vsub.f32 %v4202, %v3851
        %v4235 = vsub.f32 %v4203, %v3852
        %v4236 = vsub.f32 %v4204, %v3853
        %v4237 = vsub.f32 %v4205, %v3854
        %v4238 = vsub.f32 %v4206, %v3855
        %v4239 = vsub.f32 %v4207, %v3856
        %v4240 = vsub.f32 %v4208, %v3857
        %v4241 = vsub.f32 %v4209, %v3858
        %v4242 = vsub.f32 %v4210, %v3859
        %v4243 = vsub.f32 %v4211, %v3860
        %v4244 = vsub.f32 %v4212, %v3861
        %v4245 = vsub.f32 %v4213, %v3862
        %v4246 = vsub.f32 %v4214, %v3863
        %v4247 = vsub.f32 %v4215, %v3864
        %v4248 = vsub.f32 %v4216, %v3865
        %v4249 = vsub.f32 %v4217, %v3866
        %v4250 = vsub.f32 %v4218, %v3867
        %v4251 = vsub.f32 %v4219, %v3868
        %v4252 = vsub.f32 %v4220, %v3869
        %v4253 = vsub.f32 %v4221, %v3870
        %v4254 = vsub.f32 %v4222, %v3871
        %v4255 = vsub.f32 %v4223, %v3872
        %v4256 = vsub.f32 %v4224, %v3873
        %v4257 = vsub.f32 %v4225, %v3874
        %v4258 = vsub.f32 %v4226, %v3875
        %v4259 = vsub.f32 %v4227, %v3876
        %v4260 = vsub.f32 %v4228, %v3877
        %v4261 = vsub.f32 %v4229, %v3878
        %v4262 = vsub.f32 %v4230, %v3879
        %v4263 = vsub.f32 %v4231, %v3880
        %v4264 = vsub.f32 %v4232, %v3881
        %v4265 = vsub.f32 %v4233, %v3882
        %v4266 = vmul.f32 %v3919, %v4234
        %v4267 = vmul.f32 %v3920, %v4235
        %v4268 = vmul.f32 %v3921, %v4236
        %v4269 = vmul.f32 %v3922, %v4237
        %v4270 = vmul.f32 %v3923, %v4238
        %v4271 = vmul.f32 %v3924, %v4239
        %v4272 = vmul.f32 %v3925, %v4240
        %v4273 = vmul.f32 %v3926, %v4241
        %v4274 = vmul.f32 %v3927, %v4242
        %v4275 = vmul.f32 %v3928, %v4243
        %v4276 = vmul.f32 %v3929, %v4244
        %v4277 = vmul.f32 %v3930, %v4245
        %v4278 = vmul.f32 %v3931, %v4246
        %v4279 = vmul.f32 %v3932, %v4247
        %v4280 = vmul.f32 %v3933, %v4248
        %v4281 = vmul.f32 %v3934, %v4249
        %v4282 = vmul.f32 %v3935, %v4250
        %v4283 = vmul.f32 %v3936, %v4251
        %v4284 = vmul.f32 %v3937, %v4252
        %v4285 = vmul.f32 %v3938, %v4253
        %v4286 = vmul.f32 %v3939, %v4254
        %v4287 = vmul.f32 %v3940, %v4255
        %v4288 = vmul.f32 %v3941, %v4256
        %v4289 = vmul.f32 %v3942, %v4257
        %v4290 = vmul.f32 %v3943, %v4258
        %v4291 = vmul.f32 %v3944, %v4259
        %v4292 = vmul.f32 %v3945, %v4260
        %v4293 = vmul.f32 %v3946, %v4261
        %v4294 = vmul.f32 %v3947, %v4262
        %v4295 = vmul.f32 %v3948, %v4263
        %v4296 = vmul.f32 %v3949, %v4264
        %v4297 = vmul.f32 %v3950, %v4265
        %v4298 = vadd.f32 %v3851, %v4266
        %v4299 = vadd.f32 %v3852, %v4267
        %v4300 = vadd.f32 %v3853, %v4268
        %v4301 = vadd.f32 %v3854, %v4269
        %v4302 = vadd.f32 %v3855, %v4270
        %v4303 = vadd.f32 %v3856, %v4271
        %v4304 = vadd.f32 %v3857, %v4272
        %v4305 = vadd.f32 %v3858, %v4273
        %v4306 = vadd.f32 %v3859, %v4274
        %v4307 = vadd.f32 %v3860, %v4275
        %v4308 = vadd.f32 %v3861, %v4276
        %v4309 = vadd.f32 %v3862, %v4277
        %v4310 = vadd.f32 %v3863, %v4278
        %v4311 = vadd.f32 %v3864, %v4279
        %v4312 = vadd.f32 %v3865, %v4280
        %v4313 = vadd.f32 %v3866, %v4281
        %v4314 = vadd.f32 %v3867, %v4282
        %v4315 = vadd.f32 %v3868, %v4283
        %v4316 = vadd.f32 %v3869, %v4284
        %v4317 = vadd.f32 %v3870, %v4285
        %v4318 = vadd.f32 %v3871, %v4286
        %v4319 = vadd.f32 %v3872, %v4287
        %v4320 = vadd.f32 %v3873, %v4288
        %v4321 = vadd.f32 %v3874, %v4289
        %v4322 = vadd.f32 %v3875, %v4290
        %v4323 = vadd.f32 %v3876, %v4291
        %v4324 = vadd.f32 %v3877, %v4292
        %v4325 = vadd.f32 %v3878, %v4293
        %v4326 = vadd.f32 %v3879, %v4294
        %v4327 = vadd.f32 %v3880, %v4295
        %v4328 = vadd.f32 %v3881, %v4296
        %v4329 = vadd.f32 %v3882, %v4297
        %v4330 = vmax.f32 %v4298, -1.0
        %v4331 = vmax.f32 %v4299, -1.0
        %v4332 = vmax.f32 %v4300, -1.0
        %v4333 = vmax.f32 %v4301, -1.0
        %v4334 = vmax.f32 %v4302, -1.0
        %v4335 = vmax.f32 %v4303, -1.0
        %v4336 = vmax.f32 %v4304, -1.0
        %v4337 = vmax.f32 %v4305, -1.0
        %v4338 = vmax.f32 %v4306, -1.0
        %v4339 = vmax.f32 %v4307, -1.0
        %v4340 = vmax.f32 %v4308, -1.0
        %v4341 = vmax.f32 %v4309, -1.0
        %v4342 = vmax.f32 %v4310, -1.0
        %v4343 = vmax.f32 %v4311, -1.0
        %v4344 = vmax.f32 %v4312, -1.0
        %v4345 = vmax.f32 %v4313, -1.0
        %v4346 = vmax.f32 %v4314, -1.0
        %v4347 = vmax.f32 %v4315, -1.0
        %v4348 = vmax.f32 %v4316, -1.0
        %v4349 = vmax.f32 %v4317, -1.0
        %v4350 = vmax.f32 %v4318, -1.0
        %v4351 = vmax.f32 %v4319, -1.0
        %v4352 = vmax.f32 %v4320, -1.0
        %v4353 = vmax.f32 %v4321, -1.0
        %v4354 = vmax.f32 %v4322, -1.0
        %v4355 = vmax.f32 %v4323, -1.0
        %v4356 = vmax.f32 %v4324, -1.0
        %v4357 = vmax.f32 %v4325, -1.0
        %v4358 = vmax.f32 %v4326, -1.0
        %v4359 = vmax.f32 %v4327, -1.0
        %v4360 = vmax.f32 %v4328, -1.0
        %v4361 = vmax.f32 %v4329, -1.0
        %v4362 = vmin.f32 %v4330, 1.0
        %v4363 = vmin.f32 %v4331, 1.0
        %v4364 = vmin.f32 %v4332, 1.0
        %v4365 = vmin.f32 %v4333, 1.0
        %v4366 = vmin.f32 %v4334, 1.0
        %v4367 = vmin.f32 %v4335, 1.0
        %v4368 = vmin.f32 %v4336, 1.0
        %v4369 = vmin.f32 %v4337, 1.0
        %v4370 = vmin.f32 %v4338, 1.0
        %v4371 = vmin.f32 %v4339, 1.0
        %v4372 = vmin.f32 %v4340, 1.0
        %v4373 = vmin.f32 %v4341, 1.0
        %v4374 = vmin.f32 %v4342, 1.0
        %v4375 = vmin.f32 %v4343, 1.0
        %v4376 = vmin.f32 %v4344, 1.0
        %v4377 = vmin.f32 %v4345, 1.0
        %v4378 = vmin.f32 %v4346, 1.0
        %v4379 = vmin.f32 %v4347, 1.0
        %v4380 = vmin.f32 %v4348, 1.0
        %v4381 = vmin.f32 %v4349, 1.0
        %v4382 = vmin.f32 %v4350, 1.0
        %v4383 = vmin.f32 %v4351, 1.0
        %v4384 = vmin.f32 %v4352, 1.0
        %v4385 = vmin.f32 %v4353, 1.0
        %v4386 = vmin.f32 %v4354, 1.0
        %v4387 = vmin.f32 %v4355, 1.0
        %v4388 = vmin.f32 %v4356, 1.0
        %v4389 = vmin.f32 %v4357, 1.0
        %v4390 = vmin.f32 %v4358, 1.0
        %v4391 = vmin.f32 %v4359, 1.0
        %v4392 = vmin.f32 %v4360, 1.0
        %v4393 = vmin.f32 %v4361, 1.0
        %4394 = vst [vmem:[#allocation2] sm:$0xff] %v4362
        %4395 = vst [vmem:[#allocation2 + $0x8] sm:$0xff] %v4363
        %4396 = vst [vmem:[#allocation2 + $0x10] sm:$0xff] %v4364
        %4397 = vst [vmem:[#allocation2 + $0x18] sm:$0xff] %v4365
        %4398 = vst [vmem:[#allocation2 + $0x20] sm:$0xff] %v4366
        %4399 = vst [vmem:[#allocation2 + $0x28] sm:$0xff] %v4367
        %4400 = vst [vmem:[#allocation2 + $0x30] sm:$0xff] %v4368
        %4401 = vst [vmem:[#allocation2 + $0x38] sm:$0xff] %v4369
        %4402 = vst [vmem:[#allocation2 + $0x40] sm:$0xff] %v4370
        %4403 = vst [vmem:[#allocation2 + $0x48] sm:$0xff] %v4371
        %4404 = vst [vmem:[#allocation2 + $0x50] sm:$0xff] %v4372
        %4405 = vst [vmem:[#allocation2 + $0x58] sm:$0xff] %v4373
        %4406 = vst [vmem:[#allocation2 + $0x60] sm:$0xff] %v4374
        %4407 = vst [vmem:[#allocation2 + $0x68] sm:$0xff] %v4375
        %4408 = vst [vmem:[#allocation2 + $0x70] sm:$0xff] %v4376
        %4409 = vst [vmem:[#allocation2 + $0x78] sm:$0xff] %v4377
        %4410 = vst [vmem:[#allocation2 + $0x80] sm:$0xff] %v4378
        %4411 = vst [vmem:[#allocation2 + $0x88] sm:$0xff] %v4379
        %4412 = vst [vmem:[#allocation2 + $0x90] sm:$0xff] %v4380
        %4413 = vst [vmem:[#allocation2 + $0x98] sm:$0xff] %v4381
        %4414 = vst [vmem:[#allocation2 + $0xa0] sm:$0xff] %v4382
        %4415 = vst [vmem:[#allocation2 + $0xa8] sm:$0xff] %v4383
        %4416 = vst [vmem:[#allocation2 + $0xb0] sm:$0xff] %v4384
        %4417 = vst [vmem:[#allocation2 + $0xb8] sm:$0xff] %v4385
        %4418 = vst [vmem:[#allocation2 + $0xc0] sm:$0xff] %v4386
        %4419 = vst [vmem:[#allocation2 + $0xc8] sm:$0xff] %v4387
        %4420 = vst [vmem:[#allocation2 + $0xd0] sm:$0xff] %v4388
        %4421 = vst [vmem:[#allocation2 + $0xd8] sm:$0xff] %v4389
        %4422 = vst [vmem:[#allocation2 + $0xe0] sm:$0xff] %v4390
        %4423 = vst [vmem:[#allocation2 + $0xe8] sm:$0xff] %v4391
        %4424 = vst [vmem:[#allocation2 + $0xf0] sm:$0xff] %v4392
        %4425 = vst [vmem:[#allocation2 + $0xf8] sm:$0xff] %v4393
        %4426 = vst [vmem:[%s309 + $0x6] sm:$0x1] %v4040
        %v4427 = vld [vmem:[#allocation2] sm:$0xff]
        %v4428 = vld [vmem:[#allocation2 + $0x8] sm:$0xff]
        %v4429 = vld [vmem:[#allocation2 + $0x10] sm:$0xff]
        %v4430 = vld [vmem:[#allocation2 + $0x18] sm:$0xff]
        %v4431 = vld [vmem:[#allocation2 + $0x20] sm:$0xff]
        %v4432 = vld [vmem:[#allocation2 + $0x28] sm:$0xff]
        %v4433 = vld [vmem:[#allocation2 + $0x30] sm:$0xff]
        %v4434 = vld [vmem:[#allocation2 + $0x38] sm:$0xff]
        %v4435 = vld [vmem:[#allocation2 + $0x40] sm:$0xff]
        %v4436 = vld [vmem:[#allocation2 + $0x48] sm:$0xff]
        %v4437 = vld [vmem:[#allocation2 + $0x50] sm:$0xff]
        %v4438 = vld [vmem:[#allocation2 + $0x58] sm:$0xff]
        %v4439 = vld [vmem:[#allocation2 + $0x60] sm:$0xff]
        %v4440 = vld [vmem:[#allocation2 + $0x68] sm:$0xff]
        %v4441 = vld [vmem:[#allocation2 + $0x70] sm:$0xff]
        %v4442 = vld [vmem:[#allocation2 + $0x78] sm:$0xff]
        %v4443 = vld [vmem:[#allocation2 + $0x80] sm:$0xff]
        %v4444 = vld [vmem:[#allocation2 + $0x88] sm:$0xff]
        %v4445 = vld [vmem:[#allocation2 + $0x90] sm:$0xff]
        %v4446 = vld [vmem:[#allocation2 + $0x98] sm:$0xff]
        %v4447 = vld [vmem:[#allocation2 + $0xa0] sm:$0xff]
        %v4448 = vld [vmem:[#allocation2 + $0xa8] sm:$0xff]
        %v4449 = vld [vmem:[#allocation2 + $0xb0] sm:$0xff]
        %v4450 = vld [vmem:[#allocation2 + $0xb8] sm:$0xff]
        %v4451 = vld [vmem:[#allocation2 + $0xc0] sm:$0xff]
        %v4452 = vld [vmem:[#allocation2 + $0xc8] sm:$0xff]
        %v4453 = vld [vmem:[#allocation2 + $0xd0] sm:$0xff]
        %v4454 = vld [vmem:[#allocation2 + $0xd8] sm:$0xff]
        %v4455 = vld [vmem:[#allocation2 + $0xe0] sm:$0xff]
        %v4456 = vld [vmem:[#allocation2 + $0xe8] sm:$0xff]
        %v4457 = vld [vmem:[#allocation2 + $0xf0] sm:$0xff]
        %v4458 = vld [vmem:[#allocation2 + $0xf8] sm:$0xff]
        %s4459 = scalar_lea.vmem %s314, 7
        %v4460 = vld [vmem:[%s4459] ss:$8 sm:$0x3]
        %s4461 = scalar_lea.vmem %s320, 1792
        %v4462 = vld [vmem:[%s4461] sm:$0xff]
        %v4463 = vld [vmem:[%s4461 + $0x8] sm:$0xff]
        %v4464 = vld [vmem:[%s4461 + $0x10] sm:$0xff]
        %v4465 = vld [vmem:[%s4461 + $0x18] sm:$0xff]
        %v4466 = vld [vmem:[%s4461 + $0x20] sm:$0xff]
        %v4467 = vld [vmem:[%s4461 + $0x28] sm:$0xff]
        %v4468 = vld [vmem:[%s4461 + $0x30] sm:$0xff]
        %v4469 = vld [vmem:[%s4461 + $0x38] sm:$0xff]
        %v4470 = vld [vmem:[%s4461 + $0x40] sm:$0xff]
        %v4471 = vld [vmem:[%s4461 + $0x48] sm:$0xff]
        %v4472 = vld [vmem:[%s4461 + $0x50] sm:$0xff]
        %v4473 = vld [vmem:[%s4461 + $0x58] sm:$0xff]
        %v4474 = vld [vmem:[%s4461 + $0x60] sm:$0xff]
        %v4475 = vld [vmem:[%s4461 + $0x68] sm:$0xff]
        %v4476 = vld [vmem:[%s4461 + $0x70] sm:$0xff]
        %v4477 = vld [vmem:[%s4461 + $0x78] sm:$0xff]
        %v4478 = vld [vmem:[%s4461 + $0x80] sm:$0xff]
        %v4479 = vld [vmem:[%s4461 + $0x88] sm:$0xff]
        %v4480 = vld [vmem:[%s4461 + $0x90] sm:$0xff]
        %v4481 = vld [vmem:[%s4461 + $0x98] sm:$0xff]
        %v4482 = vld [vmem:[%s4461 + $0xa0] sm:$0xff]
        %v4483 = vld [vmem:[%s4461 + $0xa8] sm:$0xff]
        %v4484 = vld [vmem:[%s4461 + $0xb0] sm:$0xff]
        %v4485 = vld [vmem:[%s4461 + $0xb8] sm:$0xff]
        %v4486 = vld [vmem:[%s4461 + $0xc0] sm:$0xff]
        %v4487 = vld [vmem:[%s4461 + $0xc8] sm:$0xff]
        %v4488 = vld [vmem:[%s4461 + $0xd0] sm:$0xff]
        %v4489 = vld [vmem:[%s4461 + $0xd8] sm:$0xff]
        %v4490 = vld [vmem:[%s4461 + $0xe0] sm:$0xff]
        %v4491 = vld [vmem:[%s4461 + $0xe8] sm:$0xff]
        %v4492 = vld [vmem:[%s4461 + $0xf0] sm:$0xff]
        %v4493 = vld [vmem:[%s4461 + $0xf8] sm:$0xff]
        %s4494 = scalar_lea.vmem %s327, 1792
        %v4495 = vld [vmem:[%s4494] sm:$0xff]
        %v4496 = vld [vmem:[%s4494 + $0x8] sm:$0xff]
        %v4497 = vld [vmem:[%s4494 + $0x10] sm:$0xff]
        %v4498 = vld [vmem:[%s4494 + $0x18] sm:$0xff]
        %v4499 = vld [vmem:[%s4494 + $0x20] sm:$0xff]
        %v4500 = vld [vmem:[%s4494 + $0x28] sm:$0xff]
        %v4501 = vld [vmem:[%s4494 + $0x30] sm:$0xff]
        %v4502 = vld [vmem:[%s4494 + $0x38] sm:$0xff]
        %v4503 = vld [vmem:[%s4494 + $0x40] sm:$0xff]
        %v4504 = vld [vmem:[%s4494 + $0x48] sm:$0xff]
        %v4505 = vld [vmem:[%s4494 + $0x50] sm:$0xff]
        %v4506 = vld [vmem:[%s4494 + $0x58] sm:$0xff]
        %v4507 = vld [vmem:[%s4494 + $0x60] sm:$0xff]
        %v4508 = vld [vmem:[%s4494 + $0x68] sm:$0xff]
        %v4509 = vld [vmem:[%s4494 + $0x70] sm:$0xff]
        %v4510 = vld [vmem:[%s4494 + $0x78] sm:$0xff]
        %v4511 = vld [vmem:[%s4494 + $0x80] sm:$0xff]
        %v4512 = vld [vmem:[%s4494 + $0x88] sm:$0xff]
        %v4513 = vld [vmem:[%s4494 + $0x90] sm:$0xff]
        %v4514 = vld [vmem:[%s4494 + $0x98] sm:$0xff]
        %v4515 = vld [vmem:[%s4494 + $0xa0] sm:$0xff]
        %v4516 = vld [vmem:[%s4494 + $0xa8] sm:$0xff]
        %v4517 = vld [vmem:[%s4494 + $0xb0] sm:$0xff]
        %v4518 = vld [vmem:[%s4494 + $0xb8] sm:$0xff]
        %v4519 = vld [vmem:[%s4494 + $0xc0] sm:$0xff]
        %v4520 = vld [vmem:[%s4494 + $0xc8] sm:$0xff]
        %v4521 = vld [vmem:[%s4494 + $0xd0] sm:$0xff]
        %v4522 = vld [vmem:[%s4494 + $0xd8] sm:$0xff]
        %v4523 = vld [vmem:[%s4494 + $0xe0] sm:$0xff]
        %v4524 = vld [vmem:[%s4494 + $0xe8] sm:$0xff]
        %v4525 = vld [vmem:[%s4494 + $0xf0] sm:$0xff]
        %v4526 = vld [vmem:[%s4494 + $0xf8] sm:$0xff]
        %v4527 = vld [vmem:[%s260 + $0x7] sm:$0x1]
        %v4528 = vmul.f32 %v365, %v4427
        %v4529 = vmul.f32 %v366, %v4428
        %v4530 = vmul.f32 %v367, %v4429
        %v4531 = vmul.f32 %v368, %v4430
        %v4532 = vmul.f32 %v369, %v4431
        %v4533 = vmul.f32 %v370, %v4432
        %v4534 = vmul.f32 %v371, %v4433
        %v4535 = vmul.f32 %v372, %v4434
        %v4536 = vmul.f32 %v373, %v4435
        %v4537 = vmul.f32 %v374, %v4436
        %v4538 = vmul.f32 %v375, %v4437
        %v4539 = vmul.f32 %v376, %v4438
        %v4540 = vmul.f32 %v377, %v4439
        %v4541 = vmul.f32 %v378, %v4440
        %v4542 = vmul.f32 %v379, %v4441
        %v4543 = vmul.f32 %v380, %v4442
        %v4544 = vmul.f32 %v381, %v4443
        %v4545 = vmul.f32 %v382, %v4444
        %v4546 = vmul.f32 %v383, %v4445
        %v4547 = vmul.f32 %v384, %v4446
        %v4548 = vmul.f32 %v385, %v4447
        %v4549 = vmul.f32 %v386, %v4448
        %v4550 = vmul.f32 %v387, %v4449
        %v4551 = vmul.f32 %v388, %v4450
        %v4552 = vmul.f32 %v389, %v4451
        %v4553 = vmul.f32 %v390, %v4452
        %v4554 = vmul.f32 %v391, %v4453
        %v4555 = vmul.f32 %v392, %v4454
        %v4556 = vmul.f32 %v393, %v4455
        %v4557 = vmul.f32 %v394, %v4456
        %v4558 = vmul.f32 %v395, %v4457
        %v4559 = vmul.f32 %v396, %v4458
        %v4561 = vperm.slane %v4460, 0
        %v4562 = vperm.slane %v4460, 1
        %4565 = vmatpush.msra.mxu0 %v4543
        %4566 = vmatpush.msra.mxu0 %v4542
        %4567 = vmatpush.msra.mxu0 %v4541
        %4568 = vmatpush.msra.mxu0 %v4540
        %4569 = vmatpush.msra.mxu0 %v4539
        %4570 = vmatpush.msra.mxu0 %v4538
        %4571 = vmatpush.msra.mxu0 %v4537
        %4572 = vmatpush.msra.mxu0 %v4536
        %4573 = vmatpush.msra.mxu0 %v4535
        %4574 = vmatpush.msra.mxu0 %v4534
        %4575 = vmatpush.msra.mxu0 %v4533
        %4576 = vmatpush.msra.mxu0 %v4532
        %4577 = vmatpush.msra.mxu0 %v4531
        %4578 = vmatpush.msra.mxu0 %v4530
        %4579 = vmatpush.msra.mxu0 %v4529
        %4580 = vmatpush.msra.mxu0 %v4528
        %4581 = vmatmul.f32.gmra.mxu0 %v4561
        %v4582 = vpop.f32.mrf.mxu0
        %v4583 = vadd.f32 0.0, %v4582
        %4584 = vdwg.mxu0
        %4585 = vmatpush.msra.mxu0 %v4559
        %4586 = vmatpush.msra.mxu0 %v4558
        %4587 = vmatpush.msra.mxu0 %v4557
        %4588 = vmatpush.msra.mxu0 %v4556
        %4589 = vmatpush.msra.mxu0 %v4555
        %4590 = vmatpush.msra.mxu0 %v4554
        %4591 = vmatpush.msra.mxu0 %v4553
        %4592 = vmatpush.msra.mxu0 %v4552
        %4593 = vmatpush.msra.mxu0 %v4551
        %4594 = vmatpush.msra.mxu0 %v4550
        %4595 = vmatpush.msra.mxu0 %v4549
        %4596 = vmatpush.msra.mxu0 %v4548
        %4597 = vmatpush.msra.mxu0 %v4547
        %4598 = vmatpush.msra.mxu0 %v4546
        %4599 = vmatpush.msra.mxu0 %v4545
        %4600 = vmatpush.msra.mxu0 %v4544
        %4601 = vmatmul.f32.gmra.mxu0 %v4562
        %v4602 = vpop.f32.mrf.mxu0
        %v4603 = vadd.f32 %v4583, %v4602
        %4604 = vdwg.mxu0
        %v4605 = vadd.f32 %v4527, %v4603
        %v4606 = vsel %vm573, %v4605, -inf
        %4607 = vmax.xlane.f32.xlu0 %v4606
        %v4608 = vpop.xlane.xlu0 %4607
        %v4609 = vsub.f32 %v4605, %v4608
        %v4610 = vmul.f32 %v4609, 1.442695
        %v4611 = vpow.pop %v4610
        %v4612 = vsel %vm573, %v4611, 0.0
        %4613 = vadd.xlane.f32.xlu0 %v4612
        %v4614 = vpop.xlane.xlu0 %4613
        %v4615 = vrcp.pop %v4614
        %v4616 = vmul.f32 %v4611, %v4615
        %4618 = vset.pattern.permute.xlu0 0
        %4619 = vperm.xlu0 %4618, %v4462
        %v4620 = vpop.permute.xlu0 %4619
        %4623 = vset.pattern.permute.xlu0 0
        %4624 = vperm.xlu0 %4623, %v4463
        %v4625 = vpop.permute.xlu0 %4624
        %4628 = vset.pattern.permute.xlu0 0
        %4629 = vperm.xlu0 %4628, %v4464
        %v4630 = vpop.permute.xlu0 %4629
        %4633 = vset.pattern.permute.xlu0 0
        %4634 = vperm.xlu0 %4633, %v4465
        %v4635 = vpop.permute.xlu0 %4634
        %4638 = vset.pattern.permute.xlu0 0
        %4639 = vperm.xlu0 %4638, %v4466
        %v4640 = vpop.permute.xlu0 %4639
        %4643 = vset.pattern.permute.xlu0 0
        %4644 = vperm.xlu0 %4643, %v4467
        %v4645 = vpop.permute.xlu0 %4644
        %4648 = vset.pattern.permute.xlu0 0
        %4649 = vperm.xlu0 %4648, %v4468
        %v4650 = vpop.permute.xlu0 %4649
        %4653 = vset.pattern.permute.xlu0 0
        %4654 = vperm.xlu0 %4653, %v4469
        %v4655 = vpop.permute.xlu0 %4654
        %4658 = vset.pattern.permute.xlu0 0
        %4659 = vperm.xlu0 %4658, %v4470
        %v4660 = vpop.permute.xlu0 %4659
        %4663 = vset.pattern.permute.xlu0 0
        %4664 = vperm.xlu0 %4663, %v4471
        %v4665 = vpop.permute.xlu0 %4664
        %4668 = vset.pattern.permute.xlu0 0
        %4669 = vperm.xlu0 %4668, %v4472
        %v4670 = vpop.permute.xlu0 %4669
        %4673 = vset.pattern.permute.xlu0 0
        %4674 = vperm.xlu0 %4673, %v4473
        %v4675 = vpop.permute.xlu0 %4674
        %4678 = vset.pattern.permute.xlu0 0
        %4679 = vperm.xlu0 %4678, %v4474
        %v4680 = vpop.permute.xlu0 %4679
        %4683 = vset.pattern.permute.xlu0 0
        %4684 = vperm.xlu0 %4683, %v4475
        %v4685 = vpop.permute.xlu0 %4684
        %4688 = vset.pattern.permute.xlu0 0
        %4689 = vperm.xlu0 %4688, %v4476
        %v4690 = vpop.permute.xlu0 %4689
        %4693 = vset.pattern.permute.xlu0 0
        %4694 = vperm.xlu0 %4693, %v4477
        %v4695 = vpop.permute.xlu0 %4694
        %4698 = vset.pattern.permute.xlu0 0
        %4699 = vperm.xlu0 %4698, %v4478
        %v4700 = vpop.permute.xlu0 %4699
        %4703 = vset.pattern.permute.xlu0 0
        %4704 = vperm.xlu0 %4703, %v4479
        %v4705 = vpop.permute.xlu0 %4704
        %4708 = vset.pattern.permute.xlu0 0
        %4709 = vperm.xlu0 %4708, %v4480
        %v4710 = vpop.permute.xlu0 %4709
        %4713 = vset.pattern.permute.xlu0 0
        %4714 = vperm.xlu0 %4713, %v4481
        %v4715 = vpop.permute.xlu0 %4714
        %4718 = vset.pattern.permute.xlu0 0
        %4719 = vperm.xlu0 %4718, %v4482
        %v4720 = vpop.permute.xlu0 %4719
        %4723 = vset.pattern.permute.xlu0 0
        %4724 = vperm.xlu0 %4723, %v4483
        %v4725 = vpop.permute.xlu0 %4724
        %4728 = vset.pattern.permute.xlu0 0
        %4729 = vperm.xlu0 %4728, %v4484
        %v4730 = vpop.permute.xlu0 %4729
        %4733 = vset.pattern.permute.xlu0 0
        %4734 = vperm.xlu0 %4733, %v4485
        %v4735 = vpop.permute.xlu0 %4734
        %4738 = vset.pattern.permute.xlu0 0
        %4739 = vperm.xlu0 %4738, %v4486
        %v4740 = vpop.permute.xlu0 %4739
        %4743 = vset.pattern.permute.xlu0 0
        %4744 = vperm.xlu0 %4743, %v4487
        %v4745 = vpop.permute.xlu0 %4744
        %4748 = vset.pattern.permute.xlu0 0
        %4749 = vperm.xlu0 %4748, %v4488
        %v4750 = vpop.permute.xlu0 %4749
        %4753 = vset.pattern.permute.xlu0 0
        %4754 = vperm.xlu0 %4753, %v4489
        %v4755 = vpop.permute.xlu0 %4754
        %4758 = vset.pattern.permute.xlu0 0
        %4759 = vperm.xlu0 %4758, %v4490
        %v4760 = vpop.permute.xlu0 %4759
        %4763 = vset.pattern.permute.xlu0 0
        %4764 = vperm.xlu0 %4763, %v4491
        %v4765 = vpop.permute.xlu0 %4764
        %4768 = vset.pattern.permute.xlu0 0
        %4769 = vperm.xlu0 %4768, %v4492
        %v4770 = vpop.permute.xlu0 %4769
        %4773 = vset.pattern.permute.xlu0 0
        %4774 = vperm.xlu0 %4773, %v4493
        %v4775 = vpop.permute.xlu0 %4774
        %v4777 = vperm.slane %v4616, 0
        %v4778 = vmul.f32 %v4620, %v4777
        %v4779 = vmul.f32 %v4625, %v4777
        %v4780 = vmul.f32 %v4630, %v4777
        %v4781 = vmul.f32 %v4635, %v4777
        %v4782 = vmul.f32 %v4640, %v4777
        %v4783 = vmul.f32 %v4645, %v4777
        %v4784 = vmul.f32 %v4650, %v4777
        %v4785 = vmul.f32 %v4655, %v4777
        %v4786 = vmul.f32 %v4660, %v4777
        %v4787 = vmul.f32 %v4665, %v4777
        %v4788 = vmul.f32 %v4670, %v4777
        %v4789 = vmul.f32 %v4675, %v4777
        %v4790 = vmul.f32 %v4680, %v4777
        %v4791 = vmul.f32 %v4685, %v4777
        %v4792 = vmul.f32 %v4690, %v4777
        %v4793 = vmul.f32 %v4695, %v4777
        %v4794 = vmul.f32 %v4700, %v4777
        %v4795 = vmul.f32 %v4705, %v4777
        %v4796 = vmul.f32 %v4710, %v4777
        %v4797 = vmul.f32 %v4715, %v4777
        %v4798 = vmul.f32 %v4720, %v4777
        %v4799 = vmul.f32 %v4725, %v4777
        %v4800 = vmul.f32 %v4730, %v4777
        %v4801 = vmul.f32 %v4735, %v4777
        %v4802 = vmul.f32 %v4740, %v4777
        %v4803 = vmul.f32 %v4745, %v4777
        %v4804 = vmul.f32 %v4750, %v4777
        %v4805 = vmul.f32 %v4755, %v4777
        %v4806 = vmul.f32 %v4760, %v4777
        %v4807 = vmul.f32 %v4765, %v4777
        %v4808 = vmul.f32 %v4770, %v4777
        %v4809 = vmul.f32 %v4775, %v4777
        %v4810 = vsub.f32 %v4778, %v4427
        %v4811 = vsub.f32 %v4779, %v4428
        %v4812 = vsub.f32 %v4780, %v4429
        %v4813 = vsub.f32 %v4781, %v4430
        %v4814 = vsub.f32 %v4782, %v4431
        %v4815 = vsub.f32 %v4783, %v4432
        %v4816 = vsub.f32 %v4784, %v4433
        %v4817 = vsub.f32 %v4785, %v4434
        %v4818 = vsub.f32 %v4786, %v4435
        %v4819 = vsub.f32 %v4787, %v4436
        %v4820 = vsub.f32 %v4788, %v4437
        %v4821 = vsub.f32 %v4789, %v4438
        %v4822 = vsub.f32 %v4790, %v4439
        %v4823 = vsub.f32 %v4791, %v4440
        %v4824 = vsub.f32 %v4792, %v4441
        %v4825 = vsub.f32 %v4793, %v4442
        %v4826 = vsub.f32 %v4794, %v4443
        %v4827 = vsub.f32 %v4795, %v4444
        %v4828 = vsub.f32 %v4796, %v4445
        %v4829 = vsub.f32 %v4797, %v4446
        %v4830 = vsub.f32 %v4798, %v4447
        %v4831 = vsub.f32 %v4799, %v4448
        %v4832 = vsub.f32 %v4800, %v4449
        %v4833 = vsub.f32 %v4801, %v4450
        %v4834 = vsub.f32 %v4802, %v4451
        %v4835 = vsub.f32 %v4803, %v4452
        %v4836 = vsub.f32 %v4804, %v4453
        %v4837 = vsub.f32 %v4805, %v4454
        %v4838 = vsub.f32 %v4806, %v4455
        %v4839 = vsub.f32 %v4807, %v4456
        %v4840 = vsub.f32 %v4808, %v4457
        %v4841 = vsub.f32 %v4809, %v4458
        %v4842 = vmul.f32 %v4495, %v4810
        %v4843 = vmul.f32 %v4496, %v4811
        %v4844 = vmul.f32 %v4497, %v4812
        %v4845 = vmul.f32 %v4498, %v4813
        %v4846 = vmul.f32 %v4499, %v4814
        %v4847 = vmul.f32 %v4500, %v4815
        %v4848 = vmul.f32 %v4501, %v4816
        %v4849 = vmul.f32 %v4502, %v4817
        %v4850 = vmul.f32 %v4503, %v4818
        %v4851 = vmul.f32 %v4504, %v4819
        %v4852 = vmul.f32 %v4505, %v4820
        %v4853 = vmul.f32 %v4506, %v4821
        %v4854 = vmul.f32 %v4507, %v4822
        %v4855 = vmul.f32 %v4508, %v4823
        %v4856 = vmul.f32 %v4509, %v4824
        %v4857 = vmul.f32 %v4510, %v4825
        %v4858 = vmul.f32 %v4511, %v4826
        %v4859 = vmul.f32 %v4512, %v4827
        %v4860 = vmul.f32 %v4513, %v4828
        %v4861 = vmul.f32 %v4514, %v4829
        %v4862 = vmul.f32 %v4515, %v4830
        %v4863 = vmul.f32 %v4516, %v4831
        %v4864 = vmul.f32 %v4517, %v4832
        %v4865 = vmul.f32 %v4518, %v4833
        %v4866 = vmul.f32 %v4519, %v4834
        %v4867 = vmul.f32 %v4520, %v4835
        %v4868 = vmul.f32 %v4521, %v4836
        %v4869 = vmul.f32 %v4522, %v4837
        %v4870 = vmul.f32 %v4523, %v4838
        %v4871 = vmul.f32 %v4524, %v4839
        %v4872 = vmul.f32 %v4525, %v4840
        %v4873 = vmul.f32 %v4526, %v4841
        %v4874 = vadd.f32 %v4427, %v4842
        %v4875 = vadd.f32 %v4428, %v4843
        %v4876 = vadd.f32 %v4429, %v4844
        %v4877 = vadd.f32 %v4430, %v4845
        %v4878 = vadd.f32 %v4431, %v4846
        %v4879 = vadd.f32 %v4432, %v4847
        %v4880 = vadd.f32 %v4433, %v4848
        %v4881 = vadd.f32 %v4434, %v4849
        %v4882 = vadd.f32 %v4435, %v4850
        %v4883 = vadd.f32 %v4436, %v4851
        %v4884 = vadd.f32 %v4437, %v4852
        %v4885 = vadd.f32 %v4438, %v4853
        %v4886 = vadd.f32 %v4439, %v4854
        %v4887 = vadd.f32 %v4440, %v4855
        %v4888 = vadd.f32 %v4441, %v4856
        %v4889 = vadd.f32 %v4442, %v4857
        %v4890 = vadd.f32 %v4443, %v4858
        %v4891 = vadd.f32 %v4444, %v4859
        %v4892 = vadd.f32 %v4445, %v4860
        %v4893 = vadd.f32 %v4446, %v4861
        %v4894 = vadd.f32 %v4447, %v4862
        %v4895 = vadd.f32 %v4448, %v4863
        %v4896 = vadd.f32 %v4449, %v4864
        %v4897 = vadd.f32 %v4450, %v4865
        %v4898 = vadd.f32 %v4451, %v4866
        %v4899 = vadd.f32 %v4452, %v4867
        %v4900 = vadd.f32 %v4453, %v4868
        %v4901 = vadd.f32 %v4454, %v4869
        %v4902 = vadd.f32 %v4455, %v4870
        %v4903 = vadd.f32 %v4456, %v4871
        %v4904 = vadd.f32 %v4457, %v4872
        %v4905 = vadd.f32 %v4458, %v4873
        %v4906 = vmax.f32 %v4874, -1.0
        %v4907 = vmax.f32 %v4875, -1.0
        %v4908 = vmax.f32 %v4876, -1.0
        %v4909 = vmax.f32 %v4877, -1.0
        %v4910 = vmax.f32 %v4878, -1.0
        %v4911 = vmax.f32 %v4879, -1.0
        %v4912 = vmax.f32 %v4880, -1.0
        %v4913 = vmax.f32 %v4881, -1.0
        %v4914 = vmax.f32 %v4882, -1.0
        %v4915 = vmax.f32 %v4883, -1.0
        %v4916 = vmax.f32 %v4884, -1.0
        %v4917 = vmax.f32 %v4885, -1.0
        %v4918 = vmax.f32 %v4886, -1.0
        %v4919 = vmax.f32 %v4887, -1.0
        %v4920 = vmax.f32 %v4888, -1.0
        %v4921 = vmax.f32 %v4889, -1.0
        %v4922 = vmax.f32 %v4890, -1.0
        %v4923 = vmax.f32 %v4891, -1.0
        %v4924 = vmax.f32 %v4892, -1.0
        %v4925 = vmax.f32 %v4893, -1.0
        %v4926 = vmax.f32 %v4894, -1.0
        %v4927 = vmax.f32 %v4895, -1.0
        %v4928 = vmax.f32 %v4896, -1.0
        %v4929 = vmax.f32 %v4897, -1.0
        %v4930 = vmax.f32 %v4898, -1.0
        %v4931 = vmax.f32 %v4899, -1.0
        %v4932 = vmax.f32 %v4900, -1.0
        %v4933 = vmax.f32 %v4901, -1.0
        %v4934 = vmax.f32 %v4902, -1.0
        %v4935 = vmax.f32 %v4903, -1.0
        %v4936 = vmax.f32 %v4904, -1.0
        %v4937 = vmax.f32 %v4905, -1.0
        %v4938 = vmin.f32 %v4906, 1.0
        %v4939 = vmin.f32 %v4907, 1.0
        %v4940 = vmin.f32 %v4908, 1.0
        %v4941 = vmin.f32 %v4909, 1.0
        %v4942 = vmin.f32 %v4910, 1.0
        %v4943 = vmin.f32 %v4911, 1.0
        %v4944 = vmin.f32 %v4912, 1.0
        %v4945 = vmin.f32 %v4913, 1.0
        %v4946 = vmin.f32 %v4914, 1.0
        %v4947 = vmin.f32 %v4915, 1.0
        %v4948 = vmin.f32 %v4916, 1.0
        %v4949 = vmin.f32 %v4917, 1.0
        %v4950 = vmin.f32 %v4918, 1.0
        %v4951 = vmin.f32 %v4919, 1.0
        %v4952 = vmin.f32 %v4920, 1.0
        %v4953 = vmin.f32 %v4921, 1.0
        %v4954 = vmin.f32 %v4922, 1.0
        %v4955 = vmin.f32 %v4923, 1.0
        %v4956 = vmin.f32 %v4924, 1.0
        %v4957 = vmin.f32 %v4925, 1.0
        %v4958 = vmin.f32 %v4926, 1.0
        %v4959 = vmin.f32 %v4927, 1.0
        %v4960 = vmin.f32 %v4928, 1.0
        %v4961 = vmin.f32 %v4929, 1.0
        %v4962 = vmin.f32 %v4930, 1.0
        %v4963 = vmin.f32 %v4931, 1.0
        %v4964 = vmin.f32 %v4932, 1.0
        %v4965 = vmin.f32 %v4933, 1.0
        %v4966 = vmin.f32 %v4934, 1.0
        %v4967 = vmin.f32 %v4935, 1.0
        %v4968 = vmin.f32 %v4936, 1.0
        %v4969 = vmin.f32 %v4937, 1.0
        %4970 = vst [vmem:[#allocation2] sm:$0xff] %v4938
        %4971 = vst [vmem:[#allocation2 + $0x8] sm:$0xff] %v4939
        %4972 = vst [vmem:[#allocation2 + $0x10] sm:$0xff] %v4940
        %4973 = vst [vmem:[#allocation2 + $0x18] sm:$0xff] %v4941
        %4974 = vst [vmem:[#allocation2 + $0x20] sm:$0xff] %v4942
        %4975 = vst [vmem:[#allocation2 + $0x28] sm:$0xff] %v4943
        %4976 = vst [vmem:[#allocation2 + $0x30] sm:$0xff] %v4944
        %4977 = vst [vmem:[#allocation2 + $0x38] sm:$0xff] %v4945
        %4978 = vst [vmem:[#allocation2 + $0x40] sm:$0xff] %v4946
        %4979 = vst [vmem:[#allocation2 + $0x48] sm:$0xff] %v4947
        %4980 = vst [vmem:[#allocation2 + $0x50] sm:$0xff] %v4948
        %4981 = vst [vmem:[#allocation2 + $0x58] sm:$0xff] %v4949
        %4982 = vst [vmem:[#allocation2 + $0x60] sm:$0xff] %v4950
        %4983 = vst [vmem:[#allocation2 + $0x68] sm:$0xff] %v4951
        %4984 = vst [vmem:[#allocation2 + $0x70] sm:$0xff] %v4952
        %4985 = vst [vmem:[#allocation2 + $0x78] sm:$0xff] %v4953
        %4986 = vst [vmem:[#allocation2 + $0x80] sm:$0xff] %v4954
        %4987 = vst [vmem:[#allocation2 + $0x88] sm:$0xff] %v4955
        %4988 = vst [vmem:[#allocation2 + $0x90] sm:$0xff] %v4956
        %4989 = vst [vmem:[#allocation2 + $0x98] sm:$0xff] %v4957
        %4990 = vst [vmem:[#allocation2 + $0xa0] sm:$0xff] %v4958
        %4991 = vst [vmem:[#allocation2 + $0xa8] sm:$0xff] %v4959
        %4992 = vst [vmem:[#allocation2 + $0xb0] sm:$0xff] %v4960
        %4993 = vst [vmem:[#allocation2 + $0xb8] sm:$0xff] %v4961
        %4994 = vst [vmem:[#allocation2 + $0xc0] sm:$0xff] %v4962
        %4995 = vst [vmem:[#allocation2 + $0xc8] sm:$0xff] %v4963
        %4996 = vst [vmem:[#allocation2 + $0xd0] sm:$0xff] %v4964
        %4997 = vst [vmem:[#allocation2 + $0xd8] sm:$0xff] %v4965
        %4998 = vst [vmem:[#allocation2 + $0xe0] sm:$0xff] %v4966
        %4999 = vst [vmem:[#allocation2 + $0xe8] sm:$0xff] %v4967
        %5000 = vst [vmem:[#allocation2 + $0xf0] sm:$0xff] %v4968
        %5001 = vst [vmem:[#allocation2 + $0xf8] sm:$0xff] %v4969
        %5002 = vst [vmem:[%s309 + $0x7] sm:$0x1] %v4616
        %s5003 = sand.u32 %s156, 1
        %s5004 = scalar_lea.sflag [#allocation5], %s5003
        %s5005 = sand.u32 %s156, 1
        %s5006 = smul.addr %s5005, 8
        %s5007 = scalar_lea.vmem [#allocation8], %s5006
        // Predicated region
        $region53: #{tpu_custom_call.1} parent=39 // pred_check
          %p5008 = pneg %p166
        $region54: #{tpu_custom_call.1} parent=39 // pred_check_branch
          %5010 = sbr.rel (%p5008) target = $region56
        $region55: #{tpu_custom_call.1} parent=39 // pred_region
          %5012 = vsyncadd %s5004, 0
          %s5013 = smul.addr %s23, 8
          %s5014 = scalar_lea.hbm %s5, %s5013
          %s5016 = sshll.u32 %s5007, 4
          %s5017 = int_to_ptr.vmem [resolvable:$true] %s5016
          %s5018 = sshll.u32 %s5014, 4
          %s5019 = int_to_ptr.hbm [resolvable:$true] %s5018
          %5021 = dma.vmem_to_hbm [thread:$0]  %s5017, 128, %s5019, %s5004
        $region56: #{tpu_custom_call.1} parent=39 // pred_fallthru
          _
      $region40: #{tpu_custom_call.1} parent=5 // pred_fallthru
        _
      %p5022 = scmp.le.s32.totalorder 2, %s18
      // Predicated region
      $region57: #{tpu_custom_call.1} parent=5 // pred_check
        %p5023 = pneg %p5022
      $region58: #{tpu_custom_call.1} parent=5 // pred_check_branch
        %5025 = sbr.rel (%p5023) target = $region60
      $region59: #{tpu_custom_call.1} parent=5 // pred_region
        %s5026 = ssub.s32 %s18, 2
        // Predicated region
        $region61: #{tpu_custom_call.1} parent=59 // pred_check
          %p5027 = pneg %p172
        $region62: #{tpu_custom_call.1} parent=59 // pred_check_branch
          %5029 = sbr.rel (%p5027) target = $region64
        $region63: #{tpu_custom_call.1} parent=59 // pred_region
          %s5030 = sand.u32 %s157, 1
          %s5031 = scalar_lea.sflag [#allocation5], %s5030
          %s5032 = sand.u32 %s157, 1
          %s5033 = smul.addr %s5032, 8
          %s5034 = scalar_lea.vmem [#allocation8], %s5033
          %5036 = dma.done %s5031, 128
        $region64: #{tpu_custom_call.1} parent=59 // pred_fallthru
          _
      $region60: #{tpu_custom_call.1} parent=5 // pred_fallthru
        _
    $region6: #{tpu_custom_call.1} parent=1 // loop_footer
      %s22 = sadd.s32 1, %s18
    $region7: #{tpu_custom_call.1} parent=1 // loop_footer_branch
      %17 = sbr.rel target = $region3
    $region8: #{tpu_custom_call.1} parent=1 // loop_exit
      _
    %5037 = vsyncpa [#allocation4], 1
    %s5038 = scalar_lea.sflag [#allocation4], 1
    %5039 = vsyncpa %s5038, 1
    %5040 = vsyncpa [#allocation7], 1
    %5041 = vsyncpa [#allocation5], 1
    %s5042 = scalar_lea.sflag [#allocation5], 1
    %5043 = vsyncpa %s5042, 1

</llo_original>
